<compile_context>
chip_gen: v5e
topology: v5e:2x2
jax: 0.10.0
libtpu: 0.0.40
codegen_flags: <defaults>
</compile_context>

<pallas_src>
import functools

import jax
import jax.numpy as jnp
from jax import lax
from jax.experimental import pallas as pl
from jax.experimental.pallas import tpu as pltpu


def _round_up(x, m):
    return (x + m - 1) // m * m


# ---------------------------------------------------------------------------
# Fused Pallas kernel: all LSTM layers + linear head in one invocation
# ---------------------------------------------------------------------------
def make_fused_lstm_kernel(T, Bp, Hp, num_layers):
    """Builds the fused kernel.

    Positional refs:
      x_ref                     (T*Bp, D0)    time-major, batch-padded input
      per layer l:  wih_ref     (Din_l, 4Hp)  input weights (pre-transposed)
                    whh_ref     (Hp,    4Hp)  recurrent weights (pre-transposed)
                    b_ref       (1,     4Hp)  b_ih + b_hh, gate-padded
      wlin_ref                  (Hp, Op)
      blin_ref                  (1,  Op)
      out_ref                   (Bp, Op)      h_T @ W_lin + b  (lane-dense)
      gates_sc  VMEM scratch    (T*Bp, 4Hp)   pre-projected input gates
      hseq_sc   VMEM scratch    (T*Bp, Hp)    inter-layer hidden sequence
    """

    def kernel(*refs):
        x_ref = refs[0]
        layer_refs = [refs[1 + 3 * l: 4 + 3 * l] for l in range(num_layers)]
        wlin_ref = refs[1 + 3 * num_layers]
        blin_ref = refs[2 + 3 * num_layers]
        out_ref = refs[3 + 3 * num_layers]
        gates_sc = refs[4 + 3 * num_layers]
        hseq_sc = refs[5 + 3 * num_layers]

        h_last = jnp.zeros((Bp, Hp), jnp.float32)
        for l, (wih_ref, whh_ref, b_ref) in enumerate(layer_refs):
            # (1) Input projection for ALL timesteps as one big MXU matmul.
            #     Layer 0 reads the input slab; later layers read the previous
            #     layer's hidden sequence (kept in VMEM, never touches HBM).
            src = x_ref[...] if l == 0 else hseq_sc[...]
            gates_sc[...] = (
                jnp.dot(src, wih_ref[...], preferred_element_type=jnp.float32)
                + b_ref[...])

            whh = whh_ref[...]
            write_seq = l < num_layers - 1   # last layer: only h_T is needed

            # (2) Serial recurrence over time, fully unrolled (T is small).
            def step(t, carry, whh=whh, write_seq=write_seq):
                h, c = carry
                row = pl.multiple_of(t * Bp, Bp)
                g = gates_sc[pl.ds(row, Bp), :] + jnp.dot(
                    h, whh, preferred_element_type=jnp.float32)
                # PyTorch gate ordering i, f, g, o; each gate is a full
                # 128-lane tile after padding -> slicing is free.
                i = jax.nn.sigmoid(g[:, 0 * Hp:1 * Hp])
                f = jax.nn.sigmoid(g[:, 1 * Hp:2 * Hp])
                gg = jnp.tanh(g[:, 2 * Hp:3 * Hp])
                o = jax.nn.sigmoid(g[:, 3 * Hp:4 * Hp])
                c = f * c + i * gg
                h = o * jnp.tanh(c)
                if write_seq:
                    hseq_sc[pl.ds(row, Bp), :] = h
                return h, c

            zeros = jnp.zeros((Bp, Hp), jnp.float32)
            h_last, _ = lax.fori_loop(0, T, step, (zeros, zeros), unroll=True)

        # (3) Linear head on the final hidden state only (lane-dense store).
        out_ref[...] = (jnp.dot(h_last, wlin_ref[...],
                                preferred_element_type=jnp.float32)
                        + blin_ref[...])

    return kernel


# ---------------------------------------------------------------------------
# One-time parameter preparation (transpose, fuse biases, zero-pad to tiles)
# ---------------------------------------------------------------------------
def _pad_gate_axis(w, H, Hp):
    """Pad PyTorch's gate axis (4H, ordered i,f,g,o) to 4Hp, per gate block."""
    if w.ndim == 1:
        return jnp.pad(w.reshape(4, H), ((0, 0), (0, Hp - H))).reshape(4 * Hp)
    return jnp.pad(w.reshape(4, H, w.shape[1]),
                   ((0, 0), (0, Hp - H), (0, 0))).reshape(4 * Hp, w.shape[1])


def prepare_params(params):
    H = params["lstm"][0]["w_hh"].shape[1]
    O = params["linear"]["w"].shape[0]
    Hp = _round_up(H, 128)
    Op = _round_up(O, 128)

    layers = []
    for idx, layer in enumerate(params["lstm"]):
        w_ih = _pad_gate_axis(layer["w_ih"], H, Hp)               # (4Hp, Din)
        w_hh = _pad_gate_axis(layer["w_hh"], H, Hp)               # (4Hp, H)
        b = _pad_gate_axis(layer["b_ih"] + layer["b_hh"], H, Hp)  # (4Hp,)
        if idx > 0:   # inputs of layers > 0 are the (padded) hidden state
            w_ih = jnp.pad(w_ih, ((0, 0), (0, Hp - H)))
        w_hh = jnp.pad(w_hh, ((0, 0), (0, Hp - H)))
        layers.append({
            "wih_t": jnp.transpose(w_ih),                         # (Din|Hp, 4Hp)
            "whh_t": jnp.transpose(w_hh),                         # (Hp, 4Hp)
            "b": b.reshape(1, 4 * Hp),
        })

    w_lin = jnp.pad(params["linear"]["w"], ((0, Op - O), (0, Hp - H)))
    b_lin = jnp.pad(params["linear"]["b"], (0, Op - O))
    return {"layers": layers,
            "wlin_t": jnp.transpose(w_lin),                       # (Hp, Op)
            "blin": b_lin.reshape(1, Op)}


# ---------------------------------------------------------------------------
# Forward wrapper (eval-mode equivalent of LstmModel.forward)
# ---------------------------------------------------------------------------
@functools.partial(jax.jit, static_argnames=("out_channels",))
def lstm_model_forward(prepped, x_btd, *, out_channels):
    """x_btd: (B, T, in_channels) -> (B, out_channels)."""
    B, T, D = x_btd.shape
    Bp = _round_up(max(B, 8), 8)
    Hp, Op = prepped["wlin_t"].shape
    num_layers = len(prepped["layers"])

    # (B, T, D) -> time-major, batch padded to a full sublane tile, flattened.
    x = jnp.transpose(x_btd, (1, 0, 2))
    x = jnp.pad(x, ((0, 0), (0, Bp - B), (0, 0))).reshape(T * Bp, D)

    flat_in = [x]
    in_specs = [pl.BlockSpec((T * Bp, D), lambda i: (0, 0))]
    for layer in prepped["layers"]:
        for name in ("wih_t", "whh_t", "b"):
            arr = layer[name]
            flat_in.append(arr)
            in_specs.append(pl.BlockSpec(arr.shape, lambda i: (0, 0)))
    for arr in (prepped["wlin_t"], prepped["blin"]):
        flat_in.append(arr)
        in_specs.append(pl.BlockSpec(arr.shape, lambda i: (0, 0)))

    out = pl.pallas_call(
        make_fused_lstm_kernel(T, Bp, Hp, num_layers),
        out_shape=jax.ShapeDtypeStruct((Bp, Op), jnp.float32),
        grid_spec=pltpu.PrefetchScalarGridSpec(
            num_scalar_prefetch=0,
            grid=(1,),
            in_specs=in_specs,
            out_specs=pl.BlockSpec((Bp, Op), lambda i: (0, 0)),
            scratch_shapes=[
                pltpu.VMEM((T * Bp, 4 * Hp), jnp.float32),  # pre-projected gates
                pltpu.VMEM((T * Bp, Hp), jnp.float32),      # inter-layer hiddens
            ],
        ),
        compiler_params=pltpu.CompilerParams(
            dimension_semantics=("arbitrary",)),
    )(*flat_in)

    # TODO(synk): nn.LSTM inter-layer dropout(0.2) is train-mode only; this is
    # the eval-mode forward (no dropout).
    return out[:B, :out_channels]


# ---------------------------------------------------------------------------
# Parameter init (PyTorch-style uniform(-1/sqrt(H), 1/sqrt(H)), deterministic)
# ---------------------------------------------------------------------------
def init_params(key, in_channels, hidden, num_layers, out_channels):
    k = 1.0 / jnp.sqrt(hidden)
    params = {"lstm": [], "linear": {}}
    for layer in range(num_layers):
        d_in = in_channels if layer == 0 else hidden
        key, k1, k2, k3, k4 = jax.random.split(key, 5)
        params["lstm"].append({
            "w_ih": jax.random.uniform(k1, (4 * hidden, d_in), jnp.float32, -k, k),
            "w_hh": jax.random.uniform(k2, (4 * hidden, hidden), jnp.float32, -k, k),
            "b_ih": jax.random.uniform(k3, (4 * hidden,), jnp.float32, -k, k),
            "b_hh": jax.random.uniform(k4, (4 * hidden,), jnp.float32, -k, k),
        })
    key, k1, k2 = jax.random.split(key, 3)
    params["linear"]["w"] = jax.random.uniform(
        k1, (out_channels, hidden), jnp.float32, -k, k)
    params["linear"]["b"] = jax.random.uniform(
        k2, (out_channels,), jnp.float32, -k, k)
    return params


# ---------------------------------------------------------------------------
# Pure-JAX reference for correctness check
# ---------------------------------------------------------------------------
def ref_forward(params, x_btd):
    x = x_btd
    for layer in params["lstm"]:
        w_ih, w_hh = layer["w_ih"], layer["w_hh"]
        b_ih, b_hh = layer["b_ih"], layer["b_hh"]
        H = w_hh.shape[1]
        B = x.shape[0]

        def step(carry, xt):
            h, c = carry
            g = xt @ w_ih.T + b_ih + h @ w_hh.T + b_hh
            i, f, gg, o = jnp.split(g, 4, axis=-1)
            c = jax.nn.sigmoid(f) * c + jax.nn.sigmoid(i) * jnp.tanh(gg)
            h = jax.nn.sigmoid(o) * jnp.tanh(c)
            return (h, c), h

        init = (jnp.zeros((B, H), jnp.float32), jnp.zeros((B, H), jnp.float32))
        _, hs = jax.lax.scan(step, init, jnp.transpose(x, (1, 0, 2)))
        x = jnp.transpose(hs, (1, 0, 2))
    return x[:, -1, :] @ params["linear"]["w"].T + params["linear"]["b"]


if __name__ == "__main__":
    IN_CHANNELS, HIDDEN, NUM_LAYERS, OUT_CHANNELS = 4, 32, 2, 3
    BATCH, SEQ = 2, 8

    key = jax.random.PRNGKey(0)
    key, pkey, xkey = jax.random.split(key, 3)
    params = init_params(pkey, IN_CHANNELS, HIDDEN, NUM_LAYERS, OUT_CHANNELS)
    x = jax.random.normal(xkey, (BATCH, SEQ, IN_CHANNELS), jnp.float32)

    prepped = prepare_params(params)
    out = jax.block_until_ready(
        lstm_model_forward(prepped, x, out_channels=OUT_CHANNELS))
    ref = jax.block_until_ready(ref_forward(params, x))

    assert out.shape == (BATCH, OUT_CHANNELS), out.shape
    assert jnp.allclose(out, ref, atol=2e-5, rtol=2e-5), (out, ref)
    print("KERNEL_OK")
</pallas_src>

<mosaic_0001>
module attributes {stable_mosaic.version = 11 : i64} {
  func.func @kernel(%arg0: i32, %arg1: memref<64x4xf32, #tpu.memory_space<vmem>>, %arg2: memref<4x512xf32, #tpu.memory_space<vmem>>, %arg3: memref<128x512xf32, #tpu.memory_space<vmem>>, %arg4: memref<1x512xf32, #tpu.memory_space<vmem>>, %arg5: memref<128x512xf32, #tpu.memory_space<vmem>>, %arg6: memref<128x512xf32, #tpu.memory_space<vmem>>, %arg7: memref<1x512xf32, #tpu.memory_space<vmem>>, %arg8: memref<128x128xf32, #tpu.memory_space<vmem>>, %arg9: memref<1x128xf32, #tpu.memory_space<vmem>>, %arg10: memref<8x128xf32, #tpu.memory_space<vmem>>, %arg11: memref<64x512xf32, #tpu.memory_space<vmem>>, %arg12: memref<64x128xf32, #tpu.memory_space<vmem>>) attributes {dimension_semantics = [#tpu.dimension_semantics<arbitrary>], iteration_bounds = array<i64: 1>, scalar_prefetch = 0 : i64, scratch_operands = 2 : i64, tpu.core_type = #tpu.core_type<tc>, window_params = [{pipeline_mode = #tpu.pipeline_mode<synchronous>, transform_indices = @transform_0, window_bounds = array<i64: 64, 4>}, {pipeline_mode = #tpu.pipeline_mode<synchronous>, transform_indices = @transform_1, window_bounds = array<i64: 4, 512>}, {pipeline_mode = #tpu.pipeline_mode<synchronous>, transform_indices = @transform_2, window_bounds = array<i64: 128, 512>}, {pipeline_mode = #tpu.pipeline_mode<synchronous>, transform_indices = @transform_3, window_bounds = array<i64: 1, 512>}, {pipeline_mode = #tpu.pipeline_mode<synchronous>, transform_indices = @transform_4, window_bounds = array<i64: 128, 512>}, {pipeline_mode = #tpu.pipeline_mode<synchronous>, transform_indices = @transform_5, window_bounds = array<i64: 128, 512>}, {pipeline_mode = #tpu.pipeline_mode<synchronous>, transform_indices = @transform_6, window_bounds = array<i64: 1, 512>}, {pipeline_mode = #tpu.pipeline_mode<synchronous>, transform_indices = @transform_7, window_bounds = array<i64: 128, 128>}, {pipeline_mode = #tpu.pipeline_mode<synchronous>, transform_indices = @transform_8, window_bounds = array<i64: 1, 128>}, {pipeline_mode = #tpu.pipeline_mode<synchronous>, transform_indices = @transform_9, window_bounds = array<i64: 8, 128>}]} {
    %c0 = arith.constant 0 : index
    %c0_0 = arith.constant 0 : index
    %0 = vector.load %arg1[%c0, %c0_0] : memref<64x4xf32, #tpu.memory_space<vmem>>, vector<64x4xf32>
    %c0_1 = arith.constant 0 : index
    %c0_2 = arith.constant 0 : index
    %1 = vector.load %arg2[%c0_1, %c0_2] : memref<4x512xf32, #tpu.memory_space<vmem>>, vector<4x512xf32>
    %cst = arith.constant dense<0.000000e+00> : vector<64x512xf32>
    %2 = tpu.matmul %0, %1, %cst {dimension_numbers = #tpu.dot_dimension_numbers<[1], [0], [0], [1], [0, 0, 1, 1], [], []>} : vector<64x4xf32>, vector<4x512xf32>, vector<64x512xf32> -> vector<64x512xf32>
    %c0_3 = arith.constant 0 : index
    %c0_4 = arith.constant 0 : index
    %3 = vector.load %arg4[%c0_3, %c0_4] : memref<1x512xf32, #tpu.memory_space<vmem>>, vector<1x512xf32>
    %4 = vector.broadcast %3 : vector<1x512xf32> to vector<64x512xf32>
    %5 = arith.addf %2, %4 : vector<64x512xf32>
    %c0_5 = arith.constant 0 : index
    %c0_6 = arith.constant 0 : index
    %6 = vector.load %arg11[%c0_5, %c0_6] : memref<64x512xf32, #tpu.memory_space<vmem>>, vector<64x512xf32>
    tpu.vector_store %arg11[%c0_5, %c0_6], %5 {strides = array<i32>} : memref<64x512xf32, #tpu.memory_space<vmem>>, vector<64x512xf32>,
    %c0_7 = arith.constant 0 : index
    %c0_8 = arith.constant 0 : index
    %7 = vector.load %arg3[%c0_7, %c0_8] : memref<128x512xf32, #tpu.memory_space<vmem>>, vector<128x512xf32>
    %cst_9 = arith.constant 0.000000e+00 : f32
    %8 = vector.broadcast %cst_9 : f32 to vector<8x128xf32>
    %c0_i32 = arith.constant 0 : i32
    %c8_i32 = arith.constant 8 : i32
    %9 = arith.muli %c0_i32, %c8_i32 : i32
    %10 = tpu.assume_multiple %9, 8 : i32
    %11 = arith.index_cast %10 : i32 to index
    %c0_10 = arith.constant 0 : index
    %12 = vector.load %arg11[%11, %c0_10] : memref<64x512xf32, #tpu.memory_space<vmem>>, vector<8x512xf32>
    %cst_11 = arith.constant dense<0.000000e+00> : vector<8x512xf32>
    %13 = tpu.matmul %8, %7, %cst_11 {dimension_numbers = #tpu.dot_dimension_numbers<[1], [0], [0], [1], [0, 0, 1, 1], [], []>} : vector<8x128xf32>, vector<128x512xf32>, vector<8x512xf32> -> vector<8x512xf32>
    %14 = arith.addf %12, %13 : vector<8x512xf32>
    %15 = vector.extract_strided_slice %14 {offsets = [0, 0], sizes = [8, 128], strides = [1, 1]} : vector<8x512xf32> to vector<8x128xf32>
    %16 = arith.negf %15 : vector<8x128xf32>
    %17 = math.exp %16 : vector<8x128xf32>
    %cst_12 = arith.constant 1.000000e+00 : f32
    %18 = vector.broadcast %cst_12 : f32 to vector<8x128xf32>
    %19 = arith.addf %18, %17 : vector<8x128xf32>
    %20 = arith.divf %18, %19 : vector<8x128xf32>
    %21 = vector.extract_strided_slice %14 {offsets = [0, 128], sizes = [8, 128], strides = [1, 1]} : vector<8x512xf32> to vector<8x128xf32>
    %22 = arith.negf %21 : vector<8x128xf32>
    %23 = math.exp %22 : vector<8x128xf32>
    %cst_13 = arith.constant 1.000000e+00 : f32
    %24 = vector.broadcast %cst_13 : f32 to vector<8x128xf32>
    %25 = arith.addf %24, %23 : vector<8x128xf32>
    %26 = arith.divf %24, %25 : vector<8x128xf32>
    %27 = vector.extract_strided_slice %14 {offsets = [0, 256], sizes = [8, 128], strides = [1, 1]} : vector<8x512xf32> to vector<8x128xf32>
    %28 = math.tanh %27 : vector<8x128xf32>
    %29 = vector.extract_strided_slice %14 {offsets = [0, 384], sizes = [8, 128], strides = [1, 1]} : vector<8x512xf32> to vector<8x128xf32>
    %30 = arith.negf %29 : vector<8x128xf32>
    %31 = math.exp %30 : vector<8x128xf32>
    %cst_14 = arith.constant 1.000000e+00 : f32
    %32 = vector.broadcast %cst_14 : f32 to vector<8x128xf32>
    %33 = arith.addf %32, %31 : vector<8x128xf32>
    %34 = arith.divf %32, %33 : vector<8x128xf32>
    %35 = arith.mulf %26, %8 : vector<8x128xf32>
    %36 = arith.mulf %20, %28 : vector<8x128xf32>
    %37 = arith.addf %35, %36 : vector<8x128xf32>
    %38 = math.tanh %37 : vector<8x128xf32>
    %39 = arith.mulf %34, %38 : vector<8x128xf32>
    %40 = arith.index_cast %10 : i32 to index
    %c0_15 = arith.constant 0 : index
    %41 = vector.load %arg12[%40, %c0_15] : memref<64x128xf32, #tpu.memory_space<vmem>>, vector<8x128xf32>
    tpu.vector_store %arg12[%40, %c0_15], %39 {strides = array<i32>} : memref<64x128xf32, #tpu.memory_space<vmem>>, vector<8x128xf32>,
    %c1_i32 = arith.constant 1 : i32
    %c8_i32_16 = arith.constant 8 : i32
    %42 = arith.muli %c1_i32, %c8_i32_16 : i32
    %43 = tpu.assume_multiple %42, 8 : i32
    %44 = arith.index_cast %43 : i32 to index
    %c0_17 = arith.constant 0 : index
    %45 = vector.load %arg11[%44, %c0_17] : memref<64x512xf32, #tpu.memory_space<vmem>>, vector<8x512xf32>
    %cst_18 = arith.constant dense<0.000000e+00> : vector<8x512xf32>
    %46 = tpu.matmul %39, %7, %cst_18 {dimension_numbers = #tpu.dot_dimension_numbers<[1], [0], [0], [1], [0, 0, 1, 1], [], []>} : vector<8x128xf32>, vector<128x512xf32>, vector<8x512xf32> -> vector<8x512xf32>
    %47 = arith.addf %45, %46 : vector<8x512xf32>
    %48 = vector.extract_strided_slice %47 {offsets = [0, 0], sizes = [8, 128], strides = [1, 1]} : vector<8x512xf32> to vector<8x128xf32>
    %49 = arith.negf %48 : vector<8x128xf32>
    %50 = math.exp %49 : vector<8x128xf32>
    %cst_19 = arith.constant 1.000000e+00 : f32
    %51 = vector.broadcast %cst_19 : f32 to vector<8x128xf32>
    %52 = arith.addf %51, %50 : vector<8x128xf32>
    %53 = arith.divf %51, %52 : vector<8x128xf32>
    %54 = vector.extract_strided_slice %47 {offsets = [0, 128], sizes = [8, 128], strides = [1, 1]} : vector<8x512xf32> to vector<8x128xf32>
    %55 = arith.negf %54 : vector<8x128xf32>
    %56 = math.exp %55 : vector<8x128xf32>
    %cst_20 = arith.constant 1.000000e+00 : f32
    %57 = vector.broadcast %cst_20 : f32 to vector<8x128xf32>
    %58 = arith.addf %57, %56 : vector<8x128xf32>
    %59 = arith.divf %57, %58 : vector<8x128xf32>
    %60 = vector.extract_strided_slice %47 {offsets = [0, 256], sizes = [8, 128], strides = [1, 1]} : vector<8x512xf32> to vector<8x128xf32>
    %61 = math.tanh %60 : vector<8x128xf32>
    %62 = vector.extract_strided_slice %47 {offsets = [0, 384], sizes = [8, 128], strides = [1, 1]} : vector<8x512xf32> to vector<8x128xf32>
    %63 = arith.negf %62 : vector<8x128xf32>
    %64 = math.exp %63 : vector<8x128xf32>
    %cst_21 = arith.constant 1.000000e+00 : f32
    %65 = vector.broadcast %cst_21 : f32 to vector<8x128xf32>
    %66 = arith.addf %65, %64 : vector<8x128xf32>
    %67 = arith.divf %65, %66 : vector<8x128xf32>
    %68 = arith.mulf %59, %37 : vector<8x128xf32>
    %69 = arith.mulf %53, %61 : vector<8x128xf32>
    %70 = arith.addf %68, %69 : vector<8x128xf32>
    %71 = math.tanh %70 : vector<8x128xf32>
    %72 = arith.mulf %67, %71 : vector<8x128xf32>
    %73 = arith.index_cast %43 : i32 to index
    %c0_22 = arith.constant 0 : index
    %74 = vector.load %arg12[%73, %c0_22] : memref<64x128xf32, #tpu.memory_space<vmem>>, vector<8x128xf32>
    tpu.vector_store %arg12[%73, %c0_22], %72 {strides = array<i32>} : memref<64x128xf32, #tpu.memory_space<vmem>>, vector<8x128xf32>,
    %c2_i32 = arith.constant 2 : i32
    %c8_i32_23 = arith.constant 8 : i32
    %75 = arith.muli %c2_i32, %c8_i32_23 : i32
    %76 = tpu.assume_multiple %75, 8 : i32
    %77 = arith.index_cast %76 : i32 to index
    %c0_24 = arith.constant 0 : index
    %78 = vector.load %arg11[%77, %c0_24] : memref<64x512xf32, #tpu.memory_space<vmem>>, vector<8x512xf32>
    %cst_25 = arith.constant dense<0.000000e+00> : vector<8x512xf32>
    %79 = tpu.matmul %72, %7, %cst_25 {dimension_numbers = #tpu.dot_dimension_numbers<[1], [0], [0], [1], [0, 0, 1, 1], [], []>} : vector<8x128xf32>, vector<128x512xf32>, vector<8x512xf32> -> vector<8x512xf32>
    %80 = arith.addf %78, %79 : vector<8x512xf32>
    %81 = vector.extract_strided_slice %80 {offsets = [0, 0], sizes = [8, 128], strides = [1, 1]} : vector<8x512xf32> to vector<8x128xf32>
    %82 = arith.negf %81 : vector<8x128xf32>
    %83 = math.exp %82 : vector<8x128xf32>
    %cst_26 = arith.constant 1.000000e+00 : f32
    %84 = vector.broadcast %cst_26 : f32 to vector<8x128xf32>
    %85 = arith.addf %84, %83 : vector<8x128xf32>
    %86 = arith.divf %84, %85 : vector<8x128xf32>
    %87 = vector.extract_strided_slice %80 {offsets = [0, 128], sizes = [8, 128], strides = [1, 1]} : vector<8x512xf32> to vector<8x128xf32>
    %88 = arith.negf %87 : vector<8x128xf32>
    %89 = math.exp %88 : vector<8x128xf32>
    %cst_27 = arith.constant 1.000000e+00 : f32
    %90 = vector.broadcast %cst_27 : f32 to vector<8x128xf32>
    %91 = arith.addf %90, %89 : vector<8x128xf32>
    %92 = arith.divf %90, %91 : vector<8x128xf32>
    %93 = vector.extract_strided_slice %80 {offsets = [0, 256], sizes = [8, 128], strides = [1, 1]} : vector<8x512xf32> to vector<8x128xf32>
    %94 = math.tanh %93 : vector<8x128xf32>
    %95 = vector.extract_strided_slice %80 {offsets = [0, 384], sizes = [8, 128], strides = [1, 1]} : vector<8x512xf32> to vector<8x128xf32>
    %96 = arith.negf %95 : vector<8x128xf32>
    %97 = math.exp %96 : vector<8x128xf32>
    %cst_28 = arith.constant 1.000000e+00 : f32
    %98 = vector.broadcast %cst_28 : f32 to vector<8x128xf32>
    %99 = arith.addf %98, %97 : vector<8x128xf32>
    %100 = arith.divf %98, %99 : vector<8x128xf32>
    %101 = arith.mulf %92, %70 : vector<8x128xf32>
    %102 = arith.mulf %86, %94 : vector<8x128xf32>
    %103 = arith.addf %101, %102 : vector<8x128xf32>
    %104 = math.tanh %103 : vector<8x128xf32>
    %105 = arith.mulf %100, %104 : vector<8x128xf32>
    %106 = arith.index_cast %76 : i32 to index
    %c0_29 = arith.constant 0 : index
    %107 = vector.load %arg12[%106, %c0_29] : memref<64x128xf32, #tpu.memory_space<vmem>>, vector<8x128xf32>
    tpu.vector_store %arg12[%106, %c0_29], %105 {strides = array<i32>} : memref<64x128xf32, #tpu.memory_space<vmem>>, vector<8x128xf32>,
    %c3_i32 = arith.constant 3 : i32
    %c8_i32_30 = arith.constant 8 : i32
    %108 = arith.muli %c3_i32, %c8_i32_30 : i32
    %109 = tpu.assume_multiple %108, 8 : i32
    %110 = arith.index_cast %109 : i32 to index
    %c0_31 = arith.constant 0 : index
    %111 = vector.load %arg11[%110, %c0_31] : memref<64x512xf32, #tpu.memory_space<vmem>>, vector<8x512xf32>
    %cst_32 = arith.constant dense<0.000000e+00> : vector<8x512xf32>
    %112 = tpu.matmul %105, %7, %cst_32 {dimension_numbers = #tpu.dot_dimension_numbers<[1], [0], [0], [1], [0, 0, 1, 1], [], []>} : vector<8x128xf32>, vector<128x512xf32>, vector<8x512xf32> -> vector<8x512xf32>
    %113 = arith.addf %111, %112 : vector<8x512xf32>
    %114 = vector.extract_strided_slice %113 {offsets = [0, 0], sizes = [8, 128], strides = [1, 1]} : vector<8x512xf32> to vector<8x128xf32>
    %115 = arith.negf %114 : vector<8x128xf32>
    %116 = math.exp %115 : vector<8x128xf32>
    %cst_33 = arith.constant 1.000000e+00 : f32
    %117 = vector.broadcast %cst_33 : f32 to vector<8x128xf32>
    %118 = arith.addf %117, %116 : vector<8x128xf32>
    %119 = arith.divf %117, %118 : vector<8x128xf32>
    %120 = vector.extract_strided_slice %113 {offsets = [0, 128], sizes = [8, 128], strides = [1, 1]} : vector<8x512xf32> to vector<8x128xf32>
    %121 = arith.negf %120 : vector<8x128xf32>
    %122 = math.exp %121 : vector<8x128xf32>
    %cst_34 = arith.constant 1.000000e+00 : f32
    %123 = vector.broadcast %cst_34 : f32 to vector<8x128xf32>
    %124 = arith.addf %123, %122 : vector<8x128xf32>
    %125 = arith.divf %123, %124 : vector<8x128xf32>
    %126 = vector.extract_strided_slice %113 {offsets = [0, 256], sizes = [8, 128], strides = [1, 1]} : vector<8x512xf32> to vector<8x128xf32>
    %127 = math.tanh %126 : vector<8x128xf32>
    %128 = vector.extract_strided_slice %113 {offsets = [0, 384], sizes = [8, 128], strides = [1, 1]} : vector<8x512xf32> to vector<8x128xf32>
    %129 = arith.negf %128 : vector<8x128xf32>
    %130 = math.exp %129 : vector<8x128xf32>
    %cst_35 = arith.constant 1.000000e+00 : f32
    %131 = vector.broadcast %cst_35 : f32 to vector<8x128xf32>
    %132 = arith.addf %131, %130 : vector<8x128xf32>
    %133 = arith.divf %131, %132 : vector<8x128xf32>
    %134 = arith.mulf %125, %103 : vector<8x128xf32>
    %135 = arith.mulf %119, %127 : vector<8x128xf32>
    %136 = arith.addf %134, %135 : vector<8x128xf32>
    %137 = math.tanh %136 : vector<8x128xf32>
    %138 = arith.mulf %133, %137 : vector<8x128xf32>
    %139 = arith.index_cast %109 : i32 to index
    %c0_36 = arith.constant 0 : index
    %140 = vector.load %arg12[%139, %c0_36] : memref<64x128xf32, #tpu.memory_space<vmem>>, vector<8x128xf32>
    tpu.vector_store %arg12[%139, %c0_36], %138 {strides = array<i32>} : memref<64x128xf32, #tpu.memory_space<vmem>>, vector<8x128xf32>,
    %c4_i32 = arith.constant 4 : i32
    %c8_i32_37 = arith.constant 8 : i32
    %141 = arith.muli %c4_i32, %c8_i32_37 : i32
    %142 = tpu.assume_multiple %141, 8 : i32
    %143 = arith.index_cast %142 : i32 to index
    %c0_38 = arith.constant 0 : index
    %144 = vector.load %arg11[%143, %c0_38] : memref<64x512xf32, #tpu.memory_space<vmem>>, vector<8x512xf32>
    %cst_39 = arith.constant dense<0.000000e+00> : vector<8x512xf32>
    %145 = tpu.matmul %138, %7, %cst_39 {dimension_numbers = #tpu.dot_dimension_numbers<[1], [0], [0], [1], [0, 0, 1, 1], [], []>} : vector<8x128xf32>, vector<128x512xf32>, vector<8x512xf32> -> vector<8x512xf32>
    %146 = arith.addf %144, %145 : vector<8x512xf32>
    %147 = vector.extract_strided_slice %146 {offsets = [0, 0], sizes = [8, 128], strides = [1, 1]} : vector<8x512xf32> to vector<8x128xf32>
    %148 = arith.negf %147 : vector<8x128xf32>
    %149 = math.exp %148 : vector<8x128xf32>
    %cst_40 = arith.constant 1.000000e+00 : f32
    %150 = vector.broadcast %cst_40 : f32 to vector<8x128xf32>
    %151 = arith.addf %150, %149 : vector<8x128xf32>
    %152 = arith.divf %150, %151 : vector<8x128xf32>
    %153 = vector.extract_strided_slice %146 {offsets = [0, 128], sizes = [8, 128], strides = [1, 1]} : vector<8x512xf32> to vector<8x128xf32>
    %154 = arith.negf %153 : vector<8x128xf32>
    %155 = math.exp %154 : vector<8x128xf32>
    %cst_41 = arith.constant 1.000000e+00 : f32
    %156 = vector.broadcast %cst_41 : f32 to vector<8x128xf32>
    %157 = arith.addf %156, %155 : vector<8x128xf32>
    %158 = arith.divf %156, %157 : vector<8x128xf32>
    %159 = vector.extract_strided_slice %146 {offsets = [0, 256], sizes = [8, 128], strides = [1, 1]} : vector<8x512xf32> to vector<8x128xf32>
    %160 = math.tanh %159 : vector<8x128xf32>
    %161 = vector.extract_strided_slice %146 {offsets = [0, 384], sizes = [8, 128], strides = [1, 1]} : vector<8x512xf32> to vector<8x128xf32>
    %162 = arith.negf %161 : vector<8x128xf32>
    %163 = math.exp %162 : vector<8x128xf32>
    %cst_42 = arith.constant 1.000000e+00 : f32
    %164 = vector.broadcast %cst_42 : f32 to vector<8x128xf32>
    %165 = arith.addf %164, %163 : vector<8x128xf32>
    %166 = arith.divf %164, %165 : vector<8x128xf32>
    %167 = arith.mulf %158, %136 : vector<8x128xf32>
    %168 = arith.mulf %152, %160 : vector<8x128xf32>
    %169 = arith.addf %167, %168 : vector<8x128xf32>
    %170 = math.tanh %169 : vector<8x128xf32>
    %171 = arith.mulf %166, %170 : vector<8x128xf32>
    %172 = arith.index_cast %142 : i32 to index
    %c0_43 = arith.constant 0 : index
    %173 = vector.load %arg12[%172, %c0_43] : memref<64x128xf32, #tpu.memory_space<vmem>>, vector<8x128xf32>
    tpu.vector_store %arg12[%172, %c0_43], %171 {strides = array<i32>} : memref<64x128xf32, #tpu.memory_space<vmem>>, vector<8x128xf32>,
    %c5_i32 = arith.constant 5 : i32
    %c8_i32_44 = arith.constant 8 : i32
    %174 = arith.muli %c5_i32, %c8_i32_44 : i32
    %175 = tpu.assume_multiple %174, 8 : i32
    %176 = arith.index_cast %175 : i32 to index
    %c0_45 = arith.constant 0 : index
    %177 = vector.load %arg11[%176, %c0_45] : memref<64x512xf32, #tpu.memory_space<vmem>>, vector<8x512xf32>
    %cst_46 = arith.constant dense<0.000000e+00> : vector<8x512xf32>
    %178 = tpu.matmul %171, %7, %cst_46 {dimension_numbers = #tpu.dot_dimension_numbers<[1], [0], [0], [1], [0, 0, 1, 1], [], []>} : vector<8x128xf32>, vector<128x512xf32>, vector<8x512xf32> -> vector<8x512xf32>
    %179 = arith.addf %177, %178 : vector<8x512xf32>
    %180 = vector.extract_strided_slice %179 {offsets = [0, 0], sizes = [8, 128], strides = [1, 1]} : vector<8x512xf32> to vector<8x128xf32>
    %181 = arith.negf %180 : vector<8x128xf32>
    %182 = math.exp %181 : vector<8x128xf32>
    %cst_47 = arith.constant 1.000000e+00 : f32
    %183 = vector.broadcast %cst_47 : f32 to vector<8x128xf32>
    %184 = arith.addf %183, %182 : vector<8x128xf32>
    %185 = arith.divf %183, %184 : vector<8x128xf32>
    %186 = vector.extract_strided_slice %179 {offsets = [0, 128], sizes = [8, 128], strides = [1, 1]} : vector<8x512xf32> to vector<8x128xf32>
    %187 = arith.negf %186 : vector<8x128xf32>
    %188 = math.exp %187 : vector<8x128xf32>
    %cst_48 = arith.constant 1.000000e+00 : f32
    %189 = vector.broadcast %cst_48 : f32 to vector<8x128xf32>
    %190 = arith.addf %189, %188 : vector<8x128xf32>
    %191 = arith.divf %189, %190 : vector<8x128xf32>
    %192 = vector.extract_strided_slice %179 {offsets = [0, 256], sizes = [8, 128], strides = [1, 1]} : vector<8x512xf32> to vector<8x128xf32>
    %193 = math.tanh %192 : vector<8x128xf32>
    %194 = vector.extract_strided_slice %179 {offsets = [0, 384], sizes = [8, 128], strides = [1, 1]} : vector<8x512xf32> to vector<8x128xf32>
    %195 = arith.negf %194 : vector<8x128xf32>
    %196 = math.exp %195 : vector<8x128xf32>
    %cst_49 = arith.constant 1.000000e+00 : f32
    %197 = vector.broadcast %cst_49 : f32 to vector<8x128xf32>
    %198 = arith.addf %197, %196 : vector<8x128xf32>
    %199 = arith.divf %197, %198 : vector<8x128xf32>
    %200 = arith.mulf %191, %169 : vector<8x128xf32>
    %201 = arith.mulf %185, %193 : vector<8x128xf32>
    %202 = arith.addf %200, %201 : vector<8x128xf32>
    %203 = math.tanh %202 : vector<8x128xf32>
    %204 = arith.mulf %199, %203 : vector<8x128xf32>
    %205 = arith.index_cast %175 : i32 to index
    %c0_50 = arith.constant 0 : index
    %206 = vector.load %arg12[%205, %c0_50] : memref<64x128xf32, #tpu.memory_space<vmem>>, vector<8x128xf32>
    tpu.vector_store %arg12[%205, %c0_50], %204 {strides = array<i32>} : memref<64x128xf32, #tpu.memory_space<vmem>>, vector<8x128xf32>,
    %c6_i32 = arith.constant 6 : i32
    %c8_i32_51 = arith.constant 8 : i32
    %207 = arith.muli %c6_i32, %c8_i32_51 : i32
    %208 = tpu.assume_multiple %207, 8 : i32
    %209 = arith.index_cast %208 : i32 to index
    %c0_52 = arith.constant 0 : index
    %210 = vector.load %arg11[%209, %c0_52] : memref<64x512xf32, #tpu.memory_space<vmem>>, vector<8x512xf32>
    %cst_53 = arith.constant dense<0.000000e+00> : vector<8x512xf32>
    %211 = tpu.matmul %204, %7, %cst_53 {dimension_numbers = #tpu.dot_dimension_numbers<[1], [0], [0], [1], [0, 0, 1, 1], [], []>} : vector<8x128xf32>, vector<128x512xf32>, vector<8x512xf32> -> vector<8x512xf32>
    %212 = arith.addf %210, %211 : vector<8x512xf32>
    %213 = vector.extract_strided_slice %212 {offsets = [0, 0], sizes = [8, 128], strides = [1, 1]} : vector<8x512xf32> to vector<8x128xf32>
    %214 = arith.negf %213 : vector<8x128xf32>
    %215 = math.exp %214 : vector<8x128xf32>
    %cst_54 = arith.constant 1.000000e+00 : f32
    %216 = vector.broadcast %cst_54 : f32 to vector<8x128xf32>
    %217 = arith.addf %216, %215 : vector<8x128xf32>
    %218 = arith.divf %216, %217 : vector<8x128xf32>
    %219 = vector.extract_strided_slice %212 {offsets = [0, 128], sizes = [8, 128], strides = [1, 1]} : vector<8x512xf32> to vector<8x128xf32>
    %220 = arith.negf %219 : vector<8x128xf32>
    %221 = math.exp %220 : vector<8x128xf32>
    %cst_55 = arith.constant 1.000000e+00 : f32
    %222 = vector.broadcast %cst_55 : f32 to vector<8x128xf32>
    %223 = arith.addf %222, %221 : vector<8x128xf32>
    %224 = arith.divf %222, %223 : vector<8x128xf32>
    %225 = vector.extract_strided_slice %212 {offsets = [0, 256], sizes = [8, 128], strides = [1, 1]} : vector<8x512xf32> to vector<8x128xf32>
    %226 = math.tanh %225 : vector<8x128xf32>
    %227 = vector.extract_strided_slice %212 {offsets = [0, 384], sizes = [8, 128], strides = [1, 1]} : vector<8x512xf32> to vector<8x128xf32>
    %228 = arith.negf %227 : vector<8x128xf32>
    %229 = math.exp %228 : vector<8x128xf32>
    %cst_56 = arith.constant 1.000000e+00 : f32
    %230 = vector.broadcast %cst_56 : f32 to vector<8x128xf32>
    %231 = arith.addf %230, %229 : vector<8x128xf32>
    %232 = arith.divf %230, %231 : vector<8x128xf32>
    %233 = arith.mulf %224, %202 : vector<8x128xf32>
    %234 = arith.mulf %218, %226 : vector<8x128xf32>
    %235 = arith.addf %233, %234 : vector<8x128xf32>
    %236 = math.tanh %235 : vector<8x128xf32>
    %237 = arith.mulf %232, %236 : vector<8x128xf32>
    %238 = arith.index_cast %208 : i32 to index
    %c0_57 = arith.constant 0 : index
    %239 = vector.load %arg12[%238, %c0_57] : memref<64x128xf32, #tpu.memory_space<vmem>>, vector<8x128xf32>
    tpu.vector_store %arg12[%238, %c0_57], %237 {strides = array<i32>} : memref<64x128xf32, #tpu.memory_space<vmem>>, vector<8x128xf32>,
    %c7_i32 = arith.constant 7 : i32
    %c8_i32_58 = arith.constant 8 : i32
    %240 = arith.muli %c7_i32, %c8_i32_58 : i32
    %241 = tpu.assume_multiple %240, 8 : i32
    %242 = arith.index_cast %241 : i32 to index
    %c0_59 = arith.constant 0 : index
    %243 = vector.load %arg11[%242, %c0_59] : memref<64x512xf32, #tpu.memory_space<vmem>>, vector<8x512xf32>
    %cst_60 = arith.constant dense<0.000000e+00> : vector<8x512xf32>
    %244 = tpu.matmul %237, %7, %cst_60 {dimension_numbers = #tpu.dot_dimension_numbers<[1], [0], [0], [1], [0, 0, 1, 1], [], []>} : vector<8x128xf32>, vector<128x512xf32>, vector<8x512xf32> -> vector<8x512xf32>
    %245 = arith.addf %243, %244 : vector<8x512xf32>
    %246 = vector.extract_strided_slice %245 {offsets = [0, 0], sizes = [8, 128], strides = [1, 1]} : vector<8x512xf32> to vector<8x128xf32>
    %247 = arith.negf %246 : vector<8x128xf32>
    %248 = math.exp %247 : vector<8x128xf32>
    %cst_61 = arith.constant 1.000000e+00 : f32
    %249 = vector.broadcast %cst_61 : f32 to vector<8x128xf32>
    %250 = arith.addf %249, %248 : vector<8x128xf32>
    %251 = arith.divf %249, %250 : vector<8x128xf32>
    %252 = vector.extract_strided_slice %245 {offsets = [0, 128], sizes = [8, 128], strides = [1, 1]} : vector<8x512xf32> to vector<8x128xf32>
    %253 = arith.negf %252 : vector<8x128xf32>
    %254 = math.exp %253 : vector<8x128xf32>
    %cst_62 = arith.constant 1.000000e+00 : f32
    %255 = vector.broadcast %cst_62 : f32 to vector<8x128xf32>
    %256 = arith.addf %255, %254 : vector<8x128xf32>
    %257 = arith.divf %255, %256 : vector<8x128xf32>
    %258 = vector.extract_strided_slice %245 {offsets = [0, 256], sizes = [8, 128], strides = [1, 1]} : vector<8x512xf32> to vector<8x128xf32>
    %259 = math.tanh %258 : vector<8x128xf32>
    %260 = vector.extract_strided_slice %245 {offsets = [0, 384], sizes = [8, 128], strides = [1, 1]} : vector<8x512xf32> to vector<8x128xf32>
    %261 = arith.negf %260 : vector<8x128xf32>
    %262 = math.exp %261 : vector<8x128xf32>
    %cst_63 = arith.constant 1.000000e+00 : f32
    %263 = vector.broadcast %cst_63 : f32 to vector<8x128xf32>
    %264 = arith.addf %263, %262 : vector<8x128xf32>
    %265 = arith.divf %263, %264 : vector<8x128xf32>
    %266 = arith.mulf %257, %235 : vector<8x128xf32>
    %267 = arith.mulf %251, %259 : vector<8x128xf32>
    %268 = arith.addf %266, %267 : vector<8x128xf32>
    %269 = math.tanh %268 : vector<8x128xf32>
    %270 = arith.mulf %265, %269 : vector<8x128xf32>
    %271 = arith.index_cast %241 : i32 to index
    %c0_64 = arith.constant 0 : index
    %272 = vector.load %arg12[%271, %c0_64] : memref<64x128xf32, #tpu.memory_space<vmem>>, vector<8x128xf32>
    tpu.vector_store %arg12[%271, %c0_64], %270 {strides = array<i32>} : memref<64x128xf32, #tpu.memory_space<vmem>>, vector<8x128xf32>,
    %c8_i32_65 = arith.constant 8 : i32
    %c0_66 = arith.constant 0 : index
    %c0_67 = arith.constant 0 : index
    %273 = vector.load %arg12[%c0_66, %c0_67] : memref<64x128xf32, #tpu.memory_space<vmem>>, vector<64x128xf32>
    %c0_68 = arith.constant 0 : index
    %c0_69 = arith.constant 0 : index
    %274 = vector.load %arg5[%c0_68, %c0_69] : memref<128x512xf32, #tpu.memory_space<vmem>>, vector<128x512xf32>
    %cst_70 = arith.constant dense<0.000000e+00> : vector<64x512xf32>
    %275 = tpu.matmul %273, %274, %cst_70 {dimension_numbers = #tpu.dot_dimension_numbers<[1], [0], [0], [1], [0, 0, 1, 1], [], []>} : vector<64x128xf32>, vector<128x512xf32>, vector<64x512xf32> -> vector<64x512xf32>
    %c0_71 = arith.constant 0 : index
    %c0_72 = arith.constant 0 : index
    %276 = vector.load %arg7[%c0_71, %c0_72] : memref<1x512xf32, #tpu.memory_space<vmem>>, vector<1x512xf32>
    %277 = vector.broadcast %276 : vector<1x512xf32> to vector<64x512xf32>
    %278 = arith.addf %275, %277 : vector<64x512xf32>
    %c0_73 = arith.constant 0 : index
    %c0_74 = arith.constant 0 : index
    %279 = vector.load %arg11[%c0_73, %c0_74] : memref<64x512xf32, #tpu.memory_space<vmem>>, vector<64x512xf32>
    tpu.vector_store %arg11[%c0_73, %c0_74], %278 {strides = array<i32>} : memref<64x512xf32, #tpu.memory_space<vmem>>, vector<64x512xf32>,
    %c0_75 = arith.constant 0 : index
    %c0_76 = arith.constant 0 : index
    %280 = vector.load %arg6[%c0_75, %c0_76] : memref<128x512xf32, #tpu.memory_space<vmem>>, vector<128x512xf32>
    %cst_77 = arith.constant 0.000000e+00 : f32
    %281 = vector.broadcast %cst_77 : f32 to vector<8x128xf32>
    %c0_i32_78 = arith.constant 0 : i32
    %c8_i32_79 = arith.constant 8 : i32
    %282 = arith.muli %c0_i32_78, %c8_i32_79 : i32
    %283 = tpu.assume_multiple %282, 8 : i32
    %284 = arith.index_cast %283 : i32 to index
    %c0_80 = arith.constant 0 : index
    %285 = vector.load %arg11[%284, %c0_80] : memref<64x512xf32, #tpu.memory_space<vmem>>, vector<8x512xf32>
    %cst_81 = arith.constant dense<0.000000e+00> : vector<8x512xf32>
    %286 = tpu.matmul %281, %280, %cst_81 {dimension_numbers = #tpu.dot_dimension_numbers<[1], [0], [0], [1], [0, 0, 1, 1], [], []>} : vector<8x128xf32>, vector<128x512xf32>, vector<8x512xf32> -> vector<8x512xf32>
    %287 = arith.addf %285, %286 : vector<8x512xf32>
    %288 = vector.extract_strided_slice %287 {offsets = [0, 0], sizes = [8, 128], strides = [1, 1]} : vector<8x512xf32> to vector<8x128xf32>
    %289 = arith.negf %288 : vector<8x128xf32>
    %290 = math.exp %289 : vector<8x128xf32>
    %cst_82 = arith.constant 1.000000e+00 : f32
    %291 = vector.broadcast %cst_82 : f32 to vector<8x128xf32>
    %292 = arith.addf %291, %290 : vector<8x128xf32>
    %293 = arith.divf %291, %292 : vector<8x128xf32>
    %294 = vector.extract_strided_slice %287 {offsets = [0, 128], sizes = [8, 128], strides = [1, 1]} : vector<8x512xf32> to vector<8x128xf32>
    %295 = arith.negf %294 : vector<8x128xf32>
    %296 = math.exp %295 : vector<8x128xf32>
    %cst_83 = arith.constant 1.000000e+00 : f32
    %297 = vector.broadcast %cst_83 : f32 to vector<8x128xf32>
    %298 = arith.addf %297, %296 : vector<8x128xf32>
    %299 = arith.divf %297, %298 : vector<8x128xf32>
    %300 = vector.extract_strided_slice %287 {offsets = [0, 256], sizes = [8, 128], strides = [1, 1]} : vector<8x512xf32> to vector<8x128xf32>
    %301 = math.tanh %300 : vector<8x128xf32>
    %302 = vector.extract_strided_slice %287 {offsets = [0, 384], sizes = [8, 128], strides = [1, 1]} : vector<8x512xf32> to vector<8x128xf32>
    %303 = arith.negf %302 : vector<8x128xf32>
    %304 = math.exp %303 : vector<8x128xf32>
    %cst_84 = arith.constant 1.000000e+00 : f32
    %305 = vector.broadcast %cst_84 : f32 to vector<8x128xf32>
    %306 = arith.addf %305, %304 : vector<8x128xf32>
    %307 = arith.divf %305, %306 : vector<8x128xf32>
    %308 = arith.mulf %299, %281 : vector<8x128xf32>
    %309 = arith.mulf %293, %301 : vector<8x128xf32>
    %310 = arith.addf %308, %309 : vector<8x128xf32>
    %311 = math.tanh %310 : vector<8x128xf32>
    %312 = arith.mulf %307, %311 : vector<8x128xf32>
    %c1_i32_85 = arith.constant 1 : i32
    %c8_i32_86 = arith.constant 8 : i32
    %313 = arith.muli %c1_i32_85, %c8_i32_86 : i32
    %314 = tpu.assume_multiple %313, 8 : i32
    %315 = arith.index_cast %314 : i32 to index
    %c0_87 = arith.constant 0 : index
    %316 = vector.load %arg11[%315, %c0_87] : memref<64x512xf32, #tpu.memory_space<vmem>>, vector<8x512xf32>
    %cst_88 = arith.constant dense<0.000000e+00> : vector<8x512xf32>
    %317 = tpu.matmul %312, %280, %cst_88 {dimension_numbers = #tpu.dot_dimension_numbers<[1], [0], [0], [1], [0, 0, 1, 1], [], []>} : vector<8x128xf32>, vector<128x512xf32>, vector<8x512xf32> -> vector<8x512xf32>
    %318 = arith.addf %316, %317 : vector<8x512xf32>
    %319 = vector.extract_strided_slice %318 {offsets = [0, 0], sizes = [8, 128], strides = [1, 1]} : vector<8x512xf32> to vector<8x128xf32>
    %320 = arith.negf %319 : vector<8x128xf32>
    %321 = math.exp %320 : vector<8x128xf32>
    %cst_89 = arith.constant 1.000000e+00 : f32
    %322 = vector.broadcast %cst_89 : f32 to vector<8x128xf32>
    %323 = arith.addf %322, %321 : vector<8x128xf32>
    %324 = arith.divf %322, %323 : vector<8x128xf32>
    %325 = vector.extract_strided_slice %318 {offsets = [0, 128], sizes = [8, 128], strides = [1, 1]} : vector<8x512xf32> to vector<8x128xf32>
    %326 = arith.negf %325 : vector<8x128xf32>
    %327 = math.exp %326 : vector<8x128xf32>
    %cst_90 = arith.constant 1.000000e+00 : f32
    %328 = vector.broadcast %cst_90 : f32 to vector<8x128xf32>
    %329 = arith.addf %328, %327 : vector<8x128xf32>
    %330 = arith.divf %328, %329 : vector<8x128xf32>
    %331 = vector.extract_strided_slice %318 {offsets = [0, 256], sizes = [8, 128], strides = [1, 1]} : vector<8x512xf32> to vector<8x128xf32>
    %332 = math.tanh %331 : vector<8x128xf32>
    %333 = vector.extract_strided_slice %318 {offsets = [0, 384], sizes = [8, 128], strides = [1, 1]} : vector<8x512xf32> to vector<8x128xf32>
    %334 = arith.negf %333 : vector<8x128xf32>
    %335 = math.exp %334 : vector<8x128xf32>
    %cst_91 = arith.constant 1.000000e+00 : f32
    %336 = vector.broadcast %cst_91 : f32 to vector<8x128xf32>
    %337 = arith.addf %336, %335 : vector<8x128xf32>
    %338 = arith.divf %336, %337 : vector<8x128xf32>
    %339 = arith.mulf %330, %310 : vector<8x128xf32>
    %340 = arith.mulf %324, %332 : vector<8x128xf32>
    %341 = arith.addf %339, %340 : vector<8x128xf32>
    %342 = math.tanh %341 : vector<8x128xf32>
    %343 = arith.mulf %338, %342 : vector<8x128xf32>
    %c2_i32_92 = arith.constant 2 : i32
    %c8_i32_93 = arith.constant 8 : i32
    %344 = arith.muli %c2_i32_92, %c8_i32_93 : i32
    %345 = tpu.assume_multiple %344, 8 : i32
    %346 = arith.index_cast %345 : i32 to index
    %c0_94 = arith.constant 0 : index
    %347 = vector.load %arg11[%346, %c0_94] : memref<64x512xf32, #tpu.memory_space<vmem>>, vector<8x512xf32>
    %cst_95 = arith.constant dense<0.000000e+00> : vector<8x512xf32>
    %348 = tpu.matmul %343, %280, %cst_95 {dimension_numbers = #tpu.dot_dimension_numbers<[1], [0], [0], [1], [0, 0, 1, 1], [], []>} : vector<8x128xf32>, vector<128x512xf32>, vector<8x512xf32> -> vector<8x512xf32>
    %349 = arith.addf %347, %348 : vector<8x512xf32>
    %350 = vector.extract_strided_slice %349 {offsets = [0, 0], sizes = [8, 128], strides = [1, 1]} : vector<8x512xf32> to vector<8x128xf32>
    %351 = arith.negf %350 : vector<8x128xf32>
    %352 = math.exp %351 : vector<8x128xf32>
    %cst_96 = arith.constant 1.000000e+00 : f32
    %353 = vector.broadcast %cst_96 : f32 to vector<8x128xf32>
    %354 = arith.addf %353, %352 : vector<8x128xf32>
    %355 = arith.divf %353, %354 : vector<8x128xf32>
    %356 = vector.extract_strided_slice %349 {offsets = [0, 128], sizes = [8, 128], strides = [1, 1]} : vector<8x512xf32> to vector<8x128xf32>
    %357 = arith.negf %356 : vector<8x128xf32>
    %358 = math.exp %357 : vector<8x128xf32>
    %cst_97 = arith.constant 1.000000e+00 : f32
    %359 = vector.broadcast %cst_97 : f32 to vector<8x128xf32>
    %360 = arith.addf %359, %358 : vector<8x128xf32>
    %361 = arith.divf %359, %360 : vector<8x128xf32>
    %362 = vector.extract_strided_slice %349 {offsets = [0, 256], sizes = [8, 128], strides = [1, 1]} : vector<8x512xf32> to vector<8x128xf32>
    %363 = math.tanh %362 : vector<8x128xf32>
    %364 = vector.extract_strided_slice %349 {offsets = [0, 384], sizes = [8, 128], strides = [1, 1]} : vector<8x512xf32> to vector<8x128xf32>
    %365 = arith.negf %364 : vector<8x128xf32>
    %366 = math.exp %365 : vector<8x128xf32>
    %cst_98 = arith.constant 1.000000e+00 : f32
    %367 = vector.broadcast %cst_98 : f32 to vector<8x128xf32>
    %368 = arith.addf %367, %366 : vector<8x128xf32>
    %369 = arith.divf %367, %368 : vector<8x128xf32>
    %370 = arith.mulf %361, %341 : vector<8x128xf32>
    %371 = arith.mulf %355, %363 : vector<8x128xf32>
    %372 = arith.addf %370, %371 : vector<8x128xf32>
    %373 = math.tanh %372 : vector<8x128xf32>
    %374 = arith.mulf %369, %373 : vector<8x128xf32>
    %c3_i32_99 = arith.constant 3 : i32
    %c8_i32_100 = arith.constant 8 : i32
    %375 = arith.muli %c3_i32_99, %c8_i32_100 : i32
    %376 = tpu.assume_multiple %375, 8 : i32
    %377 = arith.index_cast %376 : i32 to index
    %c0_101 = arith.constant 0 : index
    %378 = vector.load %arg11[%377, %c0_101] : memref<64x512xf32, #tpu.memory_space<vmem>>, vector<8x512xf32>
    %cst_102 = arith.constant dense<0.000000e+00> : vector<8x512xf32>
    %379 = tpu.matmul %374, %280, %cst_102 {dimension_numbers = #tpu.dot_dimension_numbers<[1], [0], [0], [1], [0, 0, 1, 1], [], []>} : vector<8x128xf32>, vector<128x512xf32>, vector<8x512xf32> -> vector<8x512xf32>
    %380 = arith.addf %378, %379 : vector<8x512xf32>
    %381 = vector.extract_strided_slice %380 {offsets = [0, 0], sizes = [8, 128], strides = [1, 1]} : vector<8x512xf32> to vector<8x128xf32>
    %382 = arith.negf %381 : vector<8x128xf32>
    %383 = math.exp %382 : vector<8x128xf32>
    %cst_103 = arith.constant 1.000000e+00 : f32
    %384 = vector.broadcast %cst_103 : f32 to vector<8x128xf32>
    %385 = arith.addf %384, %383 : vector<8x128xf32>
    %386 = arith.divf %384, %385 : vector<8x128xf32>
    %387 = vector.extract_strided_slice %380 {offsets = [0, 128], sizes = [8, 128], strides = [1, 1]} : vector<8x512xf32> to vector<8x128xf32>
    %388 = arith.negf %387 : vector<8x128xf32>
    %389 = math.exp %388 : vector<8x128xf32>
    %cst_104 = arith.constant 1.000000e+00 : f32
    %390 = vector.broadcast %cst_104 : f32 to vector<8x128xf32>
    %391 = arith.addf %390, %389 : vector<8x128xf32>
    %392 = arith.divf %390, %391 : vector<8x128xf32>
    %393 = vector.extract_strided_slice %380 {offsets = [0, 256], sizes = [8, 128], strides = [1, 1]} : vector<8x512xf32> to vector<8x128xf32>
    %394 = math.tanh %393 : vector<8x128xf32>
    %395 = vector.extract_strided_slice %380 {offsets = [0, 384], sizes = [8, 128], strides = [1, 1]} : vector<8x512xf32> to vector<8x128xf32>
    %396 = arith.negf %395 : vector<8x128xf32>
    %397 = math.exp %396 : vector<8x128xf32>
    %cst_105 = arith.constant 1.000000e+00 : f32
    %398 = vector.broadcast %cst_105 : f32 to vector<8x128xf32>
    %399 = arith.addf %398, %397 : vector<8x128xf32>
    %400 = arith.divf %398, %399 : vector<8x128xf32>
    %401 = arith.mulf %392, %372 : vector<8x128xf32>
    %402 = arith.mulf %386, %394 : vector<8x128xf32>
    %403 = arith.addf %401, %402 : vector<8x128xf32>
    %404 = math.tanh %403 : vector<8x128xf32>
    %405 = arith.mulf %400, %404 : vector<8x128xf32>
    %c4_i32_106 = arith.constant 4 : i32
    %c8_i32_107 = arith.constant 8 : i32
    %406 = arith.muli %c4_i32_106, %c8_i32_107 : i32
    %407 = tpu.assume_multiple %406, 8 : i32
    %408 = arith.index_cast %407 : i32 to index
    %c0_108 = arith.constant 0 : index
    %409 = vector.load %arg11[%408, %c0_108] : memref<64x512xf32, #tpu.memory_space<vmem>>, vector<8x512xf32>
    %cst_109 = arith.constant dense<0.000000e+00> : vector<8x512xf32>
    %410 = tpu.matmul %405, %280, %cst_109 {dimension_numbers = #tpu.dot_dimension_numbers<[1], [0], [0], [1], [0, 0, 1, 1], [], []>} : vector<8x128xf32>, vector<128x512xf32>, vector<8x512xf32> -> vector<8x512xf32>
    %411 = arith.addf %409, %410 : vector<8x512xf32>
    %412 = vector.extract_strided_slice %411 {offsets = [0, 0], sizes = [8, 128], strides = [1, 1]} : vector<8x512xf32> to vector<8x128xf32>
    %413 = arith.negf %412 : vector<8x128xf32>
    %414 = math.exp %413 : vector<8x128xf32>
    %cst_110 = arith.constant 1.000000e+00 : f32
    %415 = vector.broadcast %cst_110 : f32 to vector<8x128xf32>
    %416 = arith.addf %415, %414 : vector<8x128xf32>
    %417 = arith.divf %415, %416 : vector<8x128xf32>
    %418 = vector.extract_strided_slice %411 {offsets = [0, 128], sizes = [8, 128], strides = [1, 1]} : vector<8x512xf32> to vector<8x128xf32>
    %419 = arith.negf %418 : vector<8x128xf32>
    %420 = math.exp %419 : vector<8x128xf32>
    %cst_111 = arith.constant 1.000000e+00 : f32
    %421 = vector.broadcast %cst_111 : f32 to vector<8x128xf32>
    %422 = arith.addf %421, %420 : vector<8x128xf32>
    %423 = arith.divf %421, %422 : vector<8x128xf32>
    %424 = vector.extract_strided_slice %411 {offsets = [0, 256], sizes = [8, 128], strides = [1, 1]} : vector<8x512xf32> to vector<8x128xf32>
    %425 = math.tanh %424 : vector<8x128xf32>
    %426 = vector.extract_strided_slice %411 {offsets = [0, 384], sizes = [8, 128], strides = [1, 1]} : vector<8x512xf32> to vector<8x128xf32>
    %427 = arith.negf %426 : vector<8x128xf32>
    %428 = math.exp %427 : vector<8x128xf32>
    %cst_112 = arith.constant 1.000000e+00 : f32
    %429 = vector.broadcast %cst_112 : f32 to vector<8x128xf32>
    %430 = arith.addf %429, %428 : vector<8x128xf32>
    %431 = arith.divf %429, %430 : vector<8x128xf32>
    %432 = arith.mulf %423, %403 : vector<8x128xf32>
    %433 = arith.mulf %417, %425 : vector<8x128xf32>
    %434 = arith.addf %432, %433 : vector<8x128xf32>
    %435 = math.tanh %434 : vector<8x128xf32>
    %436 = arith.mulf %431, %435 : vector<8x128xf32>
    %c5_i32_113 = arith.constant 5 : i32
    %c8_i32_114 = arith.constant 8 : i32
    %437 = arith.muli %c5_i32_113, %c8_i32_114 : i32
    %438 = tpu.assume_multiple %437, 8 : i32
    %439 = arith.index_cast %438 : i32 to index
    %c0_115 = arith.constant 0 : index
    %440 = vector.load %arg11[%439, %c0_115] : memref<64x512xf32, #tpu.memory_space<vmem>>, vector<8x512xf32>
    %cst_116 = arith.constant dense<0.000000e+00> : vector<8x512xf32>
    %441 = tpu.matmul %436, %280, %cst_116 {dimension_numbers = #tpu.dot_dimension_numbers<[1], [0], [0], [1], [0, 0, 1, 1], [], []>} : vector<8x128xf32>, vector<128x512xf32>, vector<8x512xf32> -> vector<8x512xf32>
    %442 = arith.addf %440, %441 : vector<8x512xf32>
    %443 = vector.extract_strided_slice %442 {offsets = [0, 0], sizes = [8, 128], strides = [1, 1]} : vector<8x512xf32> to vector<8x128xf32>
    %444 = arith.negf %443 : vector<8x128xf32>
    %445 = math.exp %444 : vector<8x128xf32>
    %cst_117 = arith.constant 1.000000e+00 : f32
    %446 = vector.broadcast %cst_117 : f32 to vector<8x128xf32>
    %447 = arith.addf %446, %445 : vector<8x128xf32>
    %448 = arith.divf %446, %447 : vector<8x128xf32>
    %449 = vector.extract_strided_slice %442 {offsets = [0, 128], sizes = [8, 128], strides = [1, 1]} : vector<8x512xf32> to vector<8x128xf32>
    %450 = arith.negf %449 : vector<8x128xf32>
    %451 = math.exp %450 : vector<8x128xf32>
    %cst_118 = arith.constant 1.000000e+00 : f32
    %452 = vector.broadcast %cst_118 : f32 to vector<8x128xf32>
    %453 = arith.addf %452, %451 : vector<8x128xf32>
    %454 = arith.divf %452, %453 : vector<8x128xf32>
    %455 = vector.extract_strided_slice %442 {offsets = [0, 256], sizes = [8, 128], strides = [1, 1]} : vector<8x512xf32> to vector<8x128xf32>
    %456 = math.tanh %455 : vector<8x128xf32>
    %457 = vector.extract_strided_slice %442 {offsets = [0, 384], sizes = [8, 128], strides = [1, 1]} : vector<8x512xf32> to vector<8x128xf32>
    %458 = arith.negf %457 : vector<8x128xf32>
    %459 = math.exp %458 : vector<8x128xf32>
    %cst_119 = arith.constant 1.000000e+00 : f32
    %460 = vector.broadcast %cst_119 : f32 to vector<8x128xf32>
    %461 = arith.addf %460, %459 : vector<8x128xf32>
    %462 = arith.divf %460, %461 : vector<8x128xf32>
    %463 = arith.mulf %454, %434 : vector<8x128xf32>
    %464 = arith.mulf %448, %456 : vector<8x128xf32>
    %465 = arith.addf %463, %464 : vector<8x128xf32>
    %466 = math.tanh %465 : vector<8x128xf32>
    %467 = arith.mulf %462, %466 : vector<8x128xf32>
    %c6_i32_120 = arith.constant 6 : i32
    %c8_i32_121 = arith.constant 8 : i32
    %468 = arith.muli %c6_i32_120, %c8_i32_121 : i32
    %469 = tpu.assume_multiple %468, 8 : i32
    %470 = arith.index_cast %469 : i32 to index
    %c0_122 = arith.constant 0 : index
    %471 = vector.load %arg11[%470, %c0_122] : memref<64x512xf32, #tpu.memory_space<vmem>>, vector<8x512xf32>
    %cst_123 = arith.constant dense<0.000000e+00> : vector<8x512xf32>
    %472 = tpu.matmul %467, %280, %cst_123 {dimension_numbers = #tpu.dot_dimension_numbers<[1], [0], [0], [1], [0, 0, 1, 1], [], []>} : vector<8x128xf32>, vector<128x512xf32>, vector<8x512xf32> -> vector<8x512xf32>
    %473 = arith.addf %471, %472 : vector<8x512xf32>
    %474 = vector.extract_strided_slice %473 {offsets = [0, 0], sizes = [8, 128], strides = [1, 1]} : vector<8x512xf32> to vector<8x128xf32>
    %475 = arith.negf %474 : vector<8x128xf32>
    %476 = math.exp %475 : vector<8x128xf32>
    %cst_124 = arith.constant 1.000000e+00 : f32
    %477 = vector.broadcast %cst_124 : f32 to vector<8x128xf32>
    %478 = arith.addf %477, %476 : vector<8x128xf32>
    %479 = arith.divf %477, %478 : vector<8x128xf32>
    %480 = vector.extract_strided_slice %473 {offsets = [0, 128], sizes = [8, 128], strides = [1, 1]} : vector<8x512xf32> to vector<8x128xf32>
    %481 = arith.negf %480 : vector<8x128xf32>
    %482 = math.exp %481 : vector<8x128xf32>
    %cst_125 = arith.constant 1.000000e+00 : f32
    %483 = vector.broadcast %cst_125 : f32 to vector<8x128xf32>
    %484 = arith.addf %483, %482 : vector<8x128xf32>
    %485 = arith.divf %483, %484 : vector<8x128xf32>
    %486 = vector.extract_strided_slice %473 {offsets = [0, 256], sizes = [8, 128], strides = [1, 1]} : vector<8x512xf32> to vector<8x128xf32>
    %487 = math.tanh %486 : vector<8x128xf32>
    %488 = vector.extract_strided_slice %473 {offsets = [0, 384], sizes = [8, 128], strides = [1, 1]} : vector<8x512xf32> to vector<8x128xf32>
    %489 = arith.negf %488 : vector<8x128xf32>
    %490 = math.exp %489 : vector<8x128xf32>
    %cst_126 = arith.constant 1.000000e+00 : f32
    %491 = vector.broadcast %cst_126 : f32 to vector<8x128xf32>
    %492 = arith.addf %491, %490 : vector<8x128xf32>
    %493 = arith.divf %491, %492 : vector<8x128xf32>
    %494 = arith.mulf %485, %465 : vector<8x128xf32>
    %495 = arith.mulf %479, %487 : vector<8x128xf32>
    %496 = arith.addf %494, %495 : vector<8x128xf32>
    %497 = math.tanh %496 : vector<8x128xf32>
    %498 = arith.mulf %493, %497 : vector<8x128xf32>
    %c7_i32_127 = arith.constant 7 : i32
    %c8_i32_128 = arith.constant 8 : i32
    %499 = arith.muli %c7_i32_127, %c8_i32_128 : i32
    %500 = tpu.assume_multiple %499, 8 : i32
    %501 = arith.index_cast %500 : i32 to index
    %c0_129 = arith.constant 0 : index
    %502 = vector.load %arg11[%501, %c0_129] : memref<64x512xf32, #tpu.memory_space<vmem>>, vector<8x512xf32>
    %cst_130 = arith.constant dense<0.000000e+00> : vector<8x512xf32>
    %503 = tpu.matmul %498, %280, %cst_130 {dimension_numbers = #tpu.dot_dimension_numbers<[1], [0], [0], [1], [0, 0, 1, 1], [], []>} : vector<8x128xf32>, vector<128x512xf32>, vector<8x512xf32> -> vector<8x512xf32>
    %504 = arith.addf %502, %503 : vector<8x512xf32>
    %505 = vector.extract_strided_slice %504 {offsets = [0, 0], sizes = [8, 128], strides = [1, 1]} : vector<8x512xf32> to vector<8x128xf32>
    %506 = arith.negf %505 : vector<8x128xf32>
    %507 = math.exp %506 : vector<8x128xf32>
    %cst_131 = arith.constant 1.000000e+00 : f32
    %508 = vector.broadcast %cst_131 : f32 to vector<8x128xf32>
    %509 = arith.addf %508, %507 : vector<8x128xf32>
    %510 = arith.divf %508, %509 : vector<8x128xf32>
    %511 = vector.extract_strided_slice %504 {offsets = [0, 128], sizes = [8, 128], strides = [1, 1]} : vector<8x512xf32> to vector<8x128xf32>
    %512 = arith.negf %511 : vector<8x128xf32>
    %513 = math.exp %512 : vector<8x128xf32>
    %cst_132 = arith.constant 1.000000e+00 : f32
    %514 = vector.broadcast %cst_132 : f32 to vector<8x128xf32>
    %515 = arith.addf %514, %513 : vector<8x128xf32>
    %516 = arith.divf %514, %515 : vector<8x128xf32>
    %517 = vector.extract_strided_slice %504 {offsets = [0, 256], sizes = [8, 128], strides = [1, 1]} : vector<8x512xf32> to vector<8x128xf32>
    %518 = math.tanh %517 : vector<8x128xf32>
    %519 = vector.extract_strided_slice %504 {offsets = [0, 384], sizes = [8, 128], strides = [1, 1]} : vector<8x512xf32> to vector<8x128xf32>
    %520 = arith.negf %519 : vector<8x128xf32>
    %521 = math.exp %520 : vector<8x128xf32>
    %cst_133 = arith.constant 1.000000e+00 : f32
    %522 = vector.broadcast %cst_133 : f32 to vector<8x128xf32>
    %523 = arith.addf %522, %521 : vector<8x128xf32>
    %524 = arith.divf %522, %523 : vector<8x128xf32>
    %525 = arith.mulf %516, %496 : vector<8x128xf32>
    %526 = arith.mulf %510, %518 : vector<8x128xf32>
    %527 = arith.addf %525, %526 : vector<8x128xf32>
    %528 = math.tanh %527 : vector<8x128xf32>
    %529 = arith.mulf %524, %528 : vector<8x128xf32>
    %c8_i32_134 = arith.constant 8 : i32
    %c0_135 = arith.constant 0 : index
    %c0_136 = arith.constant 0 : index
    %530 = vector.load %arg8[%c0_135, %c0_136] : memref<128x128xf32, #tpu.memory_space<vmem>>, vector<128x128xf32>
    %cst_137 = arith.constant dense<0.000000e+00> : vector<8x128xf32>
    %531 = tpu.matmul %529, %530, %cst_137 {dimension_numbers = #tpu.dot_dimension_numbers<[1], [0], [0], [1], [0, 0, 1, 1], [], []>} : vector<8x128xf32>, vector<128x128xf32>, vector<8x128xf32> -> vector<8x128xf32>
    %c0_138 = arith.constant 0 : index
    %c0_139 = arith.constant 0 : index
    %532 = vector.load %arg9[%c0_138, %c0_139] : memref<1x128xf32, #tpu.memory_space<vmem>>, vector<1x128xf32>
    %533 = vector.broadcast %532 : vector<1x128xf32> to vector<8x128xf32>
    %534 = arith.addf %531, %533 : vector<8x128xf32>
    %c0_140 = arith.constant 0 : index
    %c0_141 = arith.constant 0 : index
    %535 = vector.load %arg10[%c0_140, %c0_141] : memref<8x128xf32, #tpu.memory_space<vmem>>, vector<8x128xf32>
    tpu.vector_store %arg10[%c0_140, %c0_141], %534 {strides = array<i32>} : memref<8x128xf32, #tpu.memory_space<vmem>>, vector<8x128xf32>,
    return
  }
  func.func @transform_0(%arg0: i32) -> (i32, i32) {
    %c0_i32 = arith.constant 0 : i32
    %c0_i32_0 = arith.constant 0 : i32
    %c0_i32_1 = arith.constant 0 : i32
    return %c0_i32, %c0_i32_0 : i32, i32
  }
  func.func @transform_1(%arg0: i32) -> (i32, i32) {
    %c0_i32 = arith.constant 0 : i32
    %c0_i32_0 = arith.constant 0 : i32
    %c0_i32_1 = arith.constant 0 : i32
    return %c0_i32, %c0_i32_0 : i32, i32
  }
  func.func @transform_2(%arg0: i32) -> (i32, i32) {
    %c0_i32 = arith.constant 0 : i32
    %c0_i32_0 = arith.constant 0 : i32
    %c0_i32_1 = arith.constant 0 : i32
    return %c0_i32, %c0_i32_0 : i32, i32
  }
  func.func @transform_3(%arg0: i32) -> (i32, i32) {
    %c0_i32 = arith.constant 0 : i32
    %c0_i32_0 = arith.constant 0 : i32
    %c0_i32_1 = arith.constant 0 : i32
    return %c0_i32, %c0_i32_0 : i32, i32
  }
  func.func @transform_4(%arg0: i32) -> (i32, i32) {
    %c0_i32 = arith.constant 0 : i32
    %c0_i32_0 = arith.constant 0 : i32
    %c0_i32_1 = arith.constant 0 : i32
    return %c0_i32, %c0_i32_0 : i32, i32
  }
  func.func @transform_5(%arg0: i32) -> (i32, i32) {
    %c0_i32 = arith.constant 0 : i32
    %c0_i32_0 = arith.constant 0 : i32
    %c0_i32_1 = arith.constant 0 : i32
    return %c0_i32, %c0_i32_0 : i32, i32
  }
  func.func @transform_6(%arg0: i32) -> (i32, i32) {
    %c0_i32 = arith.constant 0 : i32
    %c0_i32_0 = arith.constant 0 : i32
    %c0_i32_1 = arith.constant 0 : i32
    return %c0_i32, %c0_i32_0 : i32, i32
  }
  func.func @transform_7(%arg0: i32) -> (i32, i32) {
    %c0_i32 = arith.constant 0 : i32
    %c0_i32_0 = arith.constant 0 : i32
    %c0_i32_1 = arith.constant 0 : i32
    return %c0_i32, %c0_i32_0 : i32, i32
  }
  func.func @transform_8(%arg0: i32) -> (i32, i32) {
    %c0_i32 = arith.constant 0 : i32
    %c0_i32_0 = arith.constant 0 : i32
    %c0_i32_1 = arith.constant 0 : i32
    return %c0_i32, %c0_i32_0 : i32, i32
  }
  func.func @transform_9(%arg0: i32) -> (i32, i32) {
    %c0_i32 = arith.constant 0 : i32
    %c0_i32_0 = arith.constant 0 : i32
    %c0_i32_1 = arith.constant 0 : i32
    return %c0_i32, %c0_i32_0 : i32, i32
  }
}

</mosaic_0001>

<llo_original>
// kernel: lstm_model_forward.1
$region0: #{lstm_model_forward.1}
  #allocation0 [shape = 'u32[]', space=smem, size = 0x4, offset = 0x4, fixed_abs, tag = 'smem constant byte address 0x4 - core index']
  #allocation1 [shape = 'u32[72,128]{1,0:T(1,128)}', space=vmem, size = 0x9000, scoped, tag = 'internal scratch']
  #allocation2 [shape = 'f32[64,512]{1,0:T(8,128)}', space=vmem, size = 0x20000, scoped, tag = 'scratch operand']
  #allocation3 [shape = 'f32[64,128]{1,0:T(8,128)}', space=vmem, size = 0x8000, scoped, tag = 'scratch operand']
  %s0 = inlined_call_operand.vmem [shape: f32[64,4], index: 0, kind: input, shape index: {}]
  %s1 = inlined_call_operand.vmem [shape: f32[4,512], index: 1, kind: input, shape index: {}]
  %s2 = inlined_call_operand.hbm [shape: f32[128,512], index: 2, kind: input, shape index: {}]
  %s3 = inlined_call_operand.vmem [shape: f32[1,512], index: 3, kind: input, shape index: {}]
  %s4 = inlined_call_operand.hbm [shape: f32[128,512], index: 4, kind: input, shape index: {}]
  %s5 = inlined_call_operand.hbm [shape: f32[128,512], index: 5, kind: input, shape index: {}]
  %s6 = inlined_call_operand.vmem [shape: f32[1,512], index: 6, kind: input, shape index: {}]
  %s7 = inlined_call_operand.hbm [shape: f32[128,128], index: 7, kind: input, shape index: {}]
  %s8 = inlined_call_operand.vmem [shape: f32[1,128], index: 8, kind: input, shape index: {}]
  %s9 = inlined_call_operand.vmem [shape: f32[8,128], index: 9, kind: output, shape index: {}]
  %s10 = sld [smem:[#allocation0]]
  $region62: #{lstm_model_forward.1} parent=0
    _
  %s12 = ssub.s32 1, %s10
  %s13 = scalar_select 0, %s12, %s10
  $region1: #{lstm_model_forward.1} parent=0
    #allocation4 [shape = 'u8[262144]{0}', space=vmem, size = 0x40000, scoped, tag = 'input window, operand 2, single buffered']
    #allocation5 [shape = 's32[1]{0}', space=sflag, size = 0x4, scoped, tag = 'scoped memory for lstm_model_forward.1']
    #allocation6 [shape = 'u8[262144]{0}', space=vmem, size = 0x40000, scoped, tag = 'input window, operand 4, single buffered']
    #allocation7 [shape = 's32[1]{0}', space=sflag, size = 0x4, scoped, tag = 'scoped memory for lstm_model_forward.1']
    #allocation8 [shape = 'u8[262144]{0}', space=vmem, size = 0x40000, scoped, tag = 'input window, operand 5, single buffered']
    #allocation9 [shape = 'u8[65536]{0}', space=vmem, size = 0x10000, scoped, tag = 'input window, operand 7, single buffered']
    #allocation10 [shape = 's32[1]{0}', space=sflag, size = 0x4, scoped, tag = 'scoped memory for lstm_model_forward.1']
    %14 = vsyncpa [#allocation5], 0
    %15 = vsyncpa [#allocation7], 0
    %16 = vsyncpa [#allocation10], 0
    // Predicated region
    $region2: #{lstm_model_forward.1} parent=1 // pred_check
      _
    $region3: #{lstm_model_forward.1} parent=1 // pred_check_branch
      %18 = sbr.rel (0) target = $region5
    $region4: #{lstm_model_forward.1} parent=1 // pred_region
      _
    $region5: #{lstm_model_forward.1} parent=1 // pred_fallthru
      _
    // Predicated region
    $region6: #{lstm_model_forward.1} parent=1 // pred_check
      _
    $region7: #{lstm_model_forward.1} parent=1 // pred_check_branch
      %20 = sbr.rel (0) target = $region9
    $region8: #{lstm_model_forward.1} parent=1 // pred_region
      _
    $region9: #{lstm_model_forward.1} parent=1 // pred_fallthru
      _
    // Predicated region
    $region10: #{lstm_model_forward.1} parent=1 // pred_check
      _
    $region11: #{lstm_model_forward.1} parent=1 // pred_check_branch
      %22 = sbr.rel (0) target = $region13
    $region12: #{lstm_model_forward.1} parent=1 // pred_region
      %24 = vsyncadd [#allocation5], 0
      %s25 = sshll.u32 %s2, 4
      %s26 = int_to_ptr.hbm [resolvable:$true] %s25
      %s27 = sshll.u32 [#allocation4], 4
      %s28 = int_to_ptr.vmem [resolvable:$true] %s27
      %33 = dma.hbm_to_vmem [thread:$0]  %s26, 8192, %s28, [#allocation5], 512, 512, 32
    $region13: #{lstm_model_forward.1} parent=1 // pred_fallthru
      _
    // Predicated region
    $region14: #{lstm_model_forward.1} parent=1 // pred_check
      _
    $region15: #{lstm_model_forward.1} parent=1 // pred_check_branch
      %35 = sbr.rel (0) target = $region17
    $region16: #{lstm_model_forward.1} parent=1 // pred_region
      _
    $region17: #{lstm_model_forward.1} parent=1 // pred_fallthru
      _
    // Predicated region
    $region18: #{lstm_model_forward.1} parent=1 // pred_check
      _
    $region19: #{lstm_model_forward.1} parent=1 // pred_check_branch
      %37 = sbr.rel (0) target = $region21
    $region20: #{lstm_model_forward.1} parent=1 // pred_region
      %39 = vsyncadd [#allocation7], 0
      %s40 = sshll.u32 %s4, 4
      %s41 = int_to_ptr.hbm [resolvable:$true] %s40
      %s42 = sshll.u32 [#allocation6], 4
      %s43 = int_to_ptr.vmem [resolvable:$true] %s42
      %48 = dma.hbm_to_vmem [thread:$0]  %s41, 8192, %s43, [#allocation7], 512, 512, 32
    $region21: #{lstm_model_forward.1} parent=1 // pred_fallthru
      _
    // Predicated region
    $region22: #{lstm_model_forward.1} parent=1 // pred_check
      _
    $region23: #{lstm_model_forward.1} parent=1 // pred_check_branch
      %50 = sbr.rel (0) target = $region25
    $region24: #{lstm_model_forward.1} parent=1 // pred_region
      %52 = vsyncadd [#allocation7], 0
      %s53 = sshll.u32 %s5, 4
      %s54 = int_to_ptr.hbm [resolvable:$true] %s53
      %s55 = sshll.u32 [#allocation8], 4
      %s56 = int_to_ptr.vmem [resolvable:$true] %s55
      %61 = dma.hbm_to_vmem [thread:$0]  %s54, 8192, %s56, [#allocation7], 512, 512, 32
    $region25: #{lstm_model_forward.1} parent=1 // pred_fallthru
      _
    // Predicated region
    $region26: #{lstm_model_forward.1} parent=1 // pred_check
      _
    $region27: #{lstm_model_forward.1} parent=1 // pred_check_branch
      %63 = sbr.rel (0) target = $region29
    $region28: #{lstm_model_forward.1} parent=1 // pred_region
      _
    $region29: #{lstm_model_forward.1} parent=1 // pred_fallthru
      _
    // Predicated region
    $region30: #{lstm_model_forward.1} parent=1 // pred_check
      _
    $region31: #{lstm_model_forward.1} parent=1 // pred_check_branch
      %65 = sbr.rel (0) target = $region33
    $region32: #{lstm_model_forward.1} parent=1 // pred_region
      %67 = vsyncadd [#allocation10], 0
      %s68 = sshll.u32 %s7, 4
      %s69 = int_to_ptr.hbm [resolvable:$true] %s68
      %s70 = sshll.u32 [#allocation9], 4
      %s71 = int_to_ptr.vmem [resolvable:$true] %s70
      %76 = dma.hbm_to_vmem [thread:$0]  %s69, 2048, %s71, [#allocation10], 128, 128, 8
    $region33: #{lstm_model_forward.1} parent=1 // pred_fallthru
      _
    // Predicated region
    $region34: #{lstm_model_forward.1} parent=1 // pred_check
      _
    $region35: #{lstm_model_forward.1} parent=1 // pred_check_branch
      %78 = sbr.rel (0) target = $region37
    $region36: #{lstm_model_forward.1} parent=1 // pred_region
      _
    $region37: #{lstm_model_forward.1} parent=1 // pred_fallthru
      _
    // Predicated region
    $region38: #{lstm_model_forward.1} parent=1 // pred_check
      _
    $region39: #{lstm_model_forward.1} parent=1 // pred_check_branch
      %80 = sbr.rel (0) target = $region41
    $region40: #{lstm_model_forward.1} parent=1 // pred_region
      %82 = dma.done [#allocation5], 8192
    $region41: #{lstm_model_forward.1} parent=1 // pred_fallthru
      _
    // Predicated region
    $region42: #{lstm_model_forward.1} parent=1 // pred_check
      _
    $region43: #{lstm_model_forward.1} parent=1 // pred_check_branch
      %84 = sbr.rel (0) target = $region45
    $region44: #{lstm_model_forward.1} parent=1 // pred_region
      %86 = dma.done [#allocation7], 8192
    $region45: #{lstm_model_forward.1} parent=1 // pred_fallthru
      _
    // Predicated region
    $region46: #{lstm_model_forward.1} parent=1 // pred_check
      _
    $region47: #{lstm_model_forward.1} parent=1 // pred_check_branch
      %88 = sbr.rel (0) target = $region49
    $region48: #{lstm_model_forward.1} parent=1 // pred_region
      %90 = dma.done [#allocation7], 8192
    $region49: #{lstm_model_forward.1} parent=1 // pred_fallthru
      _
    // Predicated region
    $region50: #{lstm_model_forward.1} parent=1 // pred_check
      _
    $region51: #{lstm_model_forward.1} parent=1 // pred_check_branch
      %92 = sbr.rel (0) target = $region53
    $region52: #{lstm_model_forward.1} parent=1 // pred_region
      %94 = dma.done [#allocation10], 2048
    $region53: #{lstm_model_forward.1} parent=1 // pred_fallthru
      _
    %v95 = vld [vmem:[%s0] sm:$0xff]
    %v96 = vld [vmem:[%s0 + $0x8] sm:$0xff]
    %v97 = vld [vmem:[%s0 + $0x10] sm:$0xff]
    %v98 = vld [vmem:[%s0 + $0x18] sm:$0xff]
    %v99 = vld [vmem:[%s0 + $0x20] sm:$0xff]
    %v100 = vld [vmem:[%s0 + $0x28] sm:$0xff]
    %v101 = vld [vmem:[%s0 + $0x30] sm:$0xff]
    %v102 = vld [vmem:[%s0 + $0x38] sm:$0xff]
    %v103 = vld [vmem:[%s1] sm:$0xff]
    %v104 = vld [vmem:[%s1 + $0x8] sm:$0xff]
    %v105 = vld [vmem:[%s3] sm:$0xf]
    %v107 = vperm.slane %v105, 0
    %v108 = vperm.slane %v105, 1
    %v109 = vperm.slane %v105, 2
    %v110 = vperm.slane %v105, 3
    %117 = vst [vmem:[#allocation1] ss:$2 sm:$0xff] %v103
    %s118 = scalar_lea.vmem [#allocation1], 16
    %119 = vst [vmem:[%s118] ss:$2 sm:$0xff] %v104
    %v120 = vld.sshfl [vmem:[#allocation1] sm:$0xff pattern:$0x75316420]
    %v121 = vld.sshfl [vmem:[#allocation1 + $0x8] sm:$0xff pattern:$0x75316420]
    %v122 = vld.sshfl [vmem:[#allocation1 + $0x10] sm:$0xff pattern:$0x75316420]
    %v123 = vld.sshfl [vmem:[#allocation1 + $0x18] sm:$0xff pattern:$0x75316420]
    %vm124 = vcmask 31744
    %v126 = vsel %vm124, %v95, 0
    %v129 = vsel %vm124, %v96, 0
    %v132 = vsel %vm124, %v97, 0
    %v135 = vsel %vm124, %v98, 0
    %v138 = vsel %vm124, %v99, 0
    %v141 = vsel %vm124, %v100, 0
    %v144 = vsel %vm124, %v101, 0
    %v147 = vsel %vm124, %v102, 0
    %vm149 = vcmask 1043456
    %v150 = vsel %vm149, %v120, 0
    %v152 = vsel %vm149, %v121, 0
    %v154 = vsel %vm149, %v122, 0
    %v156 = vsel %vm149, %v123, 0
    %158 = vmatpush.msra.mxu0 0.0
    %159 = vmatpush.msra.mxu0 0.0
    %160 = vmatpush.msra.mxu0 0.0
    %161 = vmatpush.msra.mxu0 0.0
    %162 = vmatpush.msra.mxu0 0.0
    %163 = vmatpush.msra.mxu0 0.0
    %164 = vmatpush.msra.mxu0 0.0
    %165 = vmatpush.msra.mxu0 0.0
    %166 = vmatpush.msra.mxu0 0.0
    %167 = vmatpush.msra.mxu0 0.0
    %168 = vmatpush.msra.mxu0 0.0
    %169 = vmatpush.msra.mxu0 0.0
    %170 = vmatpush.msra.mxu0 0.0
    %171 = vmatpush.msra.mxu0 0.0
    %172 = vmatpush.msra.mxu0 0.0
    %173 = vmatpush.msra.mxu0 %v150
    %174 = vmatmul.f32.gmra.mxu0 %v126
    %v175 = vpop.f32.mrf.mxu0
    %v176 = vadd.f32 %v107, %v175
    %177 = vmatmul.f32.gmra.mxu0 %v129
    %v178 = vpop.f32.mrf.mxu0
    %v179 = vadd.f32 %v107, %v178
    %180 = vmatmul.f32.gmra.mxu0 %v132
    %v181 = vpop.f32.mrf.mxu0
    %v182 = vadd.f32 %v107, %v181
    %183 = vmatmul.f32.gmra.mxu0 %v135
    %v184 = vpop.f32.mrf.mxu0
    %v185 = vadd.f32 %v107, %v184
    %186 = vmatmul.f32.gmra.mxu0 %v138
    %v187 = vpop.f32.mrf.mxu0
    %v188 = vadd.f32 %v107, %v187
    %189 = vmatmul.f32.gmra.mxu0 %v141
    %v190 = vpop.f32.mrf.mxu0
    %v191 = vadd.f32 %v107, %v190
    %192 = vmatmul.f32.gmra.mxu0 %v144
    %v193 = vpop.f32.mrf.mxu0
    %v194 = vadd.f32 %v107, %v193
    %195 = vmatmul.f32.gmra.mxu0 %v147
    %v196 = vpop.f32.mrf.mxu0
    %v197 = vadd.f32 %v107, %v196
    %198 = vdwg.mxu0
    %199 = vmatpush.msra.mxu0 0.0
    %200 = vmatpush.msra.mxu0 0.0
    %201 = vmatpush.msra.mxu0 0.0
    %202 = vmatpush.msra.mxu0 0.0
    %203 = vmatpush.msra.mxu0 0.0
    %204 = vmatpush.msra.mxu0 0.0
    %205 = vmatpush.msra.mxu0 0.0
    %206 = vmatpush.msra.mxu0 0.0
    %207 = vmatpush.msra.mxu0 0.0
    %208 = vmatpush.msra.mxu0 0.0
    %209 = vmatpush.msra.mxu0 0.0
    %210 = vmatpush.msra.mxu0 0.0
    %211 = vmatpush.msra.mxu0 0.0
    %212 = vmatpush.msra.mxu0 0.0
    %213 = vmatpush.msra.mxu0 0.0
    %214 = vmatpush.msra.mxu0 %v152
    %215 = vmatmul.f32.gmra.mxu0 %v126
    %v216 = vpop.f32.mrf.mxu0
    %v217 = vadd.f32 %v108, %v216
    %218 = vmatmul.f32.gmra.mxu0 %v129
    %v219 = vpop.f32.mrf.mxu0
    %v220 = vadd.f32 %v108, %v219
    %221 = vmatmul.f32.gmra.mxu0 %v132
    %v222 = vpop.f32.mrf.mxu0
    %v223 = vadd.f32 %v108, %v222
    %224 = vmatmul.f32.gmra.mxu0 %v135
    %v225 = vpop.f32.mrf.mxu0
    %v226 = vadd.f32 %v108, %v225
    %227 = vmatmul.f32.gmra.mxu0 %v138
    %v228 = vpop.f32.mrf.mxu0
    %v229 = vadd.f32 %v108, %v228
    %230 = vmatmul.f32.gmra.mxu0 %v141
    %v231 = vpop.f32.mrf.mxu0
    %v232 = vadd.f32 %v108, %v231
    %233 = vmatmul.f32.gmra.mxu0 %v144
    %v234 = vpop.f32.mrf.mxu0
    %v235 = vadd.f32 %v108, %v234
    %236 = vmatmul.f32.gmra.mxu0 %v147
    %v237 = vpop.f32.mrf.mxu0
    %v238 = vadd.f32 %v108, %v237
    %239 = vdwg.mxu0
    %240 = vmatpush.msra.mxu0 0.0
    %241 = vmatpush.msra.mxu0 0.0
    %242 = vmatpush.msra.mxu0 0.0
    %243 = vmatpush.msra.mxu0 0.0
    %244 = vmatpush.msra.mxu0 0.0
    %245 = vmatpush.msra.mxu0 0.0
    %246 = vmatpush.msra.mxu0 0.0
    %247 = vmatpush.msra.mxu0 0.0
    %248 = vmatpush.msra.mxu0 0.0
    %249 = vmatpush.msra.mxu0 0.0
    %250 = vmatpush.msra.mxu0 0.0
    %251 = vmatpush.msra.mxu0 0.0
    %252 = vmatpush.msra.mxu0 0.0
    %253 = vmatpush.msra.mxu0 0.0
    %254 = vmatpush.msra.mxu0 0.0
    %255 = vmatpush.msra.mxu0 %v154
    %256 = vmatmul.f32.gmra.mxu0 %v126
    %v257 = vpop.f32.mrf.mxu0
    %v258 = vadd.f32 %v109, %v257
    %259 = vmatmul.f32.gmra.mxu0 %v129
    %v260 = vpop.f32.mrf.mxu0
    %v261 = vadd.f32 %v109, %v260
    %262 = vmatmul.f32.gmra.mxu0 %v132
    %v263 = vpop.f32.mrf.mxu0
    %v264 = vadd.f32 %v109, %v263
    %265 = vmatmul.f32.gmra.mxu0 %v135
    %v266 = vpop.f32.mrf.mxu0
    %v267 = vadd.f32 %v109, %v266
    %268 = vmatmul.f32.gmra.mxu0 %v138
    %v269 = vpop.f32.mrf.mxu0
    %v270 = vadd.f32 %v109, %v269
    %271 = vmatmul.f32.gmra.mxu0 %v141
    %v272 = vpop.f32.mrf.mxu0
    %v273 = vadd.f32 %v109, %v272
    %274 = vmatmul.f32.gmra.mxu0 %v144
    %v275 = vpop.f32.mrf.mxu0
    %v276 = vadd.f32 %v109, %v275
    %277 = vmatmul.f32.gmra.mxu0 %v147
    %v278 = vpop.f32.mrf.mxu0
    %v279 = vadd.f32 %v109, %v278
    %280 = vdwg.mxu0
    %281 = vmatpush.msra.mxu0 0.0
    %282 = vmatpush.msra.mxu0 0.0
    %283 = vmatpush.msra.mxu0 0.0
    %284 = vmatpush.msra.mxu0 0.0
    %285 = vmatpush.msra.mxu0 0.0
    %286 = vmatpush.msra.mxu0 0.0
    %287 = vmatpush.msra.mxu0 0.0
    %288 = vmatpush.msra.mxu0 0.0
    %289 = vmatpush.msra.mxu0 0.0
    %290 = vmatpush.msra.mxu0 0.0
    %291 = vmatpush.msra.mxu0 0.0
    %292 = vmatpush.msra.mxu0 0.0
    %293 = vmatpush.msra.mxu0 0.0
    %294 = vmatpush.msra.mxu0 0.0
    %295 = vmatpush.msra.mxu0 0.0
    %296 = vmatpush.msra.mxu0 %v156
    %297 = vmatmul.f32.gmra.mxu0 %v126
    %v298 = vpop.f32.mrf.mxu0
    %v299 = vadd.f32 %v110, %v298
    %300 = vmatmul.f32.gmra.mxu0 %v129
    %v301 = vpop.f32.mrf.mxu0
    %v302 = vadd.f32 %v110, %v301
    %303 = vmatmul.f32.gmra.mxu0 %v132
    %v304 = vpop.f32.mrf.mxu0
    %v305 = vadd.f32 %v110, %v304
    %306 = vmatmul.f32.gmra.mxu0 %v135
    %v307 = vpop.f32.mrf.mxu0
    %v308 = vadd.f32 %v110, %v307
    %309 = vmatmul.f32.gmra.mxu0 %v138
    %v310 = vpop.f32.mrf.mxu0
    %v311 = vadd.f32 %v110, %v310
    %312 = vmatmul.f32.gmra.mxu0 %v141
    %v313 = vpop.f32.mrf.mxu0
    %v314 = vadd.f32 %v110, %v313
    %315 = vmatmul.f32.gmra.mxu0 %v144
    %v316 = vpop.f32.mrf.mxu0
    %v317 = vadd.f32 %v110, %v316
    %318 = vmatmul.f32.gmra.mxu0 %v147
    %v319 = vpop.f32.mrf.mxu0
    %v320 = vadd.f32 %v110, %v319
    %321 = vdwg.mxu0
    %322 = vst [vmem:[#allocation2] sm:$0xff] %v176
    %323 = vst [vmem:[#allocation2 + $0x8] sm:$0xff] %v217
    %324 = vst [vmem:[#allocation2 + $0x10] sm:$0xff] %v258
    %325 = vst [vmem:[#allocation2 + $0x18] sm:$0xff] %v299
    %326 = vst [vmem:[#allocation2 + $0x20] sm:$0xff] %v179
    %327 = vst [vmem:[#allocation2 + $0x28] sm:$0xff] %v220
    %328 = vst [vmem:[#allocation2 + $0x30] sm:$0xff] %v261
    %329 = vst [vmem:[#allocation2 + $0x38] sm:$0xff] %v302
    %330 = vst [vmem:[#allocation2 + $0x40] sm:$0xff] %v182
    %331 = vst [vmem:[#allocation2 + $0x48] sm:$0xff] %v223
    %332 = vst [vmem:[#allocation2 + $0x50] sm:$0xff] %v264
    %333 = vst [vmem:[#allocation2 + $0x58] sm:$0xff] %v305
    %334 = vst [vmem:[#allocation2 + $0x60] sm:$0xff] %v185
    %335 = vst [vmem:[#allocation2 + $0x68] sm:$0xff] %v226
    %336 = vst [vmem:[#allocation2 + $0x70] sm:$0xff] %v267
    %337 = vst [vmem:[#allocation2 + $0x78] sm:$0xff] %v308
    %338 = vst [vmem:[#allocation2 + $0x80] sm:$0xff] %v188
    %339 = vst [vmem:[#allocation2 + $0x88] sm:$0xff] %v229
    %340 = vst [vmem:[#allocation2 + $0x90] sm:$0xff] %v270
    %341 = vst [vmem:[#allocation2 + $0x98] sm:$0xff] %v311
    %342 = vst [vmem:[#allocation2 + $0xa0] sm:$0xff] %v191
    %343 = vst [vmem:[#allocation2 + $0xa8] sm:$0xff] %v232
    %344 = vst [vmem:[#allocation2 + $0xb0] sm:$0xff] %v273
    %345 = vst [vmem:[#allocation2 + $0xb8] sm:$0xff] %v314
    %346 = vst [vmem:[#allocation2 + $0xc0] sm:$0xff] %v194
    %347 = vst [vmem:[#allocation2 + $0xc8] sm:$0xff] %v235
    %348 = vst [vmem:[#allocation2 + $0xd0] sm:$0xff] %v276
    %349 = vst [vmem:[#allocation2 + $0xd8] sm:$0xff] %v317
    %350 = vst [vmem:[#allocation2 + $0xe0] sm:$0xff] %v197
    %351 = vst [vmem:[#allocation2 + $0xe8] sm:$0xff] %v238
    %352 = vst [vmem:[#allocation2 + $0xf0] sm:$0xff] %v279
    %353 = vst [vmem:[#allocation2 + $0xf8] sm:$0xff] %v320
    %v354 = vld [vmem:[#allocation4] sm:$0xff]
    %v355 = vld [vmem:[#allocation4 + $0x8] sm:$0xff]
    %v356 = vld [vmem:[#allocation4 + $0x10] sm:$0xff]
    %v357 = vld [vmem:[#allocation4 + $0x18] sm:$0xff]
    %v358 = vld [vmem:[#allocation4 + $0x20] sm:$0xff]
    %v359 = vld [vmem:[#allocation4 + $0x28] sm:$0xff]
    %v360 = vld [vmem:[#allocation4 + $0x30] sm:$0xff]
    %v361 = vld [vmem:[#allocation4 + $0x38] sm:$0xff]
    %v362 = vld [vmem:[#allocation4 + $0x40] sm:$0xff]
    %v363 = vld [vmem:[#allocation4 + $0x48] sm:$0xff]
    %v364 = vld [vmem:[#allocation4 + $0x50] sm:$0xff]
    %v365 = vld [vmem:[#allocation4 + $0x58] sm:$0xff]
    %v366 = vld [vmem:[#allocation4 + $0x60] sm:$0xff]
    %v367 = vld [vmem:[#allocation4 + $0x68] sm:$0xff]
    %v368 = vld [vmem:[#allocation4 + $0x70] sm:$0xff]
    %v369 = vld [vmem:[#allocation4 + $0x78] sm:$0xff]
    %v370 = vld [vmem:[#allocation4 + $0x80] sm:$0xff]
    %v371 = vld [vmem:[#allocation4 + $0x88] sm:$0xff]
    %v372 = vld [vmem:[#allocation4 + $0x90] sm:$0xff]
    %v373 = vld [vmem:[#allocation4 + $0x98] sm:$0xff]
    %v374 = vld [vmem:[#allocation4 + $0xa0] sm:$0xff]
    %v375 = vld [vmem:[#allocation4 + $0xa8] sm:$0xff]
    %v376 = vld [vmem:[#allocation4 + $0xb0] sm:$0xff]
    %v377 = vld [vmem:[#allocation4 + $0xb8] sm:$0xff]
    %v378 = vld [vmem:[#allocation4 + $0xc0] sm:$0xff]
    %v379 = vld [vmem:[#allocation4 + $0xc8] sm:$0xff]
    %v380 = vld [vmem:[#allocation4 + $0xd0] sm:$0xff]
    %v381 = vld [vmem:[#allocation4 + $0xd8] sm:$0xff]
    %v382 = vld [vmem:[#allocation4 + $0xe0] sm:$0xff]
    %v383 = vld [vmem:[#allocation4 + $0xe8] sm:$0xff]
    %v384 = vld [vmem:[#allocation4 + $0xf0] sm:$0xff]
    %v385 = vld [vmem:[#allocation4 + $0xf8] sm:$0xff]
    %v386 = vld [vmem:[#allocation4 + $0x100] sm:$0xff]
    %v387 = vld [vmem:[#allocation4 + $0x108] sm:$0xff]
    %v388 = vld [vmem:[#allocation4 + $0x110] sm:$0xff]
    %v389 = vld [vmem:[#allocation4 + $0x118] sm:$0xff]
    %v390 = vld [vmem:[#allocation4 + $0x120] sm:$0xff]
    %v391 = vld [vmem:[#allocation4 + $0x128] sm:$0xff]
    %v392 = vld [vmem:[#allocation4 + $0x130] sm:$0xff]
    %v393 = vld [vmem:[#allocation4 + $0x138] sm:$0xff]
    %v394 = vld [vmem:[#allocation4 + $0x140] sm:$0xff]
    %v395 = vld [vmem:[#allocation4 + $0x148] sm:$0xff]
    %v396 = vld [vmem:[#allocation4 + $0x150] sm:$0xff]
    %v397 = vld [vmem:[#allocation4 + $0x158] sm:$0xff]
    %v398 = vld [vmem:[#allocation4 + $0x160] sm:$0xff]
    %v399 = vld [vmem:[#allocation4 + $0x168] sm:$0xff]
    %v400 = vld [vmem:[#allocation4 + $0x170] sm:$0xff]
    %v401 = vld [vmem:[#allocation4 + $0x178] sm:$0xff]
    %v402 = vld [vmem:[#allocation4 + $0x180] sm:$0xff]
    %v403 = vld [vmem:[#allocation4 + $0x188] sm:$0xff]
    %v404 = vld [vmem:[#allocation4 + $0x190] sm:$0xff]
    %v405 = vld [vmem:[#allocation4 + $0x198] sm:$0xff]
    %v406 = vld [vmem:[#allocation4 + $0x1a0] sm:$0xff]
    %v407 = vld [vmem:[#allocation4 + $0x1a8] sm:$0xff]
    %v408 = vld [vmem:[#allocation4 + $0x1b0] sm:$0xff]
    %v409 = vld [vmem:[#allocation4 + $0x1b8] sm:$0xff]
    %v410 = vld [vmem:[#allocation4 + $0x1c0] sm:$0xff]
    %v411 = vld [vmem:[#allocation4 + $0x1c8] sm:$0xff]
    %v412 = vld [vmem:[#allocation4 + $0x1d0] sm:$0xff]
    %v413 = vld [vmem:[#allocation4 + $0x1d8] sm:$0xff]
    %v414 = vld [vmem:[#allocation4 + $0x1e0] sm:$0xff]
    %v415 = vld [vmem:[#allocation4 + $0x1e8] sm:$0xff]
    %v416 = vld [vmem:[#allocation4 + $0x1f0] sm:$0xff]
    %v417 = vld [vmem:[#allocation4 + $0x1f8] sm:$0xff]
    %s418 = smul.u32 0, 4
    %s419 = smul.addr %s418, 8
    %s420 = scalar_lea.vmem [#allocation2], %s419
    %v421 = vld [vmem:[%s420] sm:$0xff]
    %v422 = vld [vmem:[%s420 + $0x8] sm:$0xff]
    %v423 = vld [vmem:[%s420 + $0x10] sm:$0xff]
    %v424 = vld [vmem:[%s420 + $0x18] sm:$0xff]
    %425 = vmatpush.msra.mxu0 %v414
    %426 = vmatpush.msra.mxu0 %v410
    %427 = vmatpush.msra.mxu0 %v406
    %428 = vmatpush.msra.mxu0 %v402
    %429 = vmatpush.msra.mxu0 %v398
    %430 = vmatpush.msra.mxu0 %v394
    %431 = vmatpush.msra.mxu0 %v390
    %432 = vmatpush.msra.mxu0 %v386
    %433 = vmatpush.msra.mxu0 %v382
    %434 = vmatpush.msra.mxu0 %v378
    %435 = vmatpush.msra.mxu0 %v374
    %436 = vmatpush.msra.mxu0 %v370
    %437 = vmatpush.msra.mxu0 %v366
    %438 = vmatpush.msra.mxu0 %v362
    %439 = vmatpush.msra.mxu0 %v358
    %440 = vmatpush.msra.mxu0 %v354
    %441 = vmatmul.f32.gmra.mxu0 0.0
    %v442 = vpop.f32.mrf.mxu0
    %v443 = vadd.f32 0.0, %v442
    %444 = vdwg.mxu0
    %445 = vmatpush.msra.mxu0 %v415
    %446 = vmatpush.msra.mxu0 %v411
    %447 = vmatpush.msra.mxu0 %v407
    %448 = vmatpush.msra.mxu0 %v403
    %449 = vmatpush.msra.mxu0 %v399
    %450 = vmatpush.msra.mxu0 %v395
    %451 = vmatpush.msra.mxu0 %v391
    %452 = vmatpush.msra.mxu0 %v387
    %453 = vmatpush.msra.mxu0 %v383
    %454 = vmatpush.msra.mxu0 %v379
    %455 = vmatpush.msra.mxu0 %v375
    %456 = vmatpush.msra.mxu0 %v371
    %457 = vmatpush.msra.mxu0 %v367
    %458 = vmatpush.msra.mxu0 %v363
    %459 = vmatpush.msra.mxu0 %v359
    %460 = vmatpush.msra.mxu0 %v355
    %461 = vmatmul.f32.gmra.mxu0 0.0
    %v462 = vpop.f32.mrf.mxu0
    %v463 = vadd.f32 0.0, %v462
    %464 = vdwg.mxu0
    %465 = vmatpush.msra.mxu0 %v416
    %466 = vmatpush.msra.mxu0 %v412
    %467 = vmatpush.msra.mxu0 %v408
    %468 = vmatpush.msra.mxu0 %v404
    %469 = vmatpush.msra.mxu0 %v400
    %470 = vmatpush.msra.mxu0 %v396
    %471 = vmatpush.msra.mxu0 %v392
    %472 = vmatpush.msra.mxu0 %v388
    %473 = vmatpush.msra.mxu0 %v384
    %474 = vmatpush.msra.mxu0 %v380
    %475 = vmatpush.msra.mxu0 %v376
    %476 = vmatpush.msra.mxu0 %v372
    %477 = vmatpush.msra.mxu0 %v368
    %478 = vmatpush.msra.mxu0 %v364
    %479 = vmatpush.msra.mxu0 %v360
    %480 = vmatpush.msra.mxu0 %v356
    %481 = vmatmul.f32.gmra.mxu0 0.0
    %v482 = vpop.f32.mrf.mxu0
    %v483 = vadd.f32 0.0, %v482
    %484 = vdwg.mxu0
    %485 = vmatpush.msra.mxu0 %v417
    %486 = vmatpush.msra.mxu0 %v413
    %487 = vmatpush.msra.mxu0 %v409
    %488 = vmatpush.msra.mxu0 %v405
    %489 = vmatpush.msra.mxu0 %v401
    %490 = vmatpush.msra.mxu0 %v397
    %491 = vmatpush.msra.mxu0 %v393
    %492 = vmatpush.msra.mxu0 %v389
    %493 = vmatpush.msra.mxu0 %v385
    %494 = vmatpush.msra.mxu0 %v381
    %495 = vmatpush.msra.mxu0 %v377
    %496 = vmatpush.msra.mxu0 %v373
    %497 = vmatpush.msra.mxu0 %v369
    %498 = vmatpush.msra.mxu0 %v365
    %499 = vmatpush.msra.mxu0 %v361
    %500 = vmatpush.msra.mxu0 %v357
    %501 = vmatmul.f32.gmra.mxu0 0.0
    %v502 = vpop.f32.mrf.mxu0
    %v503 = vadd.f32 0.0, %v502
    %504 = vdwg.mxu0
    %v505 = vadd.f32 %v421, %v443
    %v506 = vadd.f32 %v422, %v463
    %v507 = vadd.f32 %v423, %v483
    %v508 = vadd.f32 %v424, %v503
    %v509 = vxor.u32 %v505, 2147483648
    %v510 = vmul.f32 %v509, 1.442695
    %v511 = vpow.pop %v510
    %v512 = vadd.f32 %v511, 1.0
    %v513 = vrcp.pop %v512
    %v514 = vmul.f32 %v512, %v513
    %v515 = vsub.f32 1.0, %v514
    %v516 = vmul.f32 %v513, %v515
    %v517 = vadd.f32 %v513, %v516
    %vm518 = vweird.f32 %v512
    %vm519 = vweird.f32 %v513
    %vm520 = vmor %vm518, %vm519
    %v521 = vsel %vm520, %v513, %v517
    %v522 = vand.u32 2147483647, %v512
    %vm523 = vcmp.eq.f32.partialorder %v522, 8.507059e+37
    %v524 = vand.u32 %v512, 2147483648
    %v525 = vor.u32 1.1754944e-38, %v524
    %v526 = vsel %vm523, %v525, %v521
    %v527 = vmul.f32 1.0, %v526
    %v528 = vxor.u32 %v506, 2147483648
    %v529 = vmul.f32 %v528, 1.442695
    %v530 = vpow.pop %v529
    %v531 = vadd.f32 %v530, 1.0
    %v532 = vrcp.pop %v531
    %v533 = vmul.f32 %v531, %v532
    %v534 = vsub.f32 1.0, %v533
    %v535 = vmul.f32 %v532, %v534
    %v536 = vadd.f32 %v532, %v535
    %vm537 = vweird.f32 %v531
    %vm538 = vweird.f32 %v532
    %vm539 = vmor %vm537, %vm538
    %v540 = vsel %vm539, %v532, %v536
    %v541 = vand.u32 2147483647, %v531
    %vm542 = vcmp.eq.f32.partialorder %v541, 8.507059e+37
    %v543 = vand.u32 %v531, 2147483648
    %v544 = vor.u32 1.1754944e-38, %v543
    %v545 = vsel %vm542, %v544, %v540
    %v546 = vmul.f32 1.0, %v545
    %v547 = vtanh.pop %v507
    %v548 = vxor.u32 %v508, 2147483648
    %v549 = vmul.f32 %v548, 1.442695
    %v550 = vpow.pop %v549
    %v551 = vadd.f32 %v550, 1.0
    %v552 = vrcp.pop %v551
    %v553 = vmul.f32 %v551, %v552
    %v554 = vsub.f32 1.0, %v553
    %v555 = vmul.f32 %v552, %v554
    %v556 = vadd.f32 %v552, %v555
    %vm557 = vweird.f32 %v551
    %vm558 = vweird.f32 %v552
    %vm559 = vmor %vm557, %vm558
    %v560 = vsel %vm559, %v552, %v556
    %v561 = vand.u32 2147483647, %v551
    %vm562 = vcmp.eq.f32.partialorder %v561, 8.507059e+37
    %v563 = vand.u32 %v551, 2147483648
    %v564 = vor.u32 1.1754944e-38, %v563
    %v565 = vsel %vm562, %v564, %v560
    %v566 = vmul.f32 1.0, %v565
    %v567 = vmul.f32 %v546, 0.0
    %v568 = vmul.f32 %v527, %v547
    %v569 = vadd.f32 %v567, %v568
    %v570 = vtanh.pop %v569
    %v571 = vmul.f32 %v566, %v570
    %572 = vst [vmem:[#allocation3] sm:$0xff] %v571
    %s573 = smul.u32 1, 4
    %s574 = smul.addr %s573, 8
    %s575 = scalar_lea.vmem [#allocation2], %s574
    %v576 = vld [vmem:[%s575] sm:$0xff]
    %v577 = vld [vmem:[%s575 + $0x8] sm:$0xff]
    %v578 = vld [vmem:[%s575 + $0x10] sm:$0xff]
    %v579 = vld [vmem:[%s575 + $0x18] sm:$0xff]
    %580 = vmatpush.msra.mxu0 %v414
    %581 = vmatpush.msra.mxu0 %v410
    %582 = vmatpush.msra.mxu0 %v406
    %583 = vmatpush.msra.mxu0 %v402
    %584 = vmatpush.msra.mxu0 %v398
    %585 = vmatpush.msra.mxu0 %v394
    %586 = vmatpush.msra.mxu0 %v390
    %587 = vmatpush.msra.mxu0 %v386
    %588 = vmatpush.msra.mxu0 %v382
    %589 = vmatpush.msra.mxu0 %v378
    %590 = vmatpush.msra.mxu0 %v374
    %591 = vmatpush.msra.mxu0 %v370
    %592 = vmatpush.msra.mxu0 %v366
    %593 = vmatpush.msra.mxu0 %v362
    %594 = vmatpush.msra.mxu0 %v358
    %595 = vmatpush.msra.mxu0 %v354
    %596 = vmatmul.f32.gmra.mxu0 %v571
    %v597 = vpop.f32.mrf.mxu0
    %v598 = vadd.f32 0.0, %v597
    %599 = vdwg.mxu0
    %600 = vmatpush.msra.mxu0 %v415
    %601 = vmatpush.msra.mxu0 %v411
    %602 = vmatpush.msra.mxu0 %v407
    %603 = vmatpush.msra.mxu0 %v403
    %604 = vmatpush.msra.mxu0 %v399
    %605 = vmatpush.msra.mxu0 %v395
    %606 = vmatpush.msra.mxu0 %v391
    %607 = vmatpush.msra.mxu0 %v387
    %608 = vmatpush.msra.mxu0 %v383
    %609 = vmatpush.msra.mxu0 %v379
    %610 = vmatpush.msra.mxu0 %v375
    %611 = vmatpush.msra.mxu0 %v371
    %612 = vmatpush.msra.mxu0 %v367
    %613 = vmatpush.msra.mxu0 %v363
    %614 = vmatpush.msra.mxu0 %v359
    %615 = vmatpush.msra.mxu0 %v355
    %616 = vmatmul.f32.gmra.mxu0 %v571
    %v617 = vpop.f32.mrf.mxu0
    %v618 = vadd.f32 0.0, %v617
    %619 = vdwg.mxu0
    %620 = vmatpush.msra.mxu0 %v416
    %621 = vmatpush.msra.mxu0 %v412
    %622 = vmatpush.msra.mxu0 %v408
    %623 = vmatpush.msra.mxu0 %v404
    %624 = vmatpush.msra.mxu0 %v400
    %625 = vmatpush.msra.mxu0 %v396
    %626 = vmatpush.msra.mxu0 %v392
    %627 = vmatpush.msra.mxu0 %v388
    %628 = vmatpush.msra.mxu0 %v384
    %629 = vmatpush.msra.mxu0 %v380
    %630 = vmatpush.msra.mxu0 %v376
    %631 = vmatpush.msra.mxu0 %v372
    %632 = vmatpush.msra.mxu0 %v368
    %633 = vmatpush.msra.mxu0 %v364
    %634 = vmatpush.msra.mxu0 %v360
    %635 = vmatpush.msra.mxu0 %v356
    %636 = vmatmul.f32.gmra.mxu0 %v571
    %v637 = vpop.f32.mrf.mxu0
    %v638 = vadd.f32 0.0, %v637
    %639 = vdwg.mxu0
    %640 = vmatpush.msra.mxu0 %v417
    %641 = vmatpush.msra.mxu0 %v413
    %642 = vmatpush.msra.mxu0 %v409
    %643 = vmatpush.msra.mxu0 %v405
    %644 = vmatpush.msra.mxu0 %v401
    %645 = vmatpush.msra.mxu0 %v397
    %646 = vmatpush.msra.mxu0 %v393
    %647 = vmatpush.msra.mxu0 %v389
    %648 = vmatpush.msra.mxu0 %v385
    %649 = vmatpush.msra.mxu0 %v381
    %650 = vmatpush.msra.mxu0 %v377
    %651 = vmatpush.msra.mxu0 %v373
    %652 = vmatpush.msra.mxu0 %v369
    %653 = vmatpush.msra.mxu0 %v365
    %654 = vmatpush.msra.mxu0 %v361
    %655 = vmatpush.msra.mxu0 %v357
    %656 = vmatmul.f32.gmra.mxu0 %v571
    %v657 = vpop.f32.mrf.mxu0
    %v658 = vadd.f32 0.0, %v657
    %659 = vdwg.mxu0
    %v660 = vadd.f32 %v576, %v598
    %v661 = vadd.f32 %v577, %v618
    %v662 = vadd.f32 %v578, %v638
    %v663 = vadd.f32 %v579, %v658
    %v664 = vxor.u32 %v660, 2147483648
    %v665 = vmul.f32 %v664, 1.442695
    %v666 = vpow.pop %v665
    %v667 = vadd.f32 %v666, 1.0
    %v668 = vrcp.pop %v667
    %v669 = vmul.f32 %v667, %v668
    %v670 = vsub.f32 1.0, %v669
    %v671 = vmul.f32 %v668, %v670
    %v672 = vadd.f32 %v668, %v671
    %vm673 = vweird.f32 %v667
    %vm674 = vweird.f32 %v668
    %vm675 = vmor %vm673, %vm674
    %v676 = vsel %vm675, %v668, %v672
    %v677 = vand.u32 2147483647, %v667
    %vm678 = vcmp.eq.f32.partialorder %v677, 8.507059e+37
    %v679 = vand.u32 %v667, 2147483648
    %v680 = vor.u32 1.1754944e-38, %v679
    %v681 = vsel %vm678, %v680, %v676
    %v682 = vmul.f32 1.0, %v681
    %v683 = vxor.u32 %v661, 2147483648
    %v684 = vmul.f32 %v683, 1.442695
    %v685 = vpow.pop %v684
    %v686 = vadd.f32 %v685, 1.0
    %v687 = vrcp.pop %v686
    %v688 = vmul.f32 %v686, %v687
    %v689 = vsub.f32 1.0, %v688
    %v690 = vmul.f32 %v687, %v689
    %v691 = vadd.f32 %v687, %v690
    %vm692 = vweird.f32 %v686
    %vm693 = vweird.f32 %v687
    %vm694 = vmor %vm692, %vm693
    %v695 = vsel %vm694, %v687, %v691
    %v696 = vand.u32 2147483647, %v686
    %vm697 = vcmp.eq.f32.partialorder %v696, 8.507059e+37
    %v698 = vand.u32 %v686, 2147483648
    %v699 = vor.u32 1.1754944e-38, %v698
    %v700 = vsel %vm697, %v699, %v695
    %v701 = vmul.f32 1.0, %v700
    %v702 = vtanh.pop %v662
    %v703 = vxor.u32 %v663, 2147483648
    %v704 = vmul.f32 %v703, 1.442695
    %v705 = vpow.pop %v704
    %v706 = vadd.f32 %v705, 1.0
    %v707 = vrcp.pop %v706
    %v708 = vmul.f32 %v706, %v707
    %v709 = vsub.f32 1.0, %v708
    %v710 = vmul.f32 %v707, %v709
    %v711 = vadd.f32 %v707, %v710
    %vm712 = vweird.f32 %v706
    %vm713 = vweird.f32 %v707
    %vm714 = vmor %vm712, %vm713
    %v715 = vsel %vm714, %v707, %v711
    %v716 = vand.u32 2147483647, %v706
    %vm717 = vcmp.eq.f32.partialorder %v716, 8.507059e+37
    %v718 = vand.u32 %v706, 2147483648
    %v719 = vor.u32 1.1754944e-38, %v718
    %v720 = vsel %vm717, %v719, %v715
    %v721 = vmul.f32 1.0, %v720
    %v722 = vmul.f32 %v701, %v569
    %v723 = vmul.f32 %v682, %v702
    %v724 = vadd.f32 %v722, %v723
    %v725 = vtanh.pop %v724
    %v726 = vmul.f32 %v721, %v725
    %s727 = scalar_lea.vmem [#allocation3], 8
    %728 = vst [vmem:[%s727] sm:$0xff] %v726
    %s729 = smul.u32 2, 4
    %s730 = smul.addr %s729, 8
    %s731 = scalar_lea.vmem [#allocation2], %s730
    %v732 = vld [vmem:[%s731] sm:$0xff]
    %v733 = vld [vmem:[%s731 + $0x8] sm:$0xff]
    %v734 = vld [vmem:[%s731 + $0x10] sm:$0xff]
    %v735 = vld [vmem:[%s731 + $0x18] sm:$0xff]
    %736 = vmatpush.msra.mxu0 %v414
    %737 = vmatpush.msra.mxu0 %v410
    %738 = vmatpush.msra.mxu0 %v406
    %739 = vmatpush.msra.mxu0 %v402
    %740 = vmatpush.msra.mxu0 %v398
    %741 = vmatpush.msra.mxu0 %v394
    %742 = vmatpush.msra.mxu0 %v390
    %743 = vmatpush.msra.mxu0 %v386
    %744 = vmatpush.msra.mxu0 %v382
    %745 = vmatpush.msra.mxu0 %v378
    %746 = vmatpush.msra.mxu0 %v374
    %747 = vmatpush.msra.mxu0 %v370
    %748 = vmatpush.msra.mxu0 %v366
    %749 = vmatpush.msra.mxu0 %v362
    %750 = vmatpush.msra.mxu0 %v358
    %751 = vmatpush.msra.mxu0 %v354
    %752 = vmatmul.f32.gmra.mxu0 %v726
    %v753 = vpop.f32.mrf.mxu0
    %v754 = vadd.f32 0.0, %v753
    %755 = vdwg.mxu0
    %756 = vmatpush.msra.mxu0 %v415
    %757 = vmatpush.msra.mxu0 %v411
    %758 = vmatpush.msra.mxu0 %v407
    %759 = vmatpush.msra.mxu0 %v403
    %760 = vmatpush.msra.mxu0 %v399
    %761 = vmatpush.msra.mxu0 %v395
    %762 = vmatpush.msra.mxu0 %v391
    %763 = vmatpush.msra.mxu0 %v387
    %764 = vmatpush.msra.mxu0 %v383
    %765 = vmatpush.msra.mxu0 %v379
    %766 = vmatpush.msra.mxu0 %v375
    %767 = vmatpush.msra.mxu0 %v371
    %768 = vmatpush.msra.mxu0 %v367
    %769 = vmatpush.msra.mxu0 %v363
    %770 = vmatpush.msra.mxu0 %v359
    %771 = vmatpush.msra.mxu0 %v355
    %772 = vmatmul.f32.gmra.mxu0 %v726
    %v773 = vpop.f32.mrf.mxu0
    %v774 = vadd.f32 0.0, %v773
    %775 = vdwg.mxu0
    %776 = vmatpush.msra.mxu0 %v416
    %777 = vmatpush.msra.mxu0 %v412
    %778 = vmatpush.msra.mxu0 %v408
    %779 = vmatpush.msra.mxu0 %v404
    %780 = vmatpush.msra.mxu0 %v400
    %781 = vmatpush.msra.mxu0 %v396
    %782 = vmatpush.msra.mxu0 %v392
    %783 = vmatpush.msra.mxu0 %v388
    %784 = vmatpush.msra.mxu0 %v384
    %785 = vmatpush.msra.mxu0 %v380
    %786 = vmatpush.msra.mxu0 %v376
    %787 = vmatpush.msra.mxu0 %v372
    %788 = vmatpush.msra.mxu0 %v368
    %789 = vmatpush.msra.mxu0 %v364
    %790 = vmatpush.msra.mxu0 %v360
    %791 = vmatpush.msra.mxu0 %v356
    %792 = vmatmul.f32.gmra.mxu0 %v726
    %v793 = vpop.f32.mrf.mxu0
    %v794 = vadd.f32 0.0, %v793
    %795 = vdwg.mxu0
    %796 = vmatpush.msra.mxu0 %v417
    %797 = vmatpush.msra.mxu0 %v413
    %798 = vmatpush.msra.mxu0 %v409
    %799 = vmatpush.msra.mxu0 %v405
    %800 = vmatpush.msra.mxu0 %v401
    %801 = vmatpush.msra.mxu0 %v397
    %802 = vmatpush.msra.mxu0 %v393
    %803 = vmatpush.msra.mxu0 %v389
    %804 = vmatpush.msra.mxu0 %v385
    %805 = vmatpush.msra.mxu0 %v381
    %806 = vmatpush.msra.mxu0 %v377
    %807 = vmatpush.msra.mxu0 %v373
    %808 = vmatpush.msra.mxu0 %v369
    %809 = vmatpush.msra.mxu0 %v365
    %810 = vmatpush.msra.mxu0 %v361
    %811 = vmatpush.msra.mxu0 %v357
    %812 = vmatmul.f32.gmra.mxu0 %v726
    %v813 = vpop.f32.mrf.mxu0
    %v814 = vadd.f32 0.0, %v813
    %815 = vdwg.mxu0
    %v816 = vadd.f32 %v732, %v754
    %v817 = vadd.f32 %v733, %v774
    %v818 = vadd.f32 %v734, %v794
    %v819 = vadd.f32 %v735, %v814
    %v820 = vxor.u32 %v816, 2147483648
    %v821 = vmul.f32 %v820, 1.442695
    %v822 = vpow.pop %v821
    %v823 = vadd.f32 %v822, 1.0
    %v824 = vrcp.pop %v823
    %v825 = vmul.f32 %v823, %v824
    %v826 = vsub.f32 1.0, %v825
    %v827 = vmul.f32 %v824, %v826
    %v828 = vadd.f32 %v824, %v827
    %vm829 = vweird.f32 %v823
    %vm830 = vweird.f32 %v824
    %vm831 = vmor %vm829, %vm830
    %v832 = vsel %vm831, %v824, %v828
    %v833 = vand.u32 2147483647, %v823
    %vm834 = vcmp.eq.f32.partialorder %v833, 8.507059e+37
    %v835 = vand.u32 %v823, 2147483648
    %v836 = vor.u32 1.1754944e-38, %v835
    %v837 = vsel %vm834, %v836, %v832
    %v838 = vmul.f32 1.0, %v837
    %v839 = vxor.u32 %v817, 2147483648
    %v840 = vmul.f32 %v839, 1.442695
    %v841 = vpow.pop %v840
    %v842 = vadd.f32 %v841, 1.0
    %v843 = vrcp.pop %v842
    %v844 = vmul.f32 %v842, %v843
    %v845 = vsub.f32 1.0, %v844
    %v846 = vmul.f32 %v843, %v845
    %v847 = vadd.f32 %v843, %v846
    %vm848 = vweird.f32 %v842
    %vm849 = vweird.f32 %v843
    %vm850 = vmor %vm848, %vm849
    %v851 = vsel %vm850, %v843, %v847
    %v852 = vand.u32 2147483647, %v842
    %vm853 = vcmp.eq.f32.partialorder %v852, 8.507059e+37
    %v854 = vand.u32 %v842, 2147483648
    %v855 = vor.u32 1.1754944e-38, %v854
    %v856 = vsel %vm853, %v855, %v851
    %v857 = vmul.f32 1.0, %v856
    %v858 = vtanh.pop %v818
    %v859 = vxor.u32 %v819, 2147483648
    %v860 = vmul.f32 %v859, 1.442695
    %v861 = vpow.pop %v860
    %v862 = vadd.f32 %v861, 1.0
    %v863 = vrcp.pop %v862
    %v864 = vmul.f32 %v862, %v863
    %v865 = vsub.f32 1.0, %v864
    %v866 = vmul.f32 %v863, %v865
    %v867 = vadd.f32 %v863, %v866
    %vm868 = vweird.f32 %v862
    %vm869 = vweird.f32 %v863
    %vm870 = vmor %vm868, %vm869
    %v871 = vsel %vm870, %v863, %v867
    %v872 = vand.u32 2147483647, %v862
    %vm873 = vcmp.eq.f32.partialorder %v872, 8.507059e+37
    %v874 = vand.u32 %v862, 2147483648
    %v875 = vor.u32 1.1754944e-38, %v874
    %v876 = vsel %vm873, %v875, %v871
    %v877 = vmul.f32 1.0, %v876
    %v878 = vmul.f32 %v857, %v724
    %v879 = vmul.f32 %v838, %v858
    %v880 = vadd.f32 %v878, %v879
    %v881 = vtanh.pop %v880
    %v882 = vmul.f32 %v877, %v881
    %s883 = scalar_lea.vmem [#allocation3], 16
    %884 = vst [vmem:[%s883] sm:$0xff] %v882
    %s885 = smul.u32 3, 4
    %s886 = smul.addr %s885, 8
    %s887 = scalar_lea.vmem [#allocation2], %s886
    %v888 = vld [vmem:[%s887] sm:$0xff]
    %v889 = vld [vmem:[%s887 + $0x8] sm:$0xff]
    %v890 = vld [vmem:[%s887 + $0x10] sm:$0xff]
    %v891 = vld [vmem:[%s887 + $0x18] sm:$0xff]
    %892 = vmatpush.msra.mxu0 %v414
    %893 = vmatpush.msra.mxu0 %v410
    %894 = vmatpush.msra.mxu0 %v406
    %895 = vmatpush.msra.mxu0 %v402
    %896 = vmatpush.msra.mxu0 %v398
    %897 = vmatpush.msra.mxu0 %v394
    %898 = vmatpush.msra.mxu0 %v390
    %899 = vmatpush.msra.mxu0 %v386
    %900 = vmatpush.msra.mxu0 %v382
    %901 = vmatpush.msra.mxu0 %v378
    %902 = vmatpush.msra.mxu0 %v374
    %903 = vmatpush.msra.mxu0 %v370
    %904 = vmatpush.msra.mxu0 %v366
    %905 = vmatpush.msra.mxu0 %v362
    %906 = vmatpush.msra.mxu0 %v358
    %907 = vmatpush.msra.mxu0 %v354
    %908 = vmatmul.f32.gmra.mxu0 %v882
    %v909 = vpop.f32.mrf.mxu0
    %v910 = vadd.f32 0.0, %v909
    %911 = vdwg.mxu0
    %912 = vmatpush.msra.mxu0 %v415
    %913 = vmatpush.msra.mxu0 %v411
    %914 = vmatpush.msra.mxu0 %v407
    %915 = vmatpush.msra.mxu0 %v403
    %916 = vmatpush.msra.mxu0 %v399
    %917 = vmatpush.msra.mxu0 %v395
    %918 = vmatpush.msra.mxu0 %v391
    %919 = vmatpush.msra.mxu0 %v387
    %920 = vmatpush.msra.mxu0 %v383
    %921 = vmatpush.msra.mxu0 %v379
    %922 = vmatpush.msra.mxu0 %v375
    %923 = vmatpush.msra.mxu0 %v371
    %924 = vmatpush.msra.mxu0 %v367
    %925 = vmatpush.msra.mxu0 %v363
    %926 = vmatpush.msra.mxu0 %v359
    %927 = vmatpush.msra.mxu0 %v355
    %928 = vmatmul.f32.gmra.mxu0 %v882
    %v929 = vpop.f32.mrf.mxu0
    %v930 = vadd.f32 0.0, %v929
    %931 = vdwg.mxu0
    %932 = vmatpush.msra.mxu0 %v416
    %933 = vmatpush.msra.mxu0 %v412
    %934 = vmatpush.msra.mxu0 %v408
    %935 = vmatpush.msra.mxu0 %v404
    %936 = vmatpush.msra.mxu0 %v400
    %937 = vmatpush.msra.mxu0 %v396
    %938 = vmatpush.msra.mxu0 %v392
    %939 = vmatpush.msra.mxu0 %v388
    %940 = vmatpush.msra.mxu0 %v384
    %941 = vmatpush.msra.mxu0 %v380
    %942 = vmatpush.msra.mxu0 %v376
    %943 = vmatpush.msra.mxu0 %v372
    %944 = vmatpush.msra.mxu0 %v368
    %945 = vmatpush.msra.mxu0 %v364
    %946 = vmatpush.msra.mxu0 %v360
    %947 = vmatpush.msra.mxu0 %v356
    %948 = vmatmul.f32.gmra.mxu0 %v882
    %v949 = vpop.f32.mrf.mxu0
    %v950 = vadd.f32 0.0, %v949
    %951 = vdwg.mxu0
    %952 = vmatpush.msra.mxu0 %v417
    %953 = vmatpush.msra.mxu0 %v413
    %954 = vmatpush.msra.mxu0 %v409
    %955 = vmatpush.msra.mxu0 %v405
    %956 = vmatpush.msra.mxu0 %v401
    %957 = vmatpush.msra.mxu0 %v397
    %958 = vmatpush.msra.mxu0 %v393
    %959 = vmatpush.msra.mxu0 %v389
    %960 = vmatpush.msra.mxu0 %v385
    %961 = vmatpush.msra.mxu0 %v381
    %962 = vmatpush.msra.mxu0 %v377
    %963 = vmatpush.msra.mxu0 %v373
    %964 = vmatpush.msra.mxu0 %v369
    %965 = vmatpush.msra.mxu0 %v365
    %966 = vmatpush.msra.mxu0 %v361
    %967 = vmatpush.msra.mxu0 %v357
    %968 = vmatmul.f32.gmra.mxu0 %v882
    %v969 = vpop.f32.mrf.mxu0
    %v970 = vadd.f32 0.0, %v969
    %971 = vdwg.mxu0
    %v972 = vadd.f32 %v888, %v910
    %v973 = vadd.f32 %v889, %v930
    %v974 = vadd.f32 %v890, %v950
    %v975 = vadd.f32 %v891, %v970
    %v976 = vxor.u32 %v972, 2147483648
    %v977 = vmul.f32 %v976, 1.442695
    %v978 = vpow.pop %v977
    %v979 = vadd.f32 %v978, 1.0
    %v980 = vrcp.pop %v979
    %v981 = vmul.f32 %v979, %v980
    %v982 = vsub.f32 1.0, %v981
    %v983 = vmul.f32 %v980, %v982
    %v984 = vadd.f32 %v980, %v983
    %vm985 = vweird.f32 %v979
    %vm986 = vweird.f32 %v980
    %vm987 = vmor %vm985, %vm986
    %v988 = vsel %vm987, %v980, %v984
    %v989 = vand.u32 2147483647, %v979
    %vm990 = vcmp.eq.f32.partialorder %v989, 8.507059e+37
    %v991 = vand.u32 %v979, 2147483648
    %v992 = vor.u32 1.1754944e-38, %v991
    %v993 = vsel %vm990, %v992, %v988
    %v994 = vmul.f32 1.0, %v993
    %v995 = vxor.u32 %v973, 2147483648
    %v996 = vmul.f32 %v995, 1.442695
    %v997 = vpow.pop %v996
    %v998 = vadd.f32 %v997, 1.0
    %v999 = vrcp.pop %v998
    %v1000 = vmul.f32 %v998, %v999
    %v1001 = vsub.f32 1.0, %v1000
    %v1002 = vmul.f32 %v999, %v1001
    %v1003 = vadd.f32 %v999, %v1002
    %vm1004 = vweird.f32 %v998
    %vm1005 = vweird.f32 %v999
    %vm1006 = vmor %vm1004, %vm1005
    %v1007 = vsel %vm1006, %v999, %v1003
    %v1008 = vand.u32 2147483647, %v998
    %vm1009 = vcmp.eq.f32.partialorder %v1008, 8.507059e+37
    %v1010 = vand.u32 %v998, 2147483648
    %v1011 = vor.u32 1.1754944e-38, %v1010
    %v1012 = vsel %vm1009, %v1011, %v1007
    %v1013 = vmul.f32 1.0, %v1012
    %v1014 = vtanh.pop %v974
    %v1015 = vxor.u32 %v975, 2147483648
    %v1016 = vmul.f32 %v1015, 1.442695
    %v1017 = vpow.pop %v1016
    %v1018 = vadd.f32 %v1017, 1.0
    %v1019 = vrcp.pop %v1018
    %v1020 = vmul.f32 %v1018, %v1019
    %v1021 = vsub.f32 1.0, %v1020
    %v1022 = vmul.f32 %v1019, %v1021
    %v1023 = vadd.f32 %v1019, %v1022
    %vm1024 = vweird.f32 %v1018
    %vm1025 = vweird.f32 %v1019
    %vm1026 = vmor %vm1024, %vm1025
    %v1027 = vsel %vm1026, %v1019, %v1023
    %v1028 = vand.u32 2147483647, %v1018
    %vm1029 = vcmp.eq.f32.partialorder %v1028, 8.507059e+37
    %v1030 = vand.u32 %v1018, 2147483648
    %v1031 = vor.u32 1.1754944e-38, %v1030
    %v1032 = vsel %vm1029, %v1031, %v1027
    %v1033 = vmul.f32 1.0, %v1032
    %v1034 = vmul.f32 %v1013, %v880
    %v1035 = vmul.f32 %v994, %v1014
    %v1036 = vadd.f32 %v1034, %v1035
    %v1037 = vtanh.pop %v1036
    %v1038 = vmul.f32 %v1033, %v1037
    %s1039 = scalar_lea.vmem [#allocation3], 24
    %1040 = vst [vmem:[%s1039] sm:$0xff] %v1038
    %s1041 = smul.u32 4, 4
    %s1042 = smul.addr %s1041, 8
    %s1043 = scalar_lea.vmem [#allocation2], %s1042
    %v1044 = vld [vmem:[%s1043] sm:$0xff]
    %v1045 = vld [vmem:[%s1043 + $0x8] sm:$0xff]
    %v1046 = vld [vmem:[%s1043 + $0x10] sm:$0xff]
    %v1047 = vld [vmem:[%s1043 + $0x18] sm:$0xff]
    %1048 = vmatpush.msra.mxu0 %v414
    %1049 = vmatpush.msra.mxu0 %v410
    %1050 = vmatpush.msra.mxu0 %v406
    %1051 = vmatpush.msra.mxu0 %v402
    %1052 = vmatpush.msra.mxu0 %v398
    %1053 = vmatpush.msra.mxu0 %v394
    %1054 = vmatpush.msra.mxu0 %v390
    %1055 = vmatpush.msra.mxu0 %v386
    %1056 = vmatpush.msra.mxu0 %v382
    %1057 = vmatpush.msra.mxu0 %v378
    %1058 = vmatpush.msra.mxu0 %v374
    %1059 = vmatpush.msra.mxu0 %v370
    %1060 = vmatpush.msra.mxu0 %v366
    %1061 = vmatpush.msra.mxu0 %v362
    %1062 = vmatpush.msra.mxu0 %v358
    %1063 = vmatpush.msra.mxu0 %v354
    %1064 = vmatmul.f32.gmra.mxu0 %v1038
    %v1065 = vpop.f32.mrf.mxu0
    %v1066 = vadd.f32 0.0, %v1065
    %1067 = vdwg.mxu0
    %1068 = vmatpush.msra.mxu0 %v415
    %1069 = vmatpush.msra.mxu0 %v411
    %1070 = vmatpush.msra.mxu0 %v407
    %1071 = vmatpush.msra.mxu0 %v403
    %1072 = vmatpush.msra.mxu0 %v399
    %1073 = vmatpush.msra.mxu0 %v395
    %1074 = vmatpush.msra.mxu0 %v391
    %1075 = vmatpush.msra.mxu0 %v387
    %1076 = vmatpush.msra.mxu0 %v383
    %1077 = vmatpush.msra.mxu0 %v379
    %1078 = vmatpush.msra.mxu0 %v375
    %1079 = vmatpush.msra.mxu0 %v371
    %1080 = vmatpush.msra.mxu0 %v367
    %1081 = vmatpush.msra.mxu0 %v363
    %1082 = vmatpush.msra.mxu0 %v359
    %1083 = vmatpush.msra.mxu0 %v355
    %1084 = vmatmul.f32.gmra.mxu0 %v1038
    %v1085 = vpop.f32.mrf.mxu0
    %v1086 = vadd.f32 0.0, %v1085
    %1087 = vdwg.mxu0
    %1088 = vmatpush.msra.mxu0 %v416
    %1089 = vmatpush.msra.mxu0 %v412
    %1090 = vmatpush.msra.mxu0 %v408
    %1091 = vmatpush.msra.mxu0 %v404
    %1092 = vmatpush.msra.mxu0 %v400
    %1093 = vmatpush.msra.mxu0 %v396
    %1094 = vmatpush.msra.mxu0 %v392
    %1095 = vmatpush.msra.mxu0 %v388
    %1096 = vmatpush.msra.mxu0 %v384
    %1097 = vmatpush.msra.mxu0 %v380
    %1098 = vmatpush.msra.mxu0 %v376
    %1099 = vmatpush.msra.mxu0 %v372
    %1100 = vmatpush.msra.mxu0 %v368
    %1101 = vmatpush.msra.mxu0 %v364
    %1102 = vmatpush.msra.mxu0 %v360
    %1103 = vmatpush.msra.mxu0 %v356
    %1104 = vmatmul.f32.gmra.mxu0 %v1038
    %v1105 = vpop.f32.mrf.mxu0
    %v1106 = vadd.f32 0.0, %v1105
    %1107 = vdwg.mxu0
    %1108 = vmatpush.msra.mxu0 %v417
    %1109 = vmatpush.msra.mxu0 %v413
    %1110 = vmatpush.msra.mxu0 %v409
    %1111 = vmatpush.msra.mxu0 %v405
    %1112 = vmatpush.msra.mxu0 %v401
    %1113 = vmatpush.msra.mxu0 %v397
    %1114 = vmatpush.msra.mxu0 %v393
    %1115 = vmatpush.msra.mxu0 %v389
    %1116 = vmatpush.msra.mxu0 %v385
    %1117 = vmatpush.msra.mxu0 %v381
    %1118 = vmatpush.msra.mxu0 %v377
    %1119 = vmatpush.msra.mxu0 %v373
    %1120 = vmatpush.msra.mxu0 %v369
    %1121 = vmatpush.msra.mxu0 %v365
    %1122 = vmatpush.msra.mxu0 %v361
    %1123 = vmatpush.msra.mxu0 %v357
    %1124 = vmatmul.f32.gmra.mxu0 %v1038
    %v1125 = vpop.f32.mrf.mxu0
    %v1126 = vadd.f32 0.0, %v1125
    %1127 = vdwg.mxu0
    %v1128 = vadd.f32 %v1044, %v1066
    %v1129 = vadd.f32 %v1045, %v1086
    %v1130 = vadd.f32 %v1046, %v1106
    %v1131 = vadd.f32 %v1047, %v1126
    %v1132 = vxor.u32 %v1128, 2147483648
    %v1133 = vmul.f32 %v1132, 1.442695
    %v1134 = vpow.pop %v1133
    %v1135 = vadd.f32 %v1134, 1.0
    %v1136 = vrcp.pop %v1135
    %v1137 = vmul.f32 %v1135, %v1136
    %v1138 = vsub.f32 1.0, %v1137
    %v1139 = vmul.f32 %v1136, %v1138
    %v1140 = vadd.f32 %v1136, %v1139
    %vm1141 = vweird.f32 %v1135
    %vm1142 = vweird.f32 %v1136
    %vm1143 = vmor %vm1141, %vm1142
    %v1144 = vsel %vm1143, %v1136, %v1140
    %v1145 = vand.u32 2147483647, %v1135
    %vm1146 = vcmp.eq.f32.partialorder %v1145, 8.507059e+37
    %v1147 = vand.u32 %v1135, 2147483648
    %v1148 = vor.u32 1.1754944e-38, %v1147
    %v1149 = vsel %vm1146, %v1148, %v1144
    %v1150 = vmul.f32 1.0, %v1149
    %v1151 = vxor.u32 %v1129, 2147483648
    %v1152 = vmul.f32 %v1151, 1.442695
    %v1153 = vpow.pop %v1152
    %v1154 = vadd.f32 %v1153, 1.0
    %v1155 = vrcp.pop %v1154
    %v1156 = vmul.f32 %v1154, %v1155
    %v1157 = vsub.f32 1.0, %v1156
    %v1158 = vmul.f32 %v1155, %v1157
    %v1159 = vadd.f32 %v1155, %v1158
    %vm1160 = vweird.f32 %v1154
    %vm1161 = vweird.f32 %v1155
    %vm1162 = vmor %vm1160, %vm1161
    %v1163 = vsel %vm1162, %v1155, %v1159
    %v1164 = vand.u32 2147483647, %v1154
    %vm1165 = vcmp.eq.f32.partialorder %v1164, 8.507059e+37
    %v1166 = vand.u32 %v1154, 2147483648
    %v1167 = vor.u32 1.1754944e-38, %v1166
    %v1168 = vsel %vm1165, %v1167, %v1163
    %v1169 = vmul.f32 1.0, %v1168
    %v1170 = vtanh.pop %v1130
    %v1171 = vxor.u32 %v1131, 2147483648
    %v1172 = vmul.f32 %v1171, 1.442695
    %v1173 = vpow.pop %v1172
    %v1174 = vadd.f32 %v1173, 1.0
    %v1175 = vrcp.pop %v1174
    %v1176 = vmul.f32 %v1174, %v1175
    %v1177 = vsub.f32 1.0, %v1176
    %v1178 = vmul.f32 %v1175, %v1177
    %v1179 = vadd.f32 %v1175, %v1178
    %vm1180 = vweird.f32 %v1174
    %vm1181 = vweird.f32 %v1175
    %vm1182 = vmor %vm1180, %vm1181
    %v1183 = vsel %vm1182, %v1175, %v1179
    %v1184 = vand.u32 2147483647, %v1174
    %vm1185 = vcmp.eq.f32.partialorder %v1184, 8.507059e+37
    %v1186 = vand.u32 %v1174, 2147483648
    %v1187 = vor.u32 1.1754944e-38, %v1186
    %v1188 = vsel %vm1185, %v1187, %v1183
    %v1189 = vmul.f32 1.0, %v1188
    %v1190 = vmul.f32 %v1169, %v1036
    %v1191 = vmul.f32 %v1150, %v1170
    %v1192 = vadd.f32 %v1190, %v1191
    %v1193 = vtanh.pop %v1192
    %v1194 = vmul.f32 %v1189, %v1193
    %s1195 = scalar_lea.vmem [#allocation3], 32
    %1196 = vst [vmem:[%s1195] sm:$0xff] %v1194
    %s1197 = smul.u32 5, 4
    %s1198 = smul.addr %s1197, 8
    %s1199 = scalar_lea.vmem [#allocation2], %s1198
    %v1200 = vld [vmem:[%s1199] sm:$0xff]
    %v1201 = vld [vmem:[%s1199 + $0x8] sm:$0xff]
    %v1202 = vld [vmem:[%s1199 + $0x10] sm:$0xff]
    %v1203 = vld [vmem:[%s1199 + $0x18] sm:$0xff]
    %1204 = vmatpush.msra.mxu0 %v414
    %1205 = vmatpush.msra.mxu0 %v410
    %1206 = vmatpush.msra.mxu0 %v406
    %1207 = vmatpush.msra.mxu0 %v402
    %1208 = vmatpush.msra.mxu0 %v398
    %1209 = vmatpush.msra.mxu0 %v394
    %1210 = vmatpush.msra.mxu0 %v390
    %1211 = vmatpush.msra.mxu0 %v386
    %1212 = vmatpush.msra.mxu0 %v382
    %1213 = vmatpush.msra.mxu0 %v378
    %1214 = vmatpush.msra.mxu0 %v374
    %1215 = vmatpush.msra.mxu0 %v370
    %1216 = vmatpush.msra.mxu0 %v366
    %1217 = vmatpush.msra.mxu0 %v362
    %1218 = vmatpush.msra.mxu0 %v358
    %1219 = vmatpush.msra.mxu0 %v354
    %1220 = vmatmul.f32.gmra.mxu0 %v1194
    %v1221 = vpop.f32.mrf.mxu0
    %v1222 = vadd.f32 0.0, %v1221
    %1223 = vdwg.mxu0
    %1224 = vmatpush.msra.mxu0 %v415
    %1225 = vmatpush.msra.mxu0 %v411
    %1226 = vmatpush.msra.mxu0 %v407
    %1227 = vmatpush.msra.mxu0 %v403
    %1228 = vmatpush.msra.mxu0 %v399
    %1229 = vmatpush.msra.mxu0 %v395
    %1230 = vmatpush.msra.mxu0 %v391
    %1231 = vmatpush.msra.mxu0 %v387
    %1232 = vmatpush.msra.mxu0 %v383
    %1233 = vmatpush.msra.mxu0 %v379
    %1234 = vmatpush.msra.mxu0 %v375
    %1235 = vmatpush.msra.mxu0 %v371
    %1236 = vmatpush.msra.mxu0 %v367
    %1237 = vmatpush.msra.mxu0 %v363
    %1238 = vmatpush.msra.mxu0 %v359
    %1239 = vmatpush.msra.mxu0 %v355
    %1240 = vmatmul.f32.gmra.mxu0 %v1194
    %v1241 = vpop.f32.mrf.mxu0
    %v1242 = vadd.f32 0.0, %v1241
    %1243 = vdwg.mxu0
    %1244 = vmatpush.msra.mxu0 %v416
    %1245 = vmatpush.msra.mxu0 %v412
    %1246 = vmatpush.msra.mxu0 %v408
    %1247 = vmatpush.msra.mxu0 %v404
    %1248 = vmatpush.msra.mxu0 %v400
    %1249 = vmatpush.msra.mxu0 %v396
    %1250 = vmatpush.msra.mxu0 %v392
    %1251 = vmatpush.msra.mxu0 %v388
    %1252 = vmatpush.msra.mxu0 %v384
    %1253 = vmatpush.msra.mxu0 %v380
    %1254 = vmatpush.msra.mxu0 %v376
    %1255 = vmatpush.msra.mxu0 %v372
    %1256 = vmatpush.msra.mxu0 %v368
    %1257 = vmatpush.msra.mxu0 %v364
    %1258 = vmatpush.msra.mxu0 %v360
    %1259 = vmatpush.msra.mxu0 %v356
    %1260 = vmatmul.f32.gmra.mxu0 %v1194
    %v1261 = vpop.f32.mrf.mxu0
    %v1262 = vadd.f32 0.0, %v1261
    %1263 = vdwg.mxu0
    %1264 = vmatpush.msra.mxu0 %v417
    %1265 = vmatpush.msra.mxu0 %v413
    %1266 = vmatpush.msra.mxu0 %v409
    %1267 = vmatpush.msra.mxu0 %v405
    %1268 = vmatpush.msra.mxu0 %v401
    %1269 = vmatpush.msra.mxu0 %v397
    %1270 = vmatpush.msra.mxu0 %v393
    %1271 = vmatpush.msra.mxu0 %v389
    %1272 = vmatpush.msra.mxu0 %v385
    %1273 = vmatpush.msra.mxu0 %v381
    %1274 = vmatpush.msra.mxu0 %v377
    %1275 = vmatpush.msra.mxu0 %v373
    %1276 = vmatpush.msra.mxu0 %v369
    %1277 = vmatpush.msra.mxu0 %v365
    %1278 = vmatpush.msra.mxu0 %v361
    %1279 = vmatpush.msra.mxu0 %v357
    %1280 = vmatmul.f32.gmra.mxu0 %v1194
    %v1281 = vpop.f32.mrf.mxu0
    %v1282 = vadd.f32 0.0, %v1281
    %1283 = vdwg.mxu0
    %v1284 = vadd.f32 %v1200, %v1222
    %v1285 = vadd.f32 %v1201, %v1242
    %v1286 = vadd.f32 %v1202, %v1262
    %v1287 = vadd.f32 %v1203, %v1282
    %v1288 = vxor.u32 %v1284, 2147483648
    %v1289 = vmul.f32 %v1288, 1.442695
    %v1290 = vpow.pop %v1289
    %v1291 = vadd.f32 %v1290, 1.0
    %v1292 = vrcp.pop %v1291
    %v1293 = vmul.f32 %v1291, %v1292
    %v1294 = vsub.f32 1.0, %v1293
    %v1295 = vmul.f32 %v1292, %v1294
    %v1296 = vadd.f32 %v1292, %v1295
    %vm1297 = vweird.f32 %v1291
    %vm1298 = vweird.f32 %v1292
    %vm1299 = vmor %vm1297, %vm1298
    %v1300 = vsel %vm1299, %v1292, %v1296
    %v1301 = vand.u32 2147483647, %v1291
    %vm1302 = vcmp.eq.f32.partialorder %v1301, 8.507059e+37
    %v1303 = vand.u32 %v1291, 2147483648
    %v1304 = vor.u32 1.1754944e-38, %v1303
    %v1305 = vsel %vm1302, %v1304, %v1300
    %v1306 = vmul.f32 1.0, %v1305
    %v1307 = vxor.u32 %v1285, 2147483648
    %v1308 = vmul.f32 %v1307, 1.442695
    %v1309 = vpow.pop %v1308
    %v1310 = vadd.f32 %v1309, 1.0
    %v1311 = vrcp.pop %v1310
    %v1312 = vmul.f32 %v1310, %v1311
    %v1313 = vsub.f32 1.0, %v1312
    %v1314 = vmul.f32 %v1311, %v1313
    %v1315 = vadd.f32 %v1311, %v1314
    %vm1316 = vweird.f32 %v1310
    %vm1317 = vweird.f32 %v1311
    %vm1318 = vmor %vm1316, %vm1317
    %v1319 = vsel %vm1318, %v1311, %v1315
    %v1320 = vand.u32 2147483647, %v1310
    %vm1321 = vcmp.eq.f32.partialorder %v1320, 8.507059e+37
    %v1322 = vand.u32 %v1310, 2147483648
    %v1323 = vor.u32 1.1754944e-38, %v1322
    %v1324 = vsel %vm1321, %v1323, %v1319
    %v1325 = vmul.f32 1.0, %v1324
    %v1326 = vtanh.pop %v1286
    %v1327 = vxor.u32 %v1287, 2147483648
    %v1328 = vmul.f32 %v1327, 1.442695
    %v1329 = vpow.pop %v1328
    %v1330 = vadd.f32 %v1329, 1.0
    %v1331 = vrcp.pop %v1330
    %v1332 = vmul.f32 %v1330, %v1331
    %v1333 = vsub.f32 1.0, %v1332
    %v1334 = vmul.f32 %v1331, %v1333
    %v1335 = vadd.f32 %v1331, %v1334
    %vm1336 = vweird.f32 %v1330
    %vm1337 = vweird.f32 %v1331
    %vm1338 = vmor %vm1336, %vm1337
    %v1339 = vsel %vm1338, %v1331, %v1335
    %v1340 = vand.u32 2147483647, %v1330
    %vm1341 = vcmp.eq.f32.partialorder %v1340, 8.507059e+37
    %v1342 = vand.u32 %v1330, 2147483648
    %v1343 = vor.u32 1.1754944e-38, %v1342
    %v1344 = vsel %vm1341, %v1343, %v1339
    %v1345 = vmul.f32 1.0, %v1344
    %v1346 = vmul.f32 %v1325, %v1192
    %v1347 = vmul.f32 %v1306, %v1326
    %v1348 = vadd.f32 %v1346, %v1347
    %v1349 = vtanh.pop %v1348
    %v1350 = vmul.f32 %v1345, %v1349
    %s1351 = scalar_lea.vmem [#allocation3], 40
    %1352 = vst [vmem:[%s1351] sm:$0xff] %v1350
    %s1353 = smul.u32 6, 4
    %s1354 = smul.addr %s1353, 8
    %s1355 = scalar_lea.vmem [#allocation2], %s1354
    %v1356 = vld [vmem:[%s1355] sm:$0xff]
    %v1357 = vld [vmem:[%s1355 + $0x8] sm:$0xff]
    %v1358 = vld [vmem:[%s1355 + $0x10] sm:$0xff]
    %v1359 = vld [vmem:[%s1355 + $0x18] sm:$0xff]
    %1360 = vmatpush.msra.mxu0 %v414
    %1361 = vmatpush.msra.mxu0 %v410
    %1362 = vmatpush.msra.mxu0 %v406
    %1363 = vmatpush.msra.mxu0 %v402
    %1364 = vmatpush.msra.mxu0 %v398
    %1365 = vmatpush.msra.mxu0 %v394
    %1366 = vmatpush.msra.mxu0 %v390
    %1367 = vmatpush.msra.mxu0 %v386
    %1368 = vmatpush.msra.mxu0 %v382
    %1369 = vmatpush.msra.mxu0 %v378
    %1370 = vmatpush.msra.mxu0 %v374
    %1371 = vmatpush.msra.mxu0 %v370
    %1372 = vmatpush.msra.mxu0 %v366
    %1373 = vmatpush.msra.mxu0 %v362
    %1374 = vmatpush.msra.mxu0 %v358
    %1375 = vmatpush.msra.mxu0 %v354
    %1376 = vmatmul.f32.gmra.mxu0 %v1350
    %v1377 = vpop.f32.mrf.mxu0
    %v1378 = vadd.f32 0.0, %v1377
    %1379 = vdwg.mxu0
    %1380 = vmatpush.msra.mxu0 %v415
    %1381 = vmatpush.msra.mxu0 %v411
    %1382 = vmatpush.msra.mxu0 %v407
    %1383 = vmatpush.msra.mxu0 %v403
    %1384 = vmatpush.msra.mxu0 %v399
    %1385 = vmatpush.msra.mxu0 %v395
    %1386 = vmatpush.msra.mxu0 %v391
    %1387 = vmatpush.msra.mxu0 %v387
    %1388 = vmatpush.msra.mxu0 %v383
    %1389 = vmatpush.msra.mxu0 %v379
    %1390 = vmatpush.msra.mxu0 %v375
    %1391 = vmatpush.msra.mxu0 %v371
    %1392 = vmatpush.msra.mxu0 %v367
    %1393 = vmatpush.msra.mxu0 %v363
    %1394 = vmatpush.msra.mxu0 %v359
    %1395 = vmatpush.msra.mxu0 %v355
    %1396 = vmatmul.f32.gmra.mxu0 %v1350
    %v1397 = vpop.f32.mrf.mxu0
    %v1398 = vadd.f32 0.0, %v1397
    %1399 = vdwg.mxu0
    %1400 = vmatpush.msra.mxu0 %v416
    %1401 = vmatpush.msra.mxu0 %v412
    %1402 = vmatpush.msra.mxu0 %v408
    %1403 = vmatpush.msra.mxu0 %v404
    %1404 = vmatpush.msra.mxu0 %v400
    %1405 = vmatpush.msra.mxu0 %v396
    %1406 = vmatpush.msra.mxu0 %v392
    %1407 = vmatpush.msra.mxu0 %v388
    %1408 = vmatpush.msra.mxu0 %v384
    %1409 = vmatpush.msra.mxu0 %v380
    %1410 = vmatpush.msra.mxu0 %v376
    %1411 = vmatpush.msra.mxu0 %v372
    %1412 = vmatpush.msra.mxu0 %v368
    %1413 = vmatpush.msra.mxu0 %v364
    %1414 = vmatpush.msra.mxu0 %v360
    %1415 = vmatpush.msra.mxu0 %v356
    %1416 = vmatmul.f32.gmra.mxu0 %v1350
    %v1417 = vpop.f32.mrf.mxu0
    %v1418 = vadd.f32 0.0, %v1417
    %1419 = vdwg.mxu0
    %1420 = vmatpush.msra.mxu0 %v417
    %1421 = vmatpush.msra.mxu0 %v413
    %1422 = vmatpush.msra.mxu0 %v409
    %1423 = vmatpush.msra.mxu0 %v405
    %1424 = vmatpush.msra.mxu0 %v401
    %1425 = vmatpush.msra.mxu0 %v397
    %1426 = vmatpush.msra.mxu0 %v393
    %1427 = vmatpush.msra.mxu0 %v389
    %1428 = vmatpush.msra.mxu0 %v385
    %1429 = vmatpush.msra.mxu0 %v381
    %1430 = vmatpush.msra.mxu0 %v377
    %1431 = vmatpush.msra.mxu0 %v373
    %1432 = vmatpush.msra.mxu0 %v369
    %1433 = vmatpush.msra.mxu0 %v365
    %1434 = vmatpush.msra.mxu0 %v361
    %1435 = vmatpush.msra.mxu0 %v357
    %1436 = vmatmul.f32.gmra.mxu0 %v1350
    %v1437 = vpop.f32.mrf.mxu0
    %v1438 = vadd.f32 0.0, %v1437
    %1439 = vdwg.mxu0
    %v1440 = vadd.f32 %v1356, %v1378
    %v1441 = vadd.f32 %v1357, %v1398
    %v1442 = vadd.f32 %v1358, %v1418
    %v1443 = vadd.f32 %v1359, %v1438
    %v1444 = vxor.u32 %v1440, 2147483648
    %v1445 = vmul.f32 %v1444, 1.442695
    %v1446 = vpow.pop %v1445
    %v1447 = vadd.f32 %v1446, 1.0
    %v1448 = vrcp.pop %v1447
    %v1449 = vmul.f32 %v1447, %v1448
    %v1450 = vsub.f32 1.0, %v1449
    %v1451 = vmul.f32 %v1448, %v1450
    %v1452 = vadd.f32 %v1448, %v1451
    %vm1453 = vweird.f32 %v1447
    %vm1454 = vweird.f32 %v1448
    %vm1455 = vmor %vm1453, %vm1454
    %v1456 = vsel %vm1455, %v1448, %v1452
    %v1457 = vand.u32 2147483647, %v1447
    %vm1458 = vcmp.eq.f32.partialorder %v1457, 8.507059e+37
    %v1459 = vand.u32 %v1447, 2147483648
    %v1460 = vor.u32 1.1754944e-38, %v1459
    %v1461 = vsel %vm1458, %v1460, %v1456
    %v1462 = vmul.f32 1.0, %v1461
    %v1463 = vxor.u32 %v1441, 2147483648
    %v1464 = vmul.f32 %v1463, 1.442695
    %v1465 = vpow.pop %v1464
    %v1466 = vadd.f32 %v1465, 1.0
    %v1467 = vrcp.pop %v1466
    %v1468 = vmul.f32 %v1466, %v1467
    %v1469 = vsub.f32 1.0, %v1468
    %v1470 = vmul.f32 %v1467, %v1469
    %v1471 = vadd.f32 %v1467, %v1470
    %vm1472 = vweird.f32 %v1466
    %vm1473 = vweird.f32 %v1467
    %vm1474 = vmor %vm1472, %vm1473
    %v1475 = vsel %vm1474, %v1467, %v1471
    %v1476 = vand.u32 2147483647, %v1466
    %vm1477 = vcmp.eq.f32.partialorder %v1476, 8.507059e+37
    %v1478 = vand.u32 %v1466, 2147483648
    %v1479 = vor.u32 1.1754944e-38, %v1478
    %v1480 = vsel %vm1477, %v1479, %v1475
    %v1481 = vmul.f32 1.0, %v1480
    %v1482 = vtanh.pop %v1442
    %v1483 = vxor.u32 %v1443, 2147483648
    %v1484 = vmul.f32 %v1483, 1.442695
    %v1485 = vpow.pop %v1484
    %v1486 = vadd.f32 %v1485, 1.0
    %v1487 = vrcp.pop %v1486
    %v1488 = vmul.f32 %v1486, %v1487
    %v1489 = vsub.f32 1.0, %v1488
    %v1490 = vmul.f32 %v1487, %v1489
    %v1491 = vadd.f32 %v1487, %v1490
    %vm1492 = vweird.f32 %v1486
    %vm1493 = vweird.f32 %v1487
    %vm1494 = vmor %vm1492, %vm1493
    %v1495 = vsel %vm1494, %v1487, %v1491
    %v1496 = vand.u32 2147483647, %v1486
    %vm1497 = vcmp.eq.f32.partialorder %v1496, 8.507059e+37
    %v1498 = vand.u32 %v1486, 2147483648
    %v1499 = vor.u32 1.1754944e-38, %v1498
    %v1500 = vsel %vm1497, %v1499, %v1495
    %v1501 = vmul.f32 1.0, %v1500
    %v1502 = vmul.f32 %v1481, %v1348
    %v1503 = vmul.f32 %v1462, %v1482
    %v1504 = vadd.f32 %v1502, %v1503
    %v1505 = vtanh.pop %v1504
    %v1506 = vmul.f32 %v1501, %v1505
    %s1507 = scalar_lea.vmem [#allocation3], 48
    %1508 = vst [vmem:[%s1507] sm:$0xff] %v1506
    %s1509 = smul.u32 7, 4
    %s1510 = smul.addr %s1509, 8
    %s1511 = scalar_lea.vmem [#allocation2], %s1510
    %v1512 = vld [vmem:[%s1511] sm:$0xff]
    %v1513 = vld [vmem:[%s1511 + $0x8] sm:$0xff]
    %v1514 = vld [vmem:[%s1511 + $0x10] sm:$0xff]
    %v1515 = vld [vmem:[%s1511 + $0x18] sm:$0xff]
    %1516 = vmatpush.msra.mxu0 %v414
    %1517 = vmatpush.msra.mxu0 %v410
    %1518 = vmatpush.msra.mxu0 %v406
    %1519 = vmatpush.msra.mxu0 %v402
    %1520 = vmatpush.msra.mxu0 %v398
    %1521 = vmatpush.msra.mxu0 %v394
    %1522 = vmatpush.msra.mxu0 %v390
    %1523 = vmatpush.msra.mxu0 %v386
    %1524 = vmatpush.msra.mxu0 %v382
    %1525 = vmatpush.msra.mxu0 %v378
    %1526 = vmatpush.msra.mxu0 %v374
    %1527 = vmatpush.msra.mxu0 %v370
    %1528 = vmatpush.msra.mxu0 %v366
    %1529 = vmatpush.msra.mxu0 %v362
    %1530 = vmatpush.msra.mxu0 %v358
    %1531 = vmatpush.msra.mxu0 %v354
    %1532 = vmatmul.f32.gmra.mxu0 %v1506
    %v1533 = vpop.f32.mrf.mxu0
    %v1534 = vadd.f32 0.0, %v1533
    %1535 = vdwg.mxu0
    %1536 = vmatpush.msra.mxu0 %v415
    %1537 = vmatpush.msra.mxu0 %v411
    %1538 = vmatpush.msra.mxu0 %v407
    %1539 = vmatpush.msra.mxu0 %v403
    %1540 = vmatpush.msra.mxu0 %v399
    %1541 = vmatpush.msra.mxu0 %v395
    %1542 = vmatpush.msra.mxu0 %v391
    %1543 = vmatpush.msra.mxu0 %v387
    %1544 = vmatpush.msra.mxu0 %v383
    %1545 = vmatpush.msra.mxu0 %v379
    %1546 = vmatpush.msra.mxu0 %v375
    %1547 = vmatpush.msra.mxu0 %v371
    %1548 = vmatpush.msra.mxu0 %v367
    %1549 = vmatpush.msra.mxu0 %v363
    %1550 = vmatpush.msra.mxu0 %v359
    %1551 = vmatpush.msra.mxu0 %v355
    %1552 = vmatmul.f32.gmra.mxu0 %v1506
    %v1553 = vpop.f32.mrf.mxu0
    %v1554 = vadd.f32 0.0, %v1553
    %1555 = vdwg.mxu0
    %1556 = vmatpush.msra.mxu0 %v416
    %1557 = vmatpush.msra.mxu0 %v412
    %1558 = vmatpush.msra.mxu0 %v408
    %1559 = vmatpush.msra.mxu0 %v404
    %1560 = vmatpush.msra.mxu0 %v400
    %1561 = vmatpush.msra.mxu0 %v396
    %1562 = vmatpush.msra.mxu0 %v392
    %1563 = vmatpush.msra.mxu0 %v388
    %1564 = vmatpush.msra.mxu0 %v384
    %1565 = vmatpush.msra.mxu0 %v380
    %1566 = vmatpush.msra.mxu0 %v376
    %1567 = vmatpush.msra.mxu0 %v372
    %1568 = vmatpush.msra.mxu0 %v368
    %1569 = vmatpush.msra.mxu0 %v364
    %1570 = vmatpush.msra.mxu0 %v360
    %1571 = vmatpush.msra.mxu0 %v356
    %1572 = vmatmul.f32.gmra.mxu0 %v1506
    %v1573 = vpop.f32.mrf.mxu0
    %v1574 = vadd.f32 0.0, %v1573
    %1575 = vdwg.mxu0
    %1576 = vmatpush.msra.mxu0 %v417
    %1577 = vmatpush.msra.mxu0 %v413
    %1578 = vmatpush.msra.mxu0 %v409
    %1579 = vmatpush.msra.mxu0 %v405
    %1580 = vmatpush.msra.mxu0 %v401
    %1581 = vmatpush.msra.mxu0 %v397
    %1582 = vmatpush.msra.mxu0 %v393
    %1583 = vmatpush.msra.mxu0 %v389
    %1584 = vmatpush.msra.mxu0 %v385
    %1585 = vmatpush.msra.mxu0 %v381
    %1586 = vmatpush.msra.mxu0 %v377
    %1587 = vmatpush.msra.mxu0 %v373
    %1588 = vmatpush.msra.mxu0 %v369
    %1589 = vmatpush.msra.mxu0 %v365
    %1590 = vmatpush.msra.mxu0 %v361
    %1591 = vmatpush.msra.mxu0 %v357
    %1592 = vmatmul.f32.gmra.mxu0 %v1506
    %v1593 = vpop.f32.mrf.mxu0
    %v1594 = vadd.f32 0.0, %v1593
    %1595 = vdwg.mxu0
    %v1596 = vadd.f32 %v1512, %v1534
    %v1597 = vadd.f32 %v1513, %v1554
    %v1598 = vadd.f32 %v1514, %v1574
    %v1599 = vadd.f32 %v1515, %v1594
    %v1600 = vxor.u32 %v1596, 2147483648
    %v1601 = vmul.f32 %v1600, 1.442695
    %v1602 = vpow.pop %v1601
    %v1603 = vadd.f32 %v1602, 1.0
    %v1604 = vrcp.pop %v1603
    %v1605 = vmul.f32 %v1603, %v1604
    %v1606 = vsub.f32 1.0, %v1605
    %v1607 = vmul.f32 %v1604, %v1606
    %v1608 = vadd.f32 %v1604, %v1607
    %vm1609 = vweird.f32 %v1603
    %vm1610 = vweird.f32 %v1604
    %vm1611 = vmor %vm1609, %vm1610
    %v1612 = vsel %vm1611, %v1604, %v1608
    %v1613 = vand.u32 2147483647, %v1603
    %vm1614 = vcmp.eq.f32.partialorder %v1613, 8.507059e+37
    %v1615 = vand.u32 %v1603, 2147483648
    %v1616 = vor.u32 1.1754944e-38, %v1615
    %v1617 = vsel %vm1614, %v1616, %v1612
    %v1618 = vmul.f32 1.0, %v1617
    %v1619 = vxor.u32 %v1597, 2147483648
    %v1620 = vmul.f32 %v1619, 1.442695
    %v1621 = vpow.pop %v1620
    %v1622 = vadd.f32 %v1621, 1.0
    %v1623 = vrcp.pop %v1622
    %v1624 = vmul.f32 %v1622, %v1623
    %v1625 = vsub.f32 1.0, %v1624
    %v1626 = vmul.f32 %v1623, %v1625
    %v1627 = vadd.f32 %v1623, %v1626
    %vm1628 = vweird.f32 %v1622
    %vm1629 = vweird.f32 %v1623
    %vm1630 = vmor %vm1628, %vm1629
    %v1631 = vsel %vm1630, %v1623, %v1627
    %v1632 = vand.u32 2147483647, %v1622
    %vm1633 = vcmp.eq.f32.partialorder %v1632, 8.507059e+37
    %v1634 = vand.u32 %v1622, 2147483648
    %v1635 = vor.u32 1.1754944e-38, %v1634
    %v1636 = vsel %vm1633, %v1635, %v1631
    %v1637 = vmul.f32 1.0, %v1636
    %v1638 = vtanh.pop %v1598
    %v1639 = vxor.u32 %v1599, 2147483648
    %v1640 = vmul.f32 %v1639, 1.442695
    %v1641 = vpow.pop %v1640
    %v1642 = vadd.f32 %v1641, 1.0
    %v1643 = vrcp.pop %v1642
    %v1644 = vmul.f32 %v1642, %v1643
    %v1645 = vsub.f32 1.0, %v1644
    %v1646 = vmul.f32 %v1643, %v1645
    %v1647 = vadd.f32 %v1643, %v1646
    %vm1648 = vweird.f32 %v1642
    %vm1649 = vweird.f32 %v1643
    %vm1650 = vmor %vm1648, %vm1649
    %v1651 = vsel %vm1650, %v1643, %v1647
    %v1652 = vand.u32 2147483647, %v1642
    %vm1653 = vcmp.eq.f32.partialorder %v1652, 8.507059e+37
    %v1654 = vand.u32 %v1642, 2147483648
    %v1655 = vor.u32 1.1754944e-38, %v1654
    %v1656 = vsel %vm1653, %v1655, %v1651
    %v1657 = vmul.f32 1.0, %v1656
    %v1658 = vmul.f32 %v1637, %v1504
    %v1659 = vmul.f32 %v1618, %v1638
    %v1660 = vadd.f32 %v1658, %v1659
    %v1661 = vtanh.pop %v1660
    %v1662 = vmul.f32 %v1657, %v1661
    %s1663 = scalar_lea.vmem [#allocation3], 56
    %1664 = vst [vmem:[%s1663] sm:$0xff] %v1662
    %v1665 = vld [vmem:[#allocation3] sm:$0xff]
    %v1666 = vld [vmem:[#allocation3 + $0x8] sm:$0xff]
    %v1667 = vld [vmem:[#allocation3 + $0x10] sm:$0xff]
    %v1668 = vld [vmem:[#allocation3 + $0x18] sm:$0xff]
    %v1669 = vld [vmem:[#allocation3 + $0x20] sm:$0xff]
    %v1670 = vld [vmem:[#allocation3 + $0x28] sm:$0xff]
    %v1671 = vld [vmem:[#allocation3 + $0x30] sm:$0xff]
    %v1672 = vld [vmem:[#allocation3 + $0x38] sm:$0xff]
    %v1673 = vld [vmem:[#allocation6] sm:$0xff]
    %v1674 = vld [vmem:[#allocation6 + $0x8] sm:$0xff]
    %v1675 = vld [vmem:[#allocation6 + $0x10] sm:$0xff]
    %v1676 = vld [vmem:[#allocation6 + $0x18] sm:$0xff]
    %v1677 = vld [vmem:[#allocation6 + $0x20] sm:$0xff]
    %v1678 = vld [vmem:[#allocation6 + $0x28] sm:$0xff]
    %v1679 = vld [vmem:[#allocation6 + $0x30] sm:$0xff]
    %v1680 = vld [vmem:[#allocation6 + $0x38] sm:$0xff]
    %v1681 = vld [vmem:[#allocation6 + $0x40] sm:$0xff]
    %v1682 = vld [vmem:[#allocation6 + $0x48] sm:$0xff]
    %v1683 = vld [vmem:[#allocation6 + $0x50] sm:$0xff]
    %v1684 = vld [vmem:[#allocation6 + $0x58] sm:$0xff]
    %v1685 = vld [vmem:[#allocation6 + $0x60] sm:$0xff]
    %v1686 = vld [vmem:[#allocation6 + $0x68] sm:$0xff]
    %v1687 = vld [vmem:[#allocation6 + $0x70] sm:$0xff]
    %v1688 = vld [vmem:[#allocation6 + $0x78] sm:$0xff]
    %v1689 = vld [vmem:[#allocation6 + $0x80] sm:$0xff]
    %v1690 = vld [vmem:[#allocation6 + $0x88] sm:$0xff]
    %v1691 = vld [vmem:[#allocation6 + $0x90] sm:$0xff]
    %v1692 = vld [vmem:[#allocation6 + $0x98] sm:$0xff]
    %v1693 = vld [vmem:[#allocation6 + $0xa0] sm:$0xff]
    %v1694 = vld [vmem:[#allocation6 + $0xa8] sm:$0xff]
    %v1695 = vld [vmem:[#allocation6 + $0xb0] sm:$0xff]
    %v1696 = vld [vmem:[#allocation6 + $0xb8] sm:$0xff]
    %v1697 = vld [vmem:[#allocation6 + $0xc0] sm:$0xff]
    %v1698 = vld [vmem:[#allocation6 + $0xc8] sm:$0xff]
    %v1699 = vld [vmem:[#allocation6 + $0xd0] sm:$0xff]
    %v1700 = vld [vmem:[#allocation6 + $0xd8] sm:$0xff]
    %v1701 = vld [vmem:[#allocation6 + $0xe0] sm:$0xff]
    %v1702 = vld [vmem:[#allocation6 + $0xe8] sm:$0xff]
    %v1703 = vld [vmem:[#allocation6 + $0xf0] sm:$0xff]
    %v1704 = vld [vmem:[#allocation6 + $0xf8] sm:$0xff]
    %v1705 = vld [vmem:[#allocation6 + $0x100] sm:$0xff]
    %v1706 = vld [vmem:[#allocation6 + $0x108] sm:$0xff]
    %v1707 = vld [vmem:[#allocation6 + $0x110] sm:$0xff]
    %v1708 = vld [vmem:[#allocation6 + $0x118] sm:$0xff]
    %v1709 = vld [vmem:[#allocation6 + $0x120] sm:$0xff]
    %v1710 = vld [vmem:[#allocation6 + $0x128] sm:$0xff]
    %v1711 = vld [vmem:[#allocation6 + $0x130] sm:$0xff]
    %v1712 = vld [vmem:[#allocation6 + $0x138] sm:$0xff]
    %v1713 = vld [vmem:[#allocation6 + $0x140] sm:$0xff]
    %v1714 = vld [vmem:[#allocation6 + $0x148] sm:$0xff]
    %v1715 = vld [vmem:[#allocation6 + $0x150] sm:$0xff]
    %v1716 = vld [vmem:[#allocation6 + $0x158] sm:$0xff]
    %v1717 = vld [vmem:[#allocation6 + $0x160] sm:$0xff]
    %v1718 = vld [vmem:[#allocation6 + $0x168] sm:$0xff]
    %v1719 = vld [vmem:[#allocation6 + $0x170] sm:$0xff]
    %v1720 = vld [vmem:[#allocation6 + $0x178] sm:$0xff]
    %v1721 = vld [vmem:[#allocation6 + $0x180] sm:$0xff]
    %v1722 = vld [vmem:[#allocation6 + $0x188] sm:$0xff]
    %v1723 = vld [vmem:[#allocation6 + $0x190] sm:$0xff]
    %v1724 = vld [vmem:[#allocation6 + $0x198] sm:$0xff]
    %v1725 = vld [vmem:[#allocation6 + $0x1a0] sm:$0xff]
    %v1726 = vld [vmem:[#allocation6 + $0x1a8] sm:$0xff]
    %v1727 = vld [vmem:[#allocation6 + $0x1b0] sm:$0xff]
    %v1728 = vld [vmem:[#allocation6 + $0x1b8] sm:$0xff]
    %v1729 = vld [vmem:[#allocation6 + $0x1c0] sm:$0xff]
    %v1730 = vld [vmem:[#allocation6 + $0x1c8] sm:$0xff]
    %v1731 = vld [vmem:[#allocation6 + $0x1d0] sm:$0xff]
    %v1732 = vld [vmem:[#allocation6 + $0x1d8] sm:$0xff]
    %v1733 = vld [vmem:[#allocation6 + $0x1e0] sm:$0xff]
    %v1734 = vld [vmem:[#allocation6 + $0x1e8] sm:$0xff]
    %v1735 = vld [vmem:[#allocation6 + $0x1f0] sm:$0xff]
    %v1736 = vld [vmem:[#allocation6 + $0x1f8] sm:$0xff]
    %v1737 = vld [vmem:[%s6] sm:$0xf]
    %v1739 = vperm.slane %v1737, 0
    %v1740 = vperm.slane %v1737, 1
    %v1741 = vperm.slane %v1737, 2
    %v1742 = vperm.slane %v1737, 3
    %1747 = vmatpush.msra.mxu0 %v1733
    %1748 = vmatpush.msra.mxu0 %v1729
    %1749 = vmatpush.msra.mxu0 %v1725
    %1750 = vmatpush.msra.mxu0 %v1721
    %1751 = vmatpush.msra.mxu0 %v1717
    %1752 = vmatpush.msra.mxu0 %v1713
    %1753 = vmatpush.msra.mxu0 %v1709
    %1754 = vmatpush.msra.mxu0 %v1705
    %1755 = vmatpush.msra.mxu0 %v1701
    %1756 = vmatpush.msra.mxu0 %v1697
    %1757 = vmatpush.msra.mxu0 %v1693
    %1758 = vmatpush.msra.mxu0 %v1689
    %1759 = vmatpush.msra.mxu0 %v1685
    %1760 = vmatpush.msra.mxu0 %v1681
    %1761 = vmatpush.msra.mxu0 %v1677
    %1762 = vmatpush.msra.mxu0 %v1673
    %1763 = vmatmul.f32.gmra.mxu0 %v1665
    %v1764 = vpop.f32.mrf.mxu0
    %v1765 = vadd.f32 %v1739, %v1764
    %1766 = vmatmul.f32.gmra.mxu0 %v1666
    %v1767 = vpop.f32.mrf.mxu0
    %v1768 = vadd.f32 %v1739, %v1767
    %1769 = vmatmul.f32.gmra.mxu0 %v1667
    %v1770 = vpop.f32.mrf.mxu0
    %v1771 = vadd.f32 %v1739, %v1770
    %1772 = vmatmul.f32.gmra.mxu0 %v1668
    %v1773 = vpop.f32.mrf.mxu0
    %v1774 = vadd.f32 %v1739, %v1773
    %1775 = vmatmul.f32.gmra.mxu0 %v1669
    %v1776 = vpop.f32.mrf.mxu0
    %v1777 = vadd.f32 %v1739, %v1776
    %1778 = vmatmul.f32.gmra.mxu0 %v1670
    %v1779 = vpop.f32.mrf.mxu0
    %v1780 = vadd.f32 %v1739, %v1779
    %1781 = vmatmul.f32.gmra.mxu0 %v1671
    %v1782 = vpop.f32.mrf.mxu0
    %v1783 = vadd.f32 %v1739, %v1782
    %1784 = vmatmul.f32.gmra.mxu0 %v1672
    %v1785 = vpop.f32.mrf.mxu0
    %v1786 = vadd.f32 %v1739, %v1785
    %1787 = vdwg.mxu0
    %1788 = vmatpush.msra.mxu0 %v1734
    %1789 = vmatpush.msra.mxu0 %v1730
    %1790 = vmatpush.msra.mxu0 %v1726
    %1791 = vmatpush.msra.mxu0 %v1722
    %1792 = vmatpush.msra.mxu0 %v1718
    %1793 = vmatpush.msra.mxu0 %v1714
    %1794 = vmatpush.msra.mxu0 %v1710
    %1795 = vmatpush.msra.mxu0 %v1706
    %1796 = vmatpush.msra.mxu0 %v1702
    %1797 = vmatpush.msra.mxu0 %v1698
    %1798 = vmatpush.msra.mxu0 %v1694
    %1799 = vmatpush.msra.mxu0 %v1690
    %1800 = vmatpush.msra.mxu0 %v1686
    %1801 = vmatpush.msra.mxu0 %v1682
    %1802 = vmatpush.msra.mxu0 %v1678
    %1803 = vmatpush.msra.mxu0 %v1674
    %1804 = vmatmul.f32.gmra.mxu0 %v1665
    %v1805 = vpop.f32.mrf.mxu0
    %v1806 = vadd.f32 %v1740, %v1805
    %1807 = vmatmul.f32.gmra.mxu0 %v1666
    %v1808 = vpop.f32.mrf.mxu0
    %v1809 = vadd.f32 %v1740, %v1808
    %1810 = vmatmul.f32.gmra.mxu0 %v1667
    %v1811 = vpop.f32.mrf.mxu0
    %v1812 = vadd.f32 %v1740, %v1811
    %1813 = vmatmul.f32.gmra.mxu0 %v1668
    %v1814 = vpop.f32.mrf.mxu0
    %v1815 = vadd.f32 %v1740, %v1814
    %1816 = vmatmul.f32.gmra.mxu0 %v1669
    %v1817 = vpop.f32.mrf.mxu0
    %v1818 = vadd.f32 %v1740, %v1817
    %1819 = vmatmul.f32.gmra.mxu0 %v1670
    %v1820 = vpop.f32.mrf.mxu0
    %v1821 = vadd.f32 %v1740, %v1820
    %1822 = vmatmul.f32.gmra.mxu0 %v1671
    %v1823 = vpop.f32.mrf.mxu0
    %v1824 = vadd.f32 %v1740, %v1823
    %1825 = vmatmul.f32.gmra.mxu0 %v1672
    %v1826 = vpop.f32.mrf.mxu0
    %v1827 = vadd.f32 %v1740, %v1826
    %1828 = vdwg.mxu0
    %1829 = vmatpush.msra.mxu0 %v1735
    %1830 = vmatpush.msra.mxu0 %v1731
    %1831 = vmatpush.msra.mxu0 %v1727
    %1832 = vmatpush.msra.mxu0 %v1723
    %1833 = vmatpush.msra.mxu0 %v1719
    %1834 = vmatpush.msra.mxu0 %v1715
    %1835 = vmatpush.msra.mxu0 %v1711
    %1836 = vmatpush.msra.mxu0 %v1707
    %1837 = vmatpush.msra.mxu0 %v1703
    %1838 = vmatpush.msra.mxu0 %v1699
    %1839 = vmatpush.msra.mxu0 %v1695
    %1840 = vmatpush.msra.mxu0 %v1691
    %1841 = vmatpush.msra.mxu0 %v1687
    %1842 = vmatpush.msra.mxu0 %v1683
    %1843 = vmatpush.msra.mxu0 %v1679
    %1844 = vmatpush.msra.mxu0 %v1675
    %1845 = vmatmul.f32.gmra.mxu0 %v1665
    %v1846 = vpop.f32.mrf.mxu0
    %v1847 = vadd.f32 %v1741, %v1846
    %1848 = vmatmul.f32.gmra.mxu0 %v1666
    %v1849 = vpop.f32.mrf.mxu0
    %v1850 = vadd.f32 %v1741, %v1849
    %1851 = vmatmul.f32.gmra.mxu0 %v1667
    %v1852 = vpop.f32.mrf.mxu0
    %v1853 = vadd.f32 %v1741, %v1852
    %1854 = vmatmul.f32.gmra.mxu0 %v1668
    %v1855 = vpop.f32.mrf.mxu0
    %v1856 = vadd.f32 %v1741, %v1855
    %1857 = vmatmul.f32.gmra.mxu0 %v1669
    %v1858 = vpop.f32.mrf.mxu0
    %v1859 = vadd.f32 %v1741, %v1858
    %1860 = vmatmul.f32.gmra.mxu0 %v1670
    %v1861 = vpop.f32.mrf.mxu0
    %v1862 = vadd.f32 %v1741, %v1861
    %1863 = vmatmul.f32.gmra.mxu0 %v1671
    %v1864 = vpop.f32.mrf.mxu0
    %v1865 = vadd.f32 %v1741, %v1864
    %1866 = vmatmul.f32.gmra.mxu0 %v1672
    %v1867 = vpop.f32.mrf.mxu0
    %v1868 = vadd.f32 %v1741, %v1867
    %1869 = vdwg.mxu0
    %1870 = vmatpush.msra.mxu0 %v1736
    %1871 = vmatpush.msra.mxu0 %v1732
    %1872 = vmatpush.msra.mxu0 %v1728
    %1873 = vmatpush.msra.mxu0 %v1724
    %1874 = vmatpush.msra.mxu0 %v1720
    %1875 = vmatpush.msra.mxu0 %v1716
    %1876 = vmatpush.msra.mxu0 %v1712
    %1877 = vmatpush.msra.mxu0 %v1708
    %1878 = vmatpush.msra.mxu0 %v1704
    %1879 = vmatpush.msra.mxu0 %v1700
    %1880 = vmatpush.msra.mxu0 %v1696
    %1881 = vmatpush.msra.mxu0 %v1692
    %1882 = vmatpush.msra.mxu0 %v1688
    %1883 = vmatpush.msra.mxu0 %v1684
    %1884 = vmatpush.msra.mxu0 %v1680
    %1885 = vmatpush.msra.mxu0 %v1676
    %1886 = vmatmul.f32.gmra.mxu0 %v1665
    %v1887 = vpop.f32.mrf.mxu0
    %v1888 = vadd.f32 %v1742, %v1887
    %1889 = vmatmul.f32.gmra.mxu0 %v1666
    %v1890 = vpop.f32.mrf.mxu0
    %v1891 = vadd.f32 %v1742, %v1890
    %1892 = vmatmul.f32.gmra.mxu0 %v1667
    %v1893 = vpop.f32.mrf.mxu0
    %v1894 = vadd.f32 %v1742, %v1893
    %1895 = vmatmul.f32.gmra.mxu0 %v1668
    %v1896 = vpop.f32.mrf.mxu0
    %v1897 = vadd.f32 %v1742, %v1896
    %1898 = vmatmul.f32.gmra.mxu0 %v1669
    %v1899 = vpop.f32.mrf.mxu0
    %v1900 = vadd.f32 %v1742, %v1899
    %1901 = vmatmul.f32.gmra.mxu0 %v1670
    %v1902 = vpop.f32.mrf.mxu0
    %v1903 = vadd.f32 %v1742, %v1902
    %1904 = vmatmul.f32.gmra.mxu0 %v1671
    %v1905 = vpop.f32.mrf.mxu0
    %v1906 = vadd.f32 %v1742, %v1905
    %1907 = vmatmul.f32.gmra.mxu0 %v1672
    %v1908 = vpop.f32.mrf.mxu0
    %v1909 = vadd.f32 %v1742, %v1908
    %1910 = vdwg.mxu0
    %1911 = vst [vmem:[#allocation2] sm:$0xff] %v1765
    %1912 = vst [vmem:[#allocation2 + $0x8] sm:$0xff] %v1806
    %1913 = vst [vmem:[#allocation2 + $0x10] sm:$0xff] %v1847
    %1914 = vst [vmem:[#allocation2 + $0x18] sm:$0xff] %v1888
    %1915 = vst [vmem:[#allocation2 + $0x20] sm:$0xff] %v1768
    %1916 = vst [vmem:[#allocation2 + $0x28] sm:$0xff] %v1809
    %1917 = vst [vmem:[#allocation2 + $0x30] sm:$0xff] %v1850
    %1918 = vst [vmem:[#allocation2 + $0x38] sm:$0xff] %v1891
    %1919 = vst [vmem:[#allocation2 + $0x40] sm:$0xff] %v1771
    %1920 = vst [vmem:[#allocation2 + $0x48] sm:$0xff] %v1812
    %1921 = vst [vmem:[#allocation2 + $0x50] sm:$0xff] %v1853
    %1922 = vst [vmem:[#allocation2 + $0x58] sm:$0xff] %v1894
    %1923 = vst [vmem:[#allocation2 + $0x60] sm:$0xff] %v1774
    %1924 = vst [vmem:[#allocation2 + $0x68] sm:$0xff] %v1815
    %1925 = vst [vmem:[#allocation2 + $0x70] sm:$0xff] %v1856
    %1926 = vst [vmem:[#allocation2 + $0x78] sm:$0xff] %v1897
    %1927 = vst [vmem:[#allocation2 + $0x80] sm:$0xff] %v1777
    %1928 = vst [vmem:[#allocation2 + $0x88] sm:$0xff] %v1818
    %1929 = vst [vmem:[#allocation2 + $0x90] sm:$0xff] %v1859
    %1930 = vst [vmem:[#allocation2 + $0x98] sm:$0xff] %v1900
    %1931 = vst [vmem:[#allocation2 + $0xa0] sm:$0xff] %v1780
    %1932 = vst [vmem:[#allocation2 + $0xa8] sm:$0xff] %v1821
    %1933 = vst [vmem:[#allocation2 + $0xb0] sm:$0xff] %v1862
    %1934 = vst [vmem:[#allocation2 + $0xb8] sm:$0xff] %v1903
    %1935 = vst [vmem:[#allocation2 + $0xc0] sm:$0xff] %v1783
    %1936 = vst [vmem:[#allocation2 + $0xc8] sm:$0xff] %v1824
    %1937 = vst [vmem:[#allocation2 + $0xd0] sm:$0xff] %v1865
    %1938 = vst [vmem:[#allocation2 + $0xd8] sm:$0xff] %v1906
    %1939 = vst [vmem:[#allocation2 + $0xe0] sm:$0xff] %v1786
    %1940 = vst [vmem:[#allocation2 + $0xe8] sm:$0xff] %v1827
    %1941 = vst [vmem:[#allocation2 + $0xf0] sm:$0xff] %v1868
    %1942 = vst [vmem:[#allocation2 + $0xf8] sm:$0xff] %v1909
    %v1943 = vld [vmem:[#allocation8] sm:$0xff]
    %v1944 = vld [vmem:[#allocation8 + $0x8] sm:$0xff]
    %v1945 = vld [vmem:[#allocation8 + $0x10] sm:$0xff]
    %v1946 = vld [vmem:[#allocation8 + $0x18] sm:$0xff]
    %v1947 = vld [vmem:[#allocation8 + $0x20] sm:$0xff]
    %v1948 = vld [vmem:[#allocation8 + $0x28] sm:$0xff]
    %v1949 = vld [vmem:[#allocation8 + $0x30] sm:$0xff]
    %v1950 = vld [vmem:[#allocation8 + $0x38] sm:$0xff]
    %v1951 = vld [vmem:[#allocation8 + $0x40] sm:$0xff]
    %v1952 = vld [vmem:[#allocation8 + $0x48] sm:$0xff]
    %v1953 = vld [vmem:[#allocation8 + $0x50] sm:$0xff]
    %v1954 = vld [vmem:[#allocation8 + $0x58] sm:$0xff]
    %v1955 = vld [vmem:[#allocation8 + $0x60] sm:$0xff]
    %v1956 = vld [vmem:[#allocation8 + $0x68] sm:$0xff]
    %v1957 = vld [vmem:[#allocation8 + $0x70] sm:$0xff]
    %v1958 = vld [vmem:[#allocation8 + $0x78] sm:$0xff]
    %v1959 = vld [vmem:[#allocation8 + $0x80] sm:$0xff]
    %v1960 = vld [vmem:[#allocation8 + $0x88] sm:$0xff]
    %v1961 = vld [vmem:[#allocation8 + $0x90] sm:$0xff]
    %v1962 = vld [vmem:[#allocation8 + $0x98] sm:$0xff]
    %v1963 = vld [vmem:[#allocation8 + $0xa0] sm:$0xff]
    %v1964 = vld [vmem:[#allocation8 + $0xa8] sm:$0xff]
    %v1965 = vld [vmem:[#allocation8 + $0xb0] sm:$0xff]
    %v1966 = vld [vmem:[#allocation8 + $0xb8] sm:$0xff]
    %v1967 = vld [vmem:[#allocation8 + $0xc0] sm:$0xff]
    %v1968 = vld [vmem:[#allocation8 + $0xc8] sm:$0xff]
    %v1969 = vld [vmem:[#allocation8 + $0xd0] sm:$0xff]
    %v1970 = vld [vmem:[#allocation8 + $0xd8] sm:$0xff]
    %v1971 = vld [vmem:[#allocation8 + $0xe0] sm:$0xff]
    %v1972 = vld [vmem:[#allocation8 + $0xe8] sm:$0xff]
    %v1973 = vld [vmem:[#allocation8 + $0xf0] sm:$0xff]
    %v1974 = vld [vmem:[#allocation8 + $0xf8] sm:$0xff]
    %v1975 = vld [vmem:[#allocation8 + $0x100] sm:$0xff]
    %v1976 = vld [vmem:[#allocation8 + $0x108] sm:$0xff]
    %v1977 = vld [vmem:[#allocation8 + $0x110] sm:$0xff]
    %v1978 = vld [vmem:[#allocation8 + $0x118] sm:$0xff]
    %v1979 = vld [vmem:[#allocation8 + $0x120] sm:$0xff]
    %v1980 = vld [vmem:[#allocation8 + $0x128] sm:$0xff]
    %v1981 = vld [vmem:[#allocation8 + $0x130] sm:$0xff]
    %v1982 = vld [vmem:[#allocation8 + $0x138] sm:$0xff]
    %v1983 = vld [vmem:[#allocation8 + $0x140] sm:$0xff]
    %v1984 = vld [vmem:[#allocation8 + $0x148] sm:$0xff]
    %v1985 = vld [vmem:[#allocation8 + $0x150] sm:$0xff]
    %v1986 = vld [vmem:[#allocation8 + $0x158] sm:$0xff]
    %v1987 = vld [vmem:[#allocation8 + $0x160] sm:$0xff]
    %v1988 = vld [vmem:[#allocation8 + $0x168] sm:$0xff]
    %v1989 = vld [vmem:[#allocation8 + $0x170] sm:$0xff]
    %v1990 = vld [vmem:[#allocation8 + $0x178] sm:$0xff]
    %v1991 = vld [vmem:[#allocation8 + $0x180] sm:$0xff]
    %v1992 = vld [vmem:[#allocation8 + $0x188] sm:$0xff]
    %v1993 = vld [vmem:[#allocation8 + $0x190] sm:$0xff]
    %v1994 = vld [vmem:[#allocation8 + $0x198] sm:$0xff]
    %v1995 = vld [vmem:[#allocation8 + $0x1a0] sm:$0xff]
    %v1996 = vld [vmem:[#allocation8 + $0x1a8] sm:$0xff]
    %v1997 = vld [vmem:[#allocation8 + $0x1b0] sm:$0xff]
    %v1998 = vld [vmem:[#allocation8 + $0x1b8] sm:$0xff]
    %v1999 = vld [vmem:[#allocation8 + $0x1c0] sm:$0xff]
    %v2000 = vld [vmem:[#allocation8 + $0x1c8] sm:$0xff]
    %v2001 = vld [vmem:[#allocation8 + $0x1d0] sm:$0xff]
    %v2002 = vld [vmem:[#allocation8 + $0x1d8] sm:$0xff]
    %v2003 = vld [vmem:[#allocation8 + $0x1e0] sm:$0xff]
    %v2004 = vld [vmem:[#allocation8 + $0x1e8] sm:$0xff]
    %v2005 = vld [vmem:[#allocation8 + $0x1f0] sm:$0xff]
    %v2006 = vld [vmem:[#allocation8 + $0x1f8] sm:$0xff]
    %v2007 = vld [vmem:[%s420] sm:$0xff]
    %v2008 = vld [vmem:[%s420 + $0x8] sm:$0xff]
    %v2009 = vld [vmem:[%s420 + $0x10] sm:$0xff]
    %v2010 = vld [vmem:[%s420 + $0x18] sm:$0xff]
    %2011 = vmatpush.msra.mxu0 %v2003
    %2012 = vmatpush.msra.mxu0 %v1999
    %2013 = vmatpush.msra.mxu0 %v1995
    %2014 = vmatpush.msra.mxu0 %v1991
    %2015 = vmatpush.msra.mxu0 %v1987
    %2016 = vmatpush.msra.mxu0 %v1983
    %2017 = vmatpush.msra.mxu0 %v1979
    %2018 = vmatpush.msra.mxu0 %v1975
    %2019 = vmatpush.msra.mxu0 %v1971
    %2020 = vmatpush.msra.mxu0 %v1967
    %2021 = vmatpush.msra.mxu0 %v1963
    %2022 = vmatpush.msra.mxu0 %v1959
    %2023 = vmatpush.msra.mxu0 %v1955
    %2024 = vmatpush.msra.mxu0 %v1951
    %2025 = vmatpush.msra.mxu0 %v1947
    %2026 = vmatpush.msra.mxu0 %v1943
    %2027 = vmatmul.f32.gmra.mxu0 0.0
    %v2028 = vpop.f32.mrf.mxu0
    %v2029 = vadd.f32 0.0, %v2028
    %2030 = vdwg.mxu0
    %2031 = vmatpush.msra.mxu0 %v2004
    %2032 = vmatpush.msra.mxu0 %v2000
    %2033 = vmatpush.msra.mxu0 %v1996
    %2034 = vmatpush.msra.mxu0 %v1992
    %2035 = vmatpush.msra.mxu0 %v1988
    %2036 = vmatpush.msra.mxu0 %v1984
    %2037 = vmatpush.msra.mxu0 %v1980
    %2038 = vmatpush.msra.mxu0 %v1976
    %2039 = vmatpush.msra.mxu0 %v1972
    %2040 = vmatpush.msra.mxu0 %v1968
    %2041 = vmatpush.msra.mxu0 %v1964
    %2042 = vmatpush.msra.mxu0 %v1960
    %2043 = vmatpush.msra.mxu0 %v1956
    %2044 = vmatpush.msra.mxu0 %v1952
    %2045 = vmatpush.msra.mxu0 %v1948
    %2046 = vmatpush.msra.mxu0 %v1944
    %2047 = vmatmul.f32.gmra.mxu0 0.0
    %v2048 = vpop.f32.mrf.mxu0
    %v2049 = vadd.f32 0.0, %v2048
    %2050 = vdwg.mxu0
    %2051 = vmatpush.msra.mxu0 %v2005
    %2052 = vmatpush.msra.mxu0 %v2001
    %2053 = vmatpush.msra.mxu0 %v1997
    %2054 = vmatpush.msra.mxu0 %v1993
    %2055 = vmatpush.msra.mxu0 %v1989
    %2056 = vmatpush.msra.mxu0 %v1985
    %2057 = vmatpush.msra.mxu0 %v1981
    %2058 = vmatpush.msra.mxu0 %v1977
    %2059 = vmatpush.msra.mxu0 %v1973
    %2060 = vmatpush.msra.mxu0 %v1969
    %2061 = vmatpush.msra.mxu0 %v1965
    %2062 = vmatpush.msra.mxu0 %v1961
    %2063 = vmatpush.msra.mxu0 %v1957
    %2064 = vmatpush.msra.mxu0 %v1953
    %2065 = vmatpush.msra.mxu0 %v1949
    %2066 = vmatpush.msra.mxu0 %v1945
    %2067 = vmatmul.f32.gmra.mxu0 0.0
    %v2068 = vpop.f32.mrf.mxu0
    %v2069 = vadd.f32 0.0, %v2068
    %2070 = vdwg.mxu0
    %2071 = vmatpush.msra.mxu0 %v2006
    %2072 = vmatpush.msra.mxu0 %v2002
    %2073 = vmatpush.msra.mxu0 %v1998
    %2074 = vmatpush.msra.mxu0 %v1994
    %2075 = vmatpush.msra.mxu0 %v1990
    %2076 = vmatpush.msra.mxu0 %v1986
    %2077 = vmatpush.msra.mxu0 %v1982
    %2078 = vmatpush.msra.mxu0 %v1978
    %2079 = vmatpush.msra.mxu0 %v1974
    %2080 = vmatpush.msra.mxu0 %v1970
    %2081 = vmatpush.msra.mxu0 %v1966
    %2082 = vmatpush.msra.mxu0 %v1962
    %2083 = vmatpush.msra.mxu0 %v1958
    %2084 = vmatpush.msra.mxu0 %v1954
    %2085 = vmatpush.msra.mxu0 %v1950
    %2086 = vmatpush.msra.mxu0 %v1946
    %2087 = vmatmul.f32.gmra.mxu0 0.0
    %v2088 = vpop.f32.mrf.mxu0
    %v2089 = vadd.f32 0.0, %v2088
    %2090 = vdwg.mxu0
    %v2091 = vadd.f32 %v2007, %v2029
    %v2092 = vadd.f32 %v2008, %v2049
    %v2093 = vadd.f32 %v2009, %v2069
    %v2094 = vadd.f32 %v2010, %v2089
    %v2095 = vxor.u32 %v2091, 2147483648
    %v2096 = vmul.f32 %v2095, 1.442695
    %v2097 = vpow.pop %v2096
    %v2098 = vadd.f32 %v2097, 1.0
    %v2099 = vrcp.pop %v2098
    %v2100 = vmul.f32 %v2098, %v2099
    %v2101 = vsub.f32 1.0, %v2100
    %v2102 = vmul.f32 %v2099, %v2101
    %v2103 = vadd.f32 %v2099, %v2102
    %vm2104 = vweird.f32 %v2098
    %vm2105 = vweird.f32 %v2099
    %vm2106 = vmor %vm2104, %vm2105
    %v2107 = vsel %vm2106, %v2099, %v2103
    %v2108 = vand.u32 2147483647, %v2098
    %vm2109 = vcmp.eq.f32.partialorder %v2108, 8.507059e+37
    %v2110 = vand.u32 %v2098, 2147483648
    %v2111 = vor.u32 1.1754944e-38, %v2110
    %v2112 = vsel %vm2109, %v2111, %v2107
    %v2113 = vmul.f32 1.0, %v2112
    %v2114 = vxor.u32 %v2092, 2147483648
    %v2115 = vmul.f32 %v2114, 1.442695
    %v2116 = vpow.pop %v2115
    %v2117 = vadd.f32 %v2116, 1.0
    %v2118 = vrcp.pop %v2117
    %v2119 = vmul.f32 %v2117, %v2118
    %v2120 = vsub.f32 1.0, %v2119
    %v2121 = vmul.f32 %v2118, %v2120
    %v2122 = vadd.f32 %v2118, %v2121
    %vm2123 = vweird.f32 %v2117
    %vm2124 = vweird.f32 %v2118
    %vm2125 = vmor %vm2123, %vm2124
    %v2126 = vsel %vm2125, %v2118, %v2122
    %v2127 = vand.u32 2147483647, %v2117
    %vm2128 = vcmp.eq.f32.partialorder %v2127, 8.507059e+37
    %v2129 = vand.u32 %v2117, 2147483648
    %v2130 = vor.u32 1.1754944e-38, %v2129
    %v2131 = vsel %vm2128, %v2130, %v2126
    %v2132 = vmul.f32 1.0, %v2131
    %v2133 = vtanh.pop %v2093
    %v2134 = vxor.u32 %v2094, 2147483648
    %v2135 = vmul.f32 %v2134, 1.442695
    %v2136 = vpow.pop %v2135
    %v2137 = vadd.f32 %v2136, 1.0
    %v2138 = vrcp.pop %v2137
    %v2139 = vmul.f32 %v2137, %v2138
    %v2140 = vsub.f32 1.0, %v2139
    %v2141 = vmul.f32 %v2138, %v2140
    %v2142 = vadd.f32 %v2138, %v2141
    %vm2143 = vweird.f32 %v2137
    %vm2144 = vweird.f32 %v2138
    %vm2145 = vmor %vm2143, %vm2144
    %v2146 = vsel %vm2145, %v2138, %v2142
    %v2147 = vand.u32 2147483647, %v2137
    %vm2148 = vcmp.eq.f32.partialorder %v2147, 8.507059e+37
    %v2149 = vand.u32 %v2137, 2147483648
    %v2150 = vor.u32 1.1754944e-38, %v2149
    %v2151 = vsel %vm2148, %v2150, %v2146
    %v2152 = vmul.f32 1.0, %v2151
    %v2153 = vmul.f32 %v2132, 0.0
    %v2154 = vmul.f32 %v2113, %v2133
    %v2155 = vadd.f32 %v2153, %v2154
    %v2156 = vtanh.pop %v2155
    %v2157 = vmul.f32 %v2152, %v2156
    %v2158 = vld [vmem:[%s575] sm:$0xff]
    %v2159 = vld [vmem:[%s575 + $0x8] sm:$0xff]
    %v2160 = vld [vmem:[%s575 + $0x10] sm:$0xff]
    %v2161 = vld [vmem:[%s575 + $0x18] sm:$0xff]
    %2162 = vmatpush.msra.mxu0 %v2003
    %2163 = vmatpush.msra.mxu0 %v1999
    %2164 = vmatpush.msra.mxu0 %v1995
    %2165 = vmatpush.msra.mxu0 %v1991
    %2166 = vmatpush.msra.mxu0 %v1987
    %2167 = vmatpush.msra.mxu0 %v1983
    %2168 = vmatpush.msra.mxu0 %v1979
    %2169 = vmatpush.msra.mxu0 %v1975
    %2170 = vmatpush.msra.mxu0 %v1971
    %2171 = vmatpush.msra.mxu0 %v1967
    %2172 = vmatpush.msra.mxu0 %v1963
    %2173 = vmatpush.msra.mxu0 %v1959
    %2174 = vmatpush.msra.mxu0 %v1955
    %2175 = vmatpush.msra.mxu0 %v1951
    %2176 = vmatpush.msra.mxu0 %v1947
    %2177 = vmatpush.msra.mxu0 %v1943
    %2178 = vmatmul.f32.gmra.mxu0 %v2157
    %v2179 = vpop.f32.mrf.mxu0
    %v2180 = vadd.f32 0.0, %v2179
    %2181 = vdwg.mxu0
    %2182 = vmatpush.msra.mxu0 %v2004
    %2183 = vmatpush.msra.mxu0 %v2000
    %2184 = vmatpush.msra.mxu0 %v1996
    %2185 = vmatpush.msra.mxu0 %v1992
    %2186 = vmatpush.msra.mxu0 %v1988
    %2187 = vmatpush.msra.mxu0 %v1984
    %2188 = vmatpush.msra.mxu0 %v1980
    %2189 = vmatpush.msra.mxu0 %v1976
    %2190 = vmatpush.msra.mxu0 %v1972
    %2191 = vmatpush.msra.mxu0 %v1968
    %2192 = vmatpush.msra.mxu0 %v1964
    %2193 = vmatpush.msra.mxu0 %v1960
    %2194 = vmatpush.msra.mxu0 %v1956
    %2195 = vmatpush.msra.mxu0 %v1952
    %2196 = vmatpush.msra.mxu0 %v1948
    %2197 = vmatpush.msra.mxu0 %v1944
    %2198 = vmatmul.f32.gmra.mxu0 %v2157
    %v2199 = vpop.f32.mrf.mxu0
    %v2200 = vadd.f32 0.0, %v2199
    %2201 = vdwg.mxu0
    %2202 = vmatpush.msra.mxu0 %v2005
    %2203 = vmatpush.msra.mxu0 %v2001
    %2204 = vmatpush.msra.mxu0 %v1997
    %2205 = vmatpush.msra.mxu0 %v1993
    %2206 = vmatpush.msra.mxu0 %v1989
    %2207 = vmatpush.msra.mxu0 %v1985
    %2208 = vmatpush.msra.mxu0 %v1981
    %2209 = vmatpush.msra.mxu0 %v1977
    %2210 = vmatpush.msra.mxu0 %v1973
    %2211 = vmatpush.msra.mxu0 %v1969
    %2212 = vmatpush.msra.mxu0 %v1965
    %2213 = vmatpush.msra.mxu0 %v1961
    %2214 = vmatpush.msra.mxu0 %v1957
    %2215 = vmatpush.msra.mxu0 %v1953
    %2216 = vmatpush.msra.mxu0 %v1949
    %2217 = vmatpush.msra.mxu0 %v1945
    %2218 = vmatmul.f32.gmra.mxu0 %v2157
    %v2219 = vpop.f32.mrf.mxu0
    %v2220 = vadd.f32 0.0, %v2219
    %2221 = vdwg.mxu0
    %2222 = vmatpush.msra.mxu0 %v2006
    %2223 = vmatpush.msra.mxu0 %v2002
    %2224 = vmatpush.msra.mxu0 %v1998
    %2225 = vmatpush.msra.mxu0 %v1994
    %2226 = vmatpush.msra.mxu0 %v1990
    %2227 = vmatpush.msra.mxu0 %v1986
    %2228 = vmatpush.msra.mxu0 %v1982
    %2229 = vmatpush.msra.mxu0 %v1978
    %2230 = vmatpush.msra.mxu0 %v1974
    %2231 = vmatpush.msra.mxu0 %v1970
    %2232 = vmatpush.msra.mxu0 %v1966
    %2233 = vmatpush.msra.mxu0 %v1962
    %2234 = vmatpush.msra.mxu0 %v1958
    %2235 = vmatpush.msra.mxu0 %v1954
    %2236 = vmatpush.msra.mxu0 %v1950
    %2237 = vmatpush.msra.mxu0 %v1946
    %2238 = vmatmul.f32.gmra.mxu0 %v2157
    %v2239 = vpop.f32.mrf.mxu0
    %v2240 = vadd.f32 0.0, %v2239
    %2241 = vdwg.mxu0
    %v2242 = vadd.f32 %v2158, %v2180
    %v2243 = vadd.f32 %v2159, %v2200
    %v2244 = vadd.f32 %v2160, %v2220
    %v2245 = vadd.f32 %v2161, %v2240
    %v2246 = vxor.u32 %v2242, 2147483648
    %v2247 = vmul.f32 %v2246, 1.442695
    %v2248 = vpow.pop %v2247
    %v2249 = vadd.f32 %v2248, 1.0
    %v2250 = vrcp.pop %v2249
    %v2251 = vmul.f32 %v2249, %v2250
    %v2252 = vsub.f32 1.0, %v2251
    %v2253 = vmul.f32 %v2250, %v2252
    %v2254 = vadd.f32 %v2250, %v2253
    %vm2255 = vweird.f32 %v2249
    %vm2256 = vweird.f32 %v2250
    %vm2257 = vmor %vm2255, %vm2256
    %v2258 = vsel %vm2257, %v2250, %v2254
    %v2259 = vand.u32 2147483647, %v2249
    %vm2260 = vcmp.eq.f32.partialorder %v2259, 8.507059e+37
    %v2261 = vand.u32 %v2249, 2147483648
    %v2262 = vor.u32 1.1754944e-38, %v2261
    %v2263 = vsel %vm2260, %v2262, %v2258
    %v2264 = vmul.f32 1.0, %v2263
    %v2265 = vxor.u32 %v2243, 2147483648
    %v2266 = vmul.f32 %v2265, 1.442695
    %v2267 = vpow.pop %v2266
    %v2268 = vadd.f32 %v2267, 1.0
    %v2269 = vrcp.pop %v2268
    %v2270 = vmul.f32 %v2268, %v2269
    %v2271 = vsub.f32 1.0, %v2270
    %v2272 = vmul.f32 %v2269, %v2271
    %v2273 = vadd.f32 %v2269, %v2272
    %vm2274 = vweird.f32 %v2268
    %vm2275 = vweird.f32 %v2269
    %vm2276 = vmor %vm2274, %vm2275
    %v2277 = vsel %vm2276, %v2269, %v2273
    %v2278 = vand.u32 2147483647, %v2268
    %vm2279 = vcmp.eq.f32.partialorder %v2278, 8.507059e+37
    %v2280 = vand.u32 %v2268, 2147483648
    %v2281 = vor.u32 1.1754944e-38, %v2280
    %v2282 = vsel %vm2279, %v2281, %v2277
    %v2283 = vmul.f32 1.0, %v2282
    %v2284 = vtanh.pop %v2244
    %v2285 = vxor.u32 %v2245, 2147483648
    %v2286 = vmul.f32 %v2285, 1.442695
    %v2287 = vpow.pop %v2286
    %v2288 = vadd.f32 %v2287, 1.0
    %v2289 = vrcp.pop %v2288
    %v2290 = vmul.f32 %v2288, %v2289
    %v2291 = vsub.f32 1.0, %v2290
    %v2292 = vmul.f32 %v2289, %v2291
    %v2293 = vadd.f32 %v2289, %v2292
    %vm2294 = vweird.f32 %v2288
    %vm2295 = vweird.f32 %v2289
    %vm2296 = vmor %vm2294, %vm2295
    %v2297 = vsel %vm2296, %v2289, %v2293
    %v2298 = vand.u32 2147483647, %v2288
    %vm2299 = vcmp.eq.f32.partialorder %v2298, 8.507059e+37
    %v2300 = vand.u32 %v2288, 2147483648
    %v2301 = vor.u32 1.1754944e-38, %v2300
    %v2302 = vsel %vm2299, %v2301, %v2297
    %v2303 = vmul.f32 1.0, %v2302
    %v2304 = vmul.f32 %v2283, %v2155
    %v2305 = vmul.f32 %v2264, %v2284
    %v2306 = vadd.f32 %v2304, %v2305
    %v2307 = vtanh.pop %v2306
    %v2308 = vmul.f32 %v2303, %v2307
    %v2309 = vld [vmem:[%s731] sm:$0xff]
    %v2310 = vld [vmem:[%s731 + $0x8] sm:$0xff]
    %v2311 = vld [vmem:[%s731 + $0x10] sm:$0xff]
    %v2312 = vld [vmem:[%s731 + $0x18] sm:$0xff]
    %2313 = vmatpush.msra.mxu0 %v2003
    %2314 = vmatpush.msra.mxu0 %v1999
    %2315 = vmatpush.msra.mxu0 %v1995
    %2316 = vmatpush.msra.mxu0 %v1991
    %2317 = vmatpush.msra.mxu0 %v1987
    %2318 = vmatpush.msra.mxu0 %v1983
    %2319 = vmatpush.msra.mxu0 %v1979
    %2320 = vmatpush.msra.mxu0 %v1975
    %2321 = vmatpush.msra.mxu0 %v1971
    %2322 = vmatpush.msra.mxu0 %v1967
    %2323 = vmatpush.msra.mxu0 %v1963
    %2324 = vmatpush.msra.mxu0 %v1959
    %2325 = vmatpush.msra.mxu0 %v1955
    %2326 = vmatpush.msra.mxu0 %v1951
    %2327 = vmatpush.msra.mxu0 %v1947
    %2328 = vmatpush.msra.mxu0 %v1943
    %2329 = vmatmul.f32.gmra.mxu0 %v2308
    %v2330 = vpop.f32.mrf.mxu0
    %v2331 = vadd.f32 0.0, %v2330
    %2332 = vdwg.mxu0
    %2333 = vmatpush.msra.mxu0 %v2004
    %2334 = vmatpush.msra.mxu0 %v2000
    %2335 = vmatpush.msra.mxu0 %v1996
    %2336 = vmatpush.msra.mxu0 %v1992
    %2337 = vmatpush.msra.mxu0 %v1988
    %2338 = vmatpush.msra.mxu0 %v1984
    %2339 = vmatpush.msra.mxu0 %v1980
    %2340 = vmatpush.msra.mxu0 %v1976
    %2341 = vmatpush.msra.mxu0 %v1972
    %2342 = vmatpush.msra.mxu0 %v1968
    %2343 = vmatpush.msra.mxu0 %v1964
    %2344 = vmatpush.msra.mxu0 %v1960
    %2345 = vmatpush.msra.mxu0 %v1956
    %2346 = vmatpush.msra.mxu0 %v1952
    %2347 = vmatpush.msra.mxu0 %v1948
    %2348 = vmatpush.msra.mxu0 %v1944
    %2349 = vmatmul.f32.gmra.mxu0 %v2308
    %v2350 = vpop.f32.mrf.mxu0
    %v2351 = vadd.f32 0.0, %v2350
    %2352 = vdwg.mxu0
    %2353 = vmatpush.msra.mxu0 %v2005
    %2354 = vmatpush.msra.mxu0 %v2001
    %2355 = vmatpush.msra.mxu0 %v1997
    %2356 = vmatpush.msra.mxu0 %v1993
    %2357 = vmatpush.msra.mxu0 %v1989
    %2358 = vmatpush.msra.mxu0 %v1985
    %2359 = vmatpush.msra.mxu0 %v1981
    %2360 = vmatpush.msra.mxu0 %v1977
    %2361 = vmatpush.msra.mxu0 %v1973
    %2362 = vmatpush.msra.mxu0 %v1969
    %2363 = vmatpush.msra.mxu0 %v1965
    %2364 = vmatpush.msra.mxu0 %v1961
    %2365 = vmatpush.msra.mxu0 %v1957
    %2366 = vmatpush.msra.mxu0 %v1953
    %2367 = vmatpush.msra.mxu0 %v1949
    %2368 = vmatpush.msra.mxu0 %v1945
    %2369 = vmatmul.f32.gmra.mxu0 %v2308
    %v2370 = vpop.f32.mrf.mxu0
    %v2371 = vadd.f32 0.0, %v2370
    %2372 = vdwg.mxu0
    %2373 = vmatpush.msra.mxu0 %v2006
    %2374 = vmatpush.msra.mxu0 %v2002
    %2375 = vmatpush.msra.mxu0 %v1998
    %2376 = vmatpush.msra.mxu0 %v1994
    %2377 = vmatpush.msra.mxu0 %v1990
    %2378 = vmatpush.msra.mxu0 %v1986
    %2379 = vmatpush.msra.mxu0 %v1982
    %2380 = vmatpush.msra.mxu0 %v1978
    %2381 = vmatpush.msra.mxu0 %v1974
    %2382 = vmatpush.msra.mxu0 %v1970
    %2383 = vmatpush.msra.mxu0 %v1966
    %2384 = vmatpush.msra.mxu0 %v1962
    %2385 = vmatpush.msra.mxu0 %v1958
    %2386 = vmatpush.msra.mxu0 %v1954
    %2387 = vmatpush.msra.mxu0 %v1950
    %2388 = vmatpush.msra.mxu0 %v1946
    %2389 = vmatmul.f32.gmra.mxu0 %v2308
    %v2390 = vpop.f32.mrf.mxu0
    %v2391 = vadd.f32 0.0, %v2390
    %2392 = vdwg.mxu0
    %v2393 = vadd.f32 %v2309, %v2331
    %v2394 = vadd.f32 %v2310, %v2351
    %v2395 = vadd.f32 %v2311, %v2371
    %v2396 = vadd.f32 %v2312, %v2391
    %v2397 = vxor.u32 %v2393, 2147483648
    %v2398 = vmul.f32 %v2397, 1.442695
    %v2399 = vpow.pop %v2398
    %v2400 = vadd.f32 %v2399, 1.0
    %v2401 = vrcp.pop %v2400
    %v2402 = vmul.f32 %v2400, %v2401
    %v2403 = vsub.f32 1.0, %v2402
    %v2404 = vmul.f32 %v2401, %v2403
    %v2405 = vadd.f32 %v2401, %v2404
    %vm2406 = vweird.f32 %v2400
    %vm2407 = vweird.f32 %v2401
    %vm2408 = vmor %vm2406, %vm2407
    %v2409 = vsel %vm2408, %v2401, %v2405
    %v2410 = vand.u32 2147483647, %v2400
    %vm2411 = vcmp.eq.f32.partialorder %v2410, 8.507059e+37
    %v2412 = vand.u32 %v2400, 2147483648
    %v2413 = vor.u32 1.1754944e-38, %v2412
    %v2414 = vsel %vm2411, %v2413, %v2409
    %v2415 = vmul.f32 1.0, %v2414
    %v2416 = vxor.u32 %v2394, 2147483648
    %v2417 = vmul.f32 %v2416, 1.442695
    %v2418 = vpow.pop %v2417
    %v2419 = vadd.f32 %v2418, 1.0
    %v2420 = vrcp.pop %v2419
    %v2421 = vmul.f32 %v2419, %v2420
    %v2422 = vsub.f32 1.0, %v2421
    %v2423 = vmul.f32 %v2420, %v2422
    %v2424 = vadd.f32 %v2420, %v2423
    %vm2425 = vweird.f32 %v2419
    %vm2426 = vweird.f32 %v2420
    %vm2427 = vmor %vm2425, %vm2426
    %v2428 = vsel %vm2427, %v2420, %v2424
    %v2429 = vand.u32 2147483647, %v2419
    %vm2430 = vcmp.eq.f32.partialorder %v2429, 8.507059e+37
    %v2431 = vand.u32 %v2419, 2147483648
    %v2432 = vor.u32 1.1754944e-38, %v2431
    %v2433 = vsel %vm2430, %v2432, %v2428
    %v2434 = vmul.f32 1.0, %v2433
    %v2435 = vtanh.pop %v2395
    %v2436 = vxor.u32 %v2396, 2147483648
    %v2437 = vmul.f32 %v2436, 1.442695
    %v2438 = vpow.pop %v2437
    %v2439 = vadd.f32 %v2438, 1.0
    %v2440 = vrcp.pop %v2439
    %v2441 = vmul.f32 %v2439, %v2440
    %v2442 = vsub.f32 1.0, %v2441
    %v2443 = vmul.f32 %v2440, %v2442
    %v2444 = vadd.f32 %v2440, %v2443
    %vm2445 = vweird.f32 %v2439
    %vm2446 = vweird.f32 %v2440
    %vm2447 = vmor %vm2445, %vm2446
    %v2448 = vsel %vm2447, %v2440, %v2444
    %v2449 = vand.u32 2147483647, %v2439
    %vm2450 = vcmp.eq.f32.partialorder %v2449, 8.507059e+37
    %v2451 = vand.u32 %v2439, 2147483648
    %v2452 = vor.u32 1.1754944e-38, %v2451
    %v2453 = vsel %vm2450, %v2452, %v2448
    %v2454 = vmul.f32 1.0, %v2453
    %v2455 = vmul.f32 %v2434, %v2306
    %v2456 = vmul.f32 %v2415, %v2435
    %v2457 = vadd.f32 %v2455, %v2456
    %v2458 = vtanh.pop %v2457
    %v2459 = vmul.f32 %v2454, %v2458
    %v2460 = vld [vmem:[%s887] sm:$0xff]
    %v2461 = vld [vmem:[%s887 + $0x8] sm:$0xff]
    %v2462 = vld [vmem:[%s887 + $0x10] sm:$0xff]
    %v2463 = vld [vmem:[%s887 + $0x18] sm:$0xff]
    %2464 = vmatpush.msra.mxu0 %v2003
    %2465 = vmatpush.msra.mxu0 %v1999
    %2466 = vmatpush.msra.mxu0 %v1995
    %2467 = vmatpush.msra.mxu0 %v1991
    %2468 = vmatpush.msra.mxu0 %v1987
    %2469 = vmatpush.msra.mxu0 %v1983
    %2470 = vmatpush.msra.mxu0 %v1979
    %2471 = vmatpush.msra.mxu0 %v1975
    %2472 = vmatpush.msra.mxu0 %v1971
    %2473 = vmatpush.msra.mxu0 %v1967
    %2474 = vmatpush.msra.mxu0 %v1963
    %2475 = vmatpush.msra.mxu0 %v1959
    %2476 = vmatpush.msra.mxu0 %v1955
    %2477 = vmatpush.msra.mxu0 %v1951
    %2478 = vmatpush.msra.mxu0 %v1947
    %2479 = vmatpush.msra.mxu0 %v1943
    %2480 = vmatmul.f32.gmra.mxu0 %v2459
    %v2481 = vpop.f32.mrf.mxu0
    %v2482 = vadd.f32 0.0, %v2481
    %2483 = vdwg.mxu0
    %2484 = vmatpush.msra.mxu0 %v2004
    %2485 = vmatpush.msra.mxu0 %v2000
    %2486 = vmatpush.msra.mxu0 %v1996
    %2487 = vmatpush.msra.mxu0 %v1992
    %2488 = vmatpush.msra.mxu0 %v1988
    %2489 = vmatpush.msra.mxu0 %v1984
    %2490 = vmatpush.msra.mxu0 %v1980
    %2491 = vmatpush.msra.mxu0 %v1976
    %2492 = vmatpush.msra.mxu0 %v1972
    %2493 = vmatpush.msra.mxu0 %v1968
    %2494 = vmatpush.msra.mxu0 %v1964
    %2495 = vmatpush.msra.mxu0 %v1960
    %2496 = vmatpush.msra.mxu0 %v1956
    %2497 = vmatpush.msra.mxu0 %v1952
    %2498 = vmatpush.msra.mxu0 %v1948
    %2499 = vmatpush.msra.mxu0 %v1944
    %2500 = vmatmul.f32.gmra.mxu0 %v2459
    %v2501 = vpop.f32.mrf.mxu0
    %v2502 = vadd.f32 0.0, %v2501
    %2503 = vdwg.mxu0
    %2504 = vmatpush.msra.mxu0 %v2005
    %2505 = vmatpush.msra.mxu0 %v2001
    %2506 = vmatpush.msra.mxu0 %v1997
    %2507 = vmatpush.msra.mxu0 %v1993
    %2508 = vmatpush.msra.mxu0 %v1989
    %2509 = vmatpush.msra.mxu0 %v1985
    %2510 = vmatpush.msra.mxu0 %v1981
    %2511 = vmatpush.msra.mxu0 %v1977
    %2512 = vmatpush.msra.mxu0 %v1973
    %2513 = vmatpush.msra.mxu0 %v1969
    %2514 = vmatpush.msra.mxu0 %v1965
    %2515 = vmatpush.msra.mxu0 %v1961
    %2516 = vmatpush.msra.mxu0 %v1957
    %2517 = vmatpush.msra.mxu0 %v1953
    %2518 = vmatpush.msra.mxu0 %v1949
    %2519 = vmatpush.msra.mxu0 %v1945
    %2520 = vmatmul.f32.gmra.mxu0 %v2459
    %v2521 = vpop.f32.mrf.mxu0
    %v2522 = vadd.f32 0.0, %v2521
    %2523 = vdwg.mxu0
    %2524 = vmatpush.msra.mxu0 %v2006
    %2525 = vmatpush.msra.mxu0 %v2002
    %2526 = vmatpush.msra.mxu0 %v1998
    %2527 = vmatpush.msra.mxu0 %v1994
    %2528 = vmatpush.msra.mxu0 %v1990
    %2529 = vmatpush.msra.mxu0 %v1986
    %2530 = vmatpush.msra.mxu0 %v1982
    %2531 = vmatpush.msra.mxu0 %v1978
    %2532 = vmatpush.msra.mxu0 %v1974
    %2533 = vmatpush.msra.mxu0 %v1970
    %2534 = vmatpush.msra.mxu0 %v1966
    %2535 = vmatpush.msra.mxu0 %v1962
    %2536 = vmatpush.msra.mxu0 %v1958
    %2537 = vmatpush.msra.mxu0 %v1954
    %2538 = vmatpush.msra.mxu0 %v1950
    %2539 = vmatpush.msra.mxu0 %v1946
    %2540 = vmatmul.f32.gmra.mxu0 %v2459
    %v2541 = vpop.f32.mrf.mxu0
    %v2542 = vadd.f32 0.0, %v2541
    %2543 = vdwg.mxu0
    %v2544 = vadd.f32 %v2460, %v2482
    %v2545 = vadd.f32 %v2461, %v2502
    %v2546 = vadd.f32 %v2462, %v2522
    %v2547 = vadd.f32 %v2463, %v2542
    %v2548 = vxor.u32 %v2544, 2147483648
    %v2549 = vmul.f32 %v2548, 1.442695
    %v2550 = vpow.pop %v2549
    %v2551 = vadd.f32 %v2550, 1.0
    %v2552 = vrcp.pop %v2551
    %v2553 = vmul.f32 %v2551, %v2552
    %v2554 = vsub.f32 1.0, %v2553
    %v2555 = vmul.f32 %v2552, %v2554
    %v2556 = vadd.f32 %v2552, %v2555
    %vm2557 = vweird.f32 %v2551
    %vm2558 = vweird.f32 %v2552
    %vm2559 = vmor %vm2557, %vm2558
    %v2560 = vsel %vm2559, %v2552, %v2556
    %v2561 = vand.u32 2147483647, %v2551
    %vm2562 = vcmp.eq.f32.partialorder %v2561, 8.507059e+37
    %v2563 = vand.u32 %v2551, 2147483648
    %v2564 = vor.u32 1.1754944e-38, %v2563
    %v2565 = vsel %vm2562, %v2564, %v2560
    %v2566 = vmul.f32 1.0, %v2565
    %v2567 = vxor.u32 %v2545, 2147483648
    %v2568 = vmul.f32 %v2567, 1.442695
    %v2569 = vpow.pop %v2568
    %v2570 = vadd.f32 %v2569, 1.0
    %v2571 = vrcp.pop %v2570
    %v2572 = vmul.f32 %v2570, %v2571
    %v2573 = vsub.f32 1.0, %v2572
    %v2574 = vmul.f32 %v2571, %v2573
    %v2575 = vadd.f32 %v2571, %v2574
    %vm2576 = vweird.f32 %v2570
    %vm2577 = vweird.f32 %v2571
    %vm2578 = vmor %vm2576, %vm2577
    %v2579 = vsel %vm2578, %v2571, %v2575
    %v2580 = vand.u32 2147483647, %v2570
    %vm2581 = vcmp.eq.f32.partialorder %v2580, 8.507059e+37
    %v2582 = vand.u32 %v2570, 2147483648
    %v2583 = vor.u32 1.1754944e-38, %v2582
    %v2584 = vsel %vm2581, %v2583, %v2579
    %v2585 = vmul.f32 1.0, %v2584
    %v2586 = vtanh.pop %v2546
    %v2587 = vxor.u32 %v2547, 2147483648
    %v2588 = vmul.f32 %v2587, 1.442695
    %v2589 = vpow.pop %v2588
    %v2590 = vadd.f32 %v2589, 1.0
    %v2591 = vrcp.pop %v2590
    %v2592 = vmul.f32 %v2590, %v2591
    %v2593 = vsub.f32 1.0, %v2592
    %v2594 = vmul.f32 %v2591, %v2593
    %v2595 = vadd.f32 %v2591, %v2594
    %vm2596 = vweird.f32 %v2590
    %vm2597 = vweird.f32 %v2591
    %vm2598 = vmor %vm2596, %vm2597
    %v2599 = vsel %vm2598, %v2591, %v2595
    %v2600 = vand.u32 2147483647, %v2590
    %vm2601 = vcmp.eq.f32.partialorder %v2600, 8.507059e+37
    %v2602 = vand.u32 %v2590, 2147483648
    %v2603 = vor.u32 1.1754944e-38, %v2602
    %v2604 = vsel %vm2601, %v2603, %v2599
    %v2605 = vmul.f32 1.0, %v2604
    %v2606 = vmul.f32 %v2585, %v2457
    %v2607 = vmul.f32 %v2566, %v2586
    %v2608 = vadd.f32 %v2606, %v2607
    %v2609 = vtanh.pop %v2608
    %v2610 = vmul.f32 %v2605, %v2609
    %v2611 = vld [vmem:[%s1043] sm:$0xff]
    %v2612 = vld [vmem:[%s1043 + $0x8] sm:$0xff]
    %v2613 = vld [vmem:[%s1043 + $0x10] sm:$0xff]
    %v2614 = vld [vmem:[%s1043 + $0x18] sm:$0xff]
    %2615 = vmatpush.msra.mxu0 %v2003
    %2616 = vmatpush.msra.mxu0 %v1999
    %2617 = vmatpush.msra.mxu0 %v1995
    %2618 = vmatpush.msra.mxu0 %v1991
    %2619 = vmatpush.msra.mxu0 %v1987
    %2620 = vmatpush.msra.mxu0 %v1983
    %2621 = vmatpush.msra.mxu0 %v1979
    %2622 = vmatpush.msra.mxu0 %v1975
    %2623 = vmatpush.msra.mxu0 %v1971
    %2624 = vmatpush.msra.mxu0 %v1967
    %2625 = vmatpush.msra.mxu0 %v1963
    %2626 = vmatpush.msra.mxu0 %v1959
    %2627 = vmatpush.msra.mxu0 %v1955
    %2628 = vmatpush.msra.mxu0 %v1951
    %2629 = vmatpush.msra.mxu0 %v1947
    %2630 = vmatpush.msra.mxu0 %v1943
    %2631 = vmatmul.f32.gmra.mxu0 %v2610
    %v2632 = vpop.f32.mrf.mxu0
    %v2633 = vadd.f32 0.0, %v2632
    %2634 = vdwg.mxu0
    %2635 = vmatpush.msra.mxu0 %v2004
    %2636 = vmatpush.msra.mxu0 %v2000
    %2637 = vmatpush.msra.mxu0 %v1996
    %2638 = vmatpush.msra.mxu0 %v1992
    %2639 = vmatpush.msra.mxu0 %v1988
    %2640 = vmatpush.msra.mxu0 %v1984
    %2641 = vmatpush.msra.mxu0 %v1980
    %2642 = vmatpush.msra.mxu0 %v1976
    %2643 = vmatpush.msra.mxu0 %v1972
    %2644 = vmatpush.msra.mxu0 %v1968
    %2645 = vmatpush.msra.mxu0 %v1964
    %2646 = vmatpush.msra.mxu0 %v1960
    %2647 = vmatpush.msra.mxu0 %v1956
    %2648 = vmatpush.msra.mxu0 %v1952
    %2649 = vmatpush.msra.mxu0 %v1948
    %2650 = vmatpush.msra.mxu0 %v1944
    %2651 = vmatmul.f32.gmra.mxu0 %v2610
    %v2652 = vpop.f32.mrf.mxu0
    %v2653 = vadd.f32 0.0, %v2652
    %2654 = vdwg.mxu0
    %2655 = vmatpush.msra.mxu0 %v2005
    %2656 = vmatpush.msra.mxu0 %v2001
    %2657 = vmatpush.msra.mxu0 %v1997
    %2658 = vmatpush.msra.mxu0 %v1993
    %2659 = vmatpush.msra.mxu0 %v1989
    %2660 = vmatpush.msra.mxu0 %v1985
    %2661 = vmatpush.msra.mxu0 %v1981
    %2662 = vmatpush.msra.mxu0 %v1977
    %2663 = vmatpush.msra.mxu0 %v1973
    %2664 = vmatpush.msra.mxu0 %v1969
    %2665 = vmatpush.msra.mxu0 %v1965
    %2666 = vmatpush.msra.mxu0 %v1961
    %2667 = vmatpush.msra.mxu0 %v1957
    %2668 = vmatpush.msra.mxu0 %v1953
    %2669 = vmatpush.msra.mxu0 %v1949
    %2670 = vmatpush.msra.mxu0 %v1945
    %2671 = vmatmul.f32.gmra.mxu0 %v2610
    %v2672 = vpop.f32.mrf.mxu0
    %v2673 = vadd.f32 0.0, %v2672
    %2674 = vdwg.mxu0
    %2675 = vmatpush.msra.mxu0 %v2006
    %2676 = vmatpush.msra.mxu0 %v2002
    %2677 = vmatpush.msra.mxu0 %v1998
    %2678 = vmatpush.msra.mxu0 %v1994
    %2679 = vmatpush.msra.mxu0 %v1990
    %2680 = vmatpush.msra.mxu0 %v1986
    %2681 = vmatpush.msra.mxu0 %v1982
    %2682 = vmatpush.msra.mxu0 %v1978
    %2683 = vmatpush.msra.mxu0 %v1974
    %2684 = vmatpush.msra.mxu0 %v1970
    %2685 = vmatpush.msra.mxu0 %v1966
    %2686 = vmatpush.msra.mxu0 %v1962
    %2687 = vmatpush.msra.mxu0 %v1958
    %2688 = vmatpush.msra.mxu0 %v1954
    %2689 = vmatpush.msra.mxu0 %v1950
    %2690 = vmatpush.msra.mxu0 %v1946
    %2691 = vmatmul.f32.gmra.mxu0 %v2610
    %v2692 = vpop.f32.mrf.mxu0
    %v2693 = vadd.f32 0.0, %v2692
    %2694 = vdwg.mxu0
    %v2695 = vadd.f32 %v2611, %v2633
    %v2696 = vadd.f32 %v2612, %v2653
    %v2697 = vadd.f32 %v2613, %v2673
    %v2698 = vadd.f32 %v2614, %v2693
    %v2699 = vxor.u32 %v2695, 2147483648
    %v2700 = vmul.f32 %v2699, 1.442695
    %v2701 = vpow.pop %v2700
    %v2702 = vadd.f32 %v2701, 1.0
    %v2703 = vrcp.pop %v2702
    %v2704 = vmul.f32 %v2702, %v2703
    %v2705 = vsub.f32 1.0, %v2704
    %v2706 = vmul.f32 %v2703, %v2705
    %v2707 = vadd.f32 %v2703, %v2706
    %vm2708 = vweird.f32 %v2702
    %vm2709 = vweird.f32 %v2703
    %vm2710 = vmor %vm2708, %vm2709
    %v2711 = vsel %vm2710, %v2703, %v2707
    %v2712 = vand.u32 2147483647, %v2702
    %vm2713 = vcmp.eq.f32.partialorder %v2712, 8.507059e+37
    %v2714 = vand.u32 %v2702, 2147483648
    %v2715 = vor.u32 1.1754944e-38, %v2714
    %v2716 = vsel %vm2713, %v2715, %v2711
    %v2717 = vmul.f32 1.0, %v2716
    %v2718 = vxor.u32 %v2696, 2147483648
    %v2719 = vmul.f32 %v2718, 1.442695
    %v2720 = vpow.pop %v2719
    %v2721 = vadd.f32 %v2720, 1.0
    %v2722 = vrcp.pop %v2721
    %v2723 = vmul.f32 %v2721, %v2722
    %v2724 = vsub.f32 1.0, %v2723
    %v2725 = vmul.f32 %v2722, %v2724
    %v2726 = vadd.f32 %v2722, %v2725
    %vm2727 = vweird.f32 %v2721
    %vm2728 = vweird.f32 %v2722
    %vm2729 = vmor %vm2727, %vm2728
    %v2730 = vsel %vm2729, %v2722, %v2726
    %v2731 = vand.u32 2147483647, %v2721
    %vm2732 = vcmp.eq.f32.partialorder %v2731, 8.507059e+37
    %v2733 = vand.u32 %v2721, 2147483648
    %v2734 = vor.u32 1.1754944e-38, %v2733
    %v2735 = vsel %vm2732, %v2734, %v2730
    %v2736 = vmul.f32 1.0, %v2735
    %v2737 = vtanh.pop %v2697
    %v2738 = vxor.u32 %v2698, 2147483648
    %v2739 = vmul.f32 %v2738, 1.442695
    %v2740 = vpow.pop %v2739
    %v2741 = vadd.f32 %v2740, 1.0
    %v2742 = vrcp.pop %v2741
    %v2743 = vmul.f32 %v2741, %v2742
    %v2744 = vsub.f32 1.0, %v2743
    %v2745 = vmul.f32 %v2742, %v2744
    %v2746 = vadd.f32 %v2742, %v2745
    %vm2747 = vweird.f32 %v2741
    %vm2748 = vweird.f32 %v2742
    %vm2749 = vmor %vm2747, %vm2748
    %v2750 = vsel %vm2749, %v2742, %v2746
    %v2751 = vand.u32 2147483647, %v2741
    %vm2752 = vcmp.eq.f32.partialorder %v2751, 8.507059e+37
    %v2753 = vand.u32 %v2741, 2147483648
    %v2754 = vor.u32 1.1754944e-38, %v2753
    %v2755 = vsel %vm2752, %v2754, %v2750
    %v2756 = vmul.f32 1.0, %v2755
    %v2757 = vmul.f32 %v2736, %v2608
    %v2758 = vmul.f32 %v2717, %v2737
    %v2759 = vadd.f32 %v2757, %v2758
    %v2760 = vtanh.pop %v2759
    %v2761 = vmul.f32 %v2756, %v2760
    %v2762 = vld [vmem:[%s1199] sm:$0xff]
    %v2763 = vld [vmem:[%s1199 + $0x8] sm:$0xff]
    %v2764 = vld [vmem:[%s1199 + $0x10] sm:$0xff]
    %v2765 = vld [vmem:[%s1199 + $0x18] sm:$0xff]
    %2766 = vmatpush.msra.mxu0 %v2003
    %2767 = vmatpush.msra.mxu0 %v1999
    %2768 = vmatpush.msra.mxu0 %v1995
    %2769 = vmatpush.msra.mxu0 %v1991
    %2770 = vmatpush.msra.mxu0 %v1987
    %2771 = vmatpush.msra.mxu0 %v1983
    %2772 = vmatpush.msra.mxu0 %v1979
    %2773 = vmatpush.msra.mxu0 %v1975
    %2774 = vmatpush.msra.mxu0 %v1971
    %2775 = vmatpush.msra.mxu0 %v1967
    %2776 = vmatpush.msra.mxu0 %v1963
    %2777 = vmatpush.msra.mxu0 %v1959
    %2778 = vmatpush.msra.mxu0 %v1955
    %2779 = vmatpush.msra.mxu0 %v1951
    %2780 = vmatpush.msra.mxu0 %v1947
    %2781 = vmatpush.msra.mxu0 %v1943
    %2782 = vmatmul.f32.gmra.mxu0 %v2761
    %v2783 = vpop.f32.mrf.mxu0
    %v2784 = vadd.f32 0.0, %v2783
    %2785 = vdwg.mxu0
    %2786 = vmatpush.msra.mxu0 %v2004
    %2787 = vmatpush.msra.mxu0 %v2000
    %2788 = vmatpush.msra.mxu0 %v1996
    %2789 = vmatpush.msra.mxu0 %v1992
    %2790 = vmatpush.msra.mxu0 %v1988
    %2791 = vmatpush.msra.mxu0 %v1984
    %2792 = vmatpush.msra.mxu0 %v1980
    %2793 = vmatpush.msra.mxu0 %v1976
    %2794 = vmatpush.msra.mxu0 %v1972
    %2795 = vmatpush.msra.mxu0 %v1968
    %2796 = vmatpush.msra.mxu0 %v1964
    %2797 = vmatpush.msra.mxu0 %v1960
    %2798 = vmatpush.msra.mxu0 %v1956
    %2799 = vmatpush.msra.mxu0 %v1952
    %2800 = vmatpush.msra.mxu0 %v1948
    %2801 = vmatpush.msra.mxu0 %v1944
    %2802 = vmatmul.f32.gmra.mxu0 %v2761
    %v2803 = vpop.f32.mrf.mxu0
    %v2804 = vadd.f32 0.0, %v2803
    %2805 = vdwg.mxu0
    %2806 = vmatpush.msra.mxu0 %v2005
    %2807 = vmatpush.msra.mxu0 %v2001
    %2808 = vmatpush.msra.mxu0 %v1997
    %2809 = vmatpush.msra.mxu0 %v1993
    %2810 = vmatpush.msra.mxu0 %v1989
    %2811 = vmatpush.msra.mxu0 %v1985
    %2812 = vmatpush.msra.mxu0 %v1981
    %2813 = vmatpush.msra.mxu0 %v1977
    %2814 = vmatpush.msra.mxu0 %v1973
    %2815 = vmatpush.msra.mxu0 %v1969
    %2816 = vmatpush.msra.mxu0 %v1965
    %2817 = vmatpush.msra.mxu0 %v1961
    %2818 = vmatpush.msra.mxu0 %v1957
    %2819 = vmatpush.msra.mxu0 %v1953
    %2820 = vmatpush.msra.mxu0 %v1949
    %2821 = vmatpush.msra.mxu0 %v1945
    %2822 = vmatmul.f32.gmra.mxu0 %v2761
    %v2823 = vpop.f32.mrf.mxu0
    %v2824 = vadd.f32 0.0, %v2823
    %2825 = vdwg.mxu0
    %2826 = vmatpush.msra.mxu0 %v2006
    %2827 = vmatpush.msra.mxu0 %v2002
    %2828 = vmatpush.msra.mxu0 %v1998
    %2829 = vmatpush.msra.mxu0 %v1994
    %2830 = vmatpush.msra.mxu0 %v1990
    %2831 = vmatpush.msra.mxu0 %v1986
    %2832 = vmatpush.msra.mxu0 %v1982
    %2833 = vmatpush.msra.mxu0 %v1978
    %2834 = vmatpush.msra.mxu0 %v1974
    %2835 = vmatpush.msra.mxu0 %v1970
    %2836 = vmatpush.msra.mxu0 %v1966
    %2837 = vmatpush.msra.mxu0 %v1962
    %2838 = vmatpush.msra.mxu0 %v1958
    %2839 = vmatpush.msra.mxu0 %v1954
    %2840 = vmatpush.msra.mxu0 %v1950
    %2841 = vmatpush.msra.mxu0 %v1946
    %2842 = vmatmul.f32.gmra.mxu0 %v2761
    %v2843 = vpop.f32.mrf.mxu0
    %v2844 = vadd.f32 0.0, %v2843
    %2845 = vdwg.mxu0
    %v2846 = vadd.f32 %v2762, %v2784
    %v2847 = vadd.f32 %v2763, %v2804
    %v2848 = vadd.f32 %v2764, %v2824
    %v2849 = vadd.f32 %v2765, %v2844
    %v2850 = vxor.u32 %v2846, 2147483648
    %v2851 = vmul.f32 %v2850, 1.442695
    %v2852 = vpow.pop %v2851
    %v2853 = vadd.f32 %v2852, 1.0
    %v2854 = vrcp.pop %v2853
    %v2855 = vmul.f32 %v2853, %v2854
    %v2856 = vsub.f32 1.0, %v2855
    %v2857 = vmul.f32 %v2854, %v2856
    %v2858 = vadd.f32 %v2854, %v2857
    %vm2859 = vweird.f32 %v2853
    %vm2860 = vweird.f32 %v2854
    %vm2861 = vmor %vm2859, %vm2860
    %v2862 = vsel %vm2861, %v2854, %v2858
    %v2863 = vand.u32 2147483647, %v2853
    %vm2864 = vcmp.eq.f32.partialorder %v2863, 8.507059e+37
    %v2865 = vand.u32 %v2853, 2147483648
    %v2866 = vor.u32 1.1754944e-38, %v2865
    %v2867 = vsel %vm2864, %v2866, %v2862
    %v2868 = vmul.f32 1.0, %v2867
    %v2869 = vxor.u32 %v2847, 2147483648
    %v2870 = vmul.f32 %v2869, 1.442695
    %v2871 = vpow.pop %v2870
    %v2872 = vadd.f32 %v2871, 1.0
    %v2873 = vrcp.pop %v2872
    %v2874 = vmul.f32 %v2872, %v2873
    %v2875 = vsub.f32 1.0, %v2874
    %v2876 = vmul.f32 %v2873, %v2875
    %v2877 = vadd.f32 %v2873, %v2876
    %vm2878 = vweird.f32 %v2872
    %vm2879 = vweird.f32 %v2873
    %vm2880 = vmor %vm2878, %vm2879
    %v2881 = vsel %vm2880, %v2873, %v2877
    %v2882 = vand.u32 2147483647, %v2872
    %vm2883 = vcmp.eq.f32.partialorder %v2882, 8.507059e+37
    %v2884 = vand.u32 %v2872, 2147483648
    %v2885 = vor.u32 1.1754944e-38, %v2884
    %v2886 = vsel %vm2883, %v2885, %v2881
    %v2887 = vmul.f32 1.0, %v2886
    %v2888 = vtanh.pop %v2848
    %v2889 = vxor.u32 %v2849, 2147483648
    %v2890 = vmul.f32 %v2889, 1.442695
    %v2891 = vpow.pop %v2890
    %v2892 = vadd.f32 %v2891, 1.0
    %v2893 = vrcp.pop %v2892
    %v2894 = vmul.f32 %v2892, %v2893
    %v2895 = vsub.f32 1.0, %v2894
    %v2896 = vmul.f32 %v2893, %v2895
    %v2897 = vadd.f32 %v2893, %v2896
    %vm2898 = vweird.f32 %v2892
    %vm2899 = vweird.f32 %v2893
    %vm2900 = vmor %vm2898, %vm2899
    %v2901 = vsel %vm2900, %v2893, %v2897
    %v2902 = vand.u32 2147483647, %v2892
    %vm2903 = vcmp.eq.f32.partialorder %v2902, 8.507059e+37
    %v2904 = vand.u32 %v2892, 2147483648
    %v2905 = vor.u32 1.1754944e-38, %v2904
    %v2906 = vsel %vm2903, %v2905, %v2901
    %v2907 = vmul.f32 1.0, %v2906
    %v2908 = vmul.f32 %v2887, %v2759
    %v2909 = vmul.f32 %v2868, %v2888
    %v2910 = vadd.f32 %v2908, %v2909
    %v2911 = vtanh.pop %v2910
    %v2912 = vmul.f32 %v2907, %v2911
    %v2913 = vld [vmem:[%s1355] sm:$0xff]
    %v2914 = vld [vmem:[%s1355 + $0x8] sm:$0xff]
    %v2915 = vld [vmem:[%s1355 + $0x10] sm:$0xff]
    %v2916 = vld [vmem:[%s1355 + $0x18] sm:$0xff]
    %2917 = vmatpush.msra.mxu0 %v2003
    %2918 = vmatpush.msra.mxu0 %v1999
    %2919 = vmatpush.msra.mxu0 %v1995
    %2920 = vmatpush.msra.mxu0 %v1991
    %2921 = vmatpush.msra.mxu0 %v1987
    %2922 = vmatpush.msra.mxu0 %v1983
    %2923 = vmatpush.msra.mxu0 %v1979
    %2924 = vmatpush.msra.mxu0 %v1975
    %2925 = vmatpush.msra.mxu0 %v1971
    %2926 = vmatpush.msra.mxu0 %v1967
    %2927 = vmatpush.msra.mxu0 %v1963
    %2928 = vmatpush.msra.mxu0 %v1959
    %2929 = vmatpush.msra.mxu0 %v1955
    %2930 = vmatpush.msra.mxu0 %v1951
    %2931 = vmatpush.msra.mxu0 %v1947
    %2932 = vmatpush.msra.mxu0 %v1943
    %2933 = vmatmul.f32.gmra.mxu0 %v2912
    %v2934 = vpop.f32.mrf.mxu0
    %v2935 = vadd.f32 0.0, %v2934
    %2936 = vdwg.mxu0
    %2937 = vmatpush.msra.mxu0 %v2004
    %2938 = vmatpush.msra.mxu0 %v2000
    %2939 = vmatpush.msra.mxu0 %v1996
    %2940 = vmatpush.msra.mxu0 %v1992
    %2941 = vmatpush.msra.mxu0 %v1988
    %2942 = vmatpush.msra.mxu0 %v1984
    %2943 = vmatpush.msra.mxu0 %v1980
    %2944 = vmatpush.msra.mxu0 %v1976
    %2945 = vmatpush.msra.mxu0 %v1972
    %2946 = vmatpush.msra.mxu0 %v1968
    %2947 = vmatpush.msra.mxu0 %v1964
    %2948 = vmatpush.msra.mxu0 %v1960
    %2949 = vmatpush.msra.mxu0 %v1956
    %2950 = vmatpush.msra.mxu0 %v1952
    %2951 = vmatpush.msra.mxu0 %v1948
    %2952 = vmatpush.msra.mxu0 %v1944
    %2953 = vmatmul.f32.gmra.mxu0 %v2912
    %v2954 = vpop.f32.mrf.mxu0
    %v2955 = vadd.f32 0.0, %v2954
    %2956 = vdwg.mxu0
    %2957 = vmatpush.msra.mxu0 %v2005
    %2958 = vmatpush.msra.mxu0 %v2001
    %2959 = vmatpush.msra.mxu0 %v1997
    %2960 = vmatpush.msra.mxu0 %v1993
    %2961 = vmatpush.msra.mxu0 %v1989
    %2962 = vmatpush.msra.mxu0 %v1985
    %2963 = vmatpush.msra.mxu0 %v1981
    %2964 = vmatpush.msra.mxu0 %v1977
    %2965 = vmatpush.msra.mxu0 %v1973
    %2966 = vmatpush.msra.mxu0 %v1969
    %2967 = vmatpush.msra.mxu0 %v1965
    %2968 = vmatpush.msra.mxu0 %v1961
    %2969 = vmatpush.msra.mxu0 %v1957
    %2970 = vmatpush.msra.mxu0 %v1953
    %2971 = vmatpush.msra.mxu0 %v1949
    %2972 = vmatpush.msra.mxu0 %v1945
    %2973 = vmatmul.f32.gmra.mxu0 %v2912
    %v2974 = vpop.f32.mrf.mxu0
    %v2975 = vadd.f32 0.0, %v2974
    %2976 = vdwg.mxu0
    %2977 = vmatpush.msra.mxu0 %v2006
    %2978 = vmatpush.msra.mxu0 %v2002
    %2979 = vmatpush.msra.mxu0 %v1998
    %2980 = vmatpush.msra.mxu0 %v1994
    %2981 = vmatpush.msra.mxu0 %v1990
    %2982 = vmatpush.msra.mxu0 %v1986
    %2983 = vmatpush.msra.mxu0 %v1982
    %2984 = vmatpush.msra.mxu0 %v1978
    %2985 = vmatpush.msra.mxu0 %v1974
    %2986 = vmatpush.msra.mxu0 %v1970
    %2987 = vmatpush.msra.mxu0 %v1966
    %2988 = vmatpush.msra.mxu0 %v1962
    %2989 = vmatpush.msra.mxu0 %v1958
    %2990 = vmatpush.msra.mxu0 %v1954
    %2991 = vmatpush.msra.mxu0 %v1950
    %2992 = vmatpush.msra.mxu0 %v1946
    %2993 = vmatmul.f32.gmra.mxu0 %v2912
    %v2994 = vpop.f32.mrf.mxu0
    %v2995 = vadd.f32 0.0, %v2994
    %2996 = vdwg.mxu0
    %v2997 = vadd.f32 %v2913, %v2935
    %v2998 = vadd.f32 %v2914, %v2955
    %v2999 = vadd.f32 %v2915, %v2975
    %v3000 = vadd.f32 %v2916, %v2995
    %v3001 = vxor.u32 %v2997, 2147483648
    %v3002 = vmul.f32 %v3001, 1.442695
    %v3003 = vpow.pop %v3002
    %v3004 = vadd.f32 %v3003, 1.0
    %v3005 = vrcp.pop %v3004
    %v3006 = vmul.f32 %v3004, %v3005
    %v3007 = vsub.f32 1.0, %v3006
    %v3008 = vmul.f32 %v3005, %v3007
    %v3009 = vadd.f32 %v3005, %v3008
    %vm3010 = vweird.f32 %v3004
    %vm3011 = vweird.f32 %v3005
    %vm3012 = vmor %vm3010, %vm3011
    %v3013 = vsel %vm3012, %v3005, %v3009
    %v3014 = vand.u32 2147483647, %v3004
    %vm3015 = vcmp.eq.f32.partialorder %v3014, 8.507059e+37
    %v3016 = vand.u32 %v3004, 2147483648
    %v3017 = vor.u32 1.1754944e-38, %v3016
    %v3018 = vsel %vm3015, %v3017, %v3013
    %v3019 = vmul.f32 1.0, %v3018
    %v3020 = vxor.u32 %v2998, 2147483648
    %v3021 = vmul.f32 %v3020, 1.442695
    %v3022 = vpow.pop %v3021
    %v3023 = vadd.f32 %v3022, 1.0
    %v3024 = vrcp.pop %v3023
    %v3025 = vmul.f32 %v3023, %v3024
    %v3026 = vsub.f32 1.0, %v3025
    %v3027 = vmul.f32 %v3024, %v3026
    %v3028 = vadd.f32 %v3024, %v3027
    %vm3029 = vweird.f32 %v3023
    %vm3030 = vweird.f32 %v3024
    %vm3031 = vmor %vm3029, %vm3030
    %v3032 = vsel %vm3031, %v3024, %v3028
    %v3033 = vand.u32 2147483647, %v3023
    %vm3034 = vcmp.eq.f32.partialorder %v3033, 8.507059e+37
    %v3035 = vand.u32 %v3023, 2147483648
    %v3036 = vor.u32 1.1754944e-38, %v3035
    %v3037 = vsel %vm3034, %v3036, %v3032
    %v3038 = vmul.f32 1.0, %v3037
    %v3039 = vtanh.pop %v2999
    %v3040 = vxor.u32 %v3000, 2147483648
    %v3041 = vmul.f32 %v3040, 1.442695
    %v3042 = vpow.pop %v3041
    %v3043 = vadd.f32 %v3042, 1.0
    %v3044 = vrcp.pop %v3043
    %v3045 = vmul.f32 %v3043, %v3044
    %v3046 = vsub.f32 1.0, %v3045
    %v3047 = vmul.f32 %v3044, %v3046
    %v3048 = vadd.f32 %v3044, %v3047
    %vm3049 = vweird.f32 %v3043
    %vm3050 = vweird.f32 %v3044
    %vm3051 = vmor %vm3049, %vm3050
    %v3052 = vsel %vm3051, %v3044, %v3048
    %v3053 = vand.u32 2147483647, %v3043
    %vm3054 = vcmp.eq.f32.partialorder %v3053, 8.507059e+37
    %v3055 = vand.u32 %v3043, 2147483648
    %v3056 = vor.u32 1.1754944e-38, %v3055
    %v3057 = vsel %vm3054, %v3056, %v3052
    %v3058 = vmul.f32 1.0, %v3057
    %v3059 = vmul.f32 %v3038, %v2910
    %v3060 = vmul.f32 %v3019, %v3039
    %v3061 = vadd.f32 %v3059, %v3060
    %v3062 = vtanh.pop %v3061
    %v3063 = vmul.f32 %v3058, %v3062
    %v3064 = vld [vmem:[%s1511] sm:$0xff]
    %v3065 = vld [vmem:[%s1511 + $0x8] sm:$0xff]
    %v3066 = vld [vmem:[%s1511 + $0x10] sm:$0xff]
    %v3067 = vld [vmem:[%s1511 + $0x18] sm:$0xff]
    %3068 = vmatpush.msra.mxu0 %v2003
    %3069 = vmatpush.msra.mxu0 %v1999
    %3070 = vmatpush.msra.mxu0 %v1995
    %3071 = vmatpush.msra.mxu0 %v1991
    %3072 = vmatpush.msra.mxu0 %v1987
    %3073 = vmatpush.msra.mxu0 %v1983
    %3074 = vmatpush.msra.mxu0 %v1979
    %3075 = vmatpush.msra.mxu0 %v1975
    %3076 = vmatpush.msra.mxu0 %v1971
    %3077 = vmatpush.msra.mxu0 %v1967
    %3078 = vmatpush.msra.mxu0 %v1963
    %3079 = vmatpush.msra.mxu0 %v1959
    %3080 = vmatpush.msra.mxu0 %v1955
    %3081 = vmatpush.msra.mxu0 %v1951
    %3082 = vmatpush.msra.mxu0 %v1947
    %3083 = vmatpush.msra.mxu0 %v1943
    %3084 = vmatmul.f32.gmra.mxu0 %v3063
    %v3085 = vpop.f32.mrf.mxu0
    %v3086 = vadd.f32 0.0, %v3085
    %3087 = vdwg.mxu0
    %3088 = vmatpush.msra.mxu0 %v2004
    %3089 = vmatpush.msra.mxu0 %v2000
    %3090 = vmatpush.msra.mxu0 %v1996
    %3091 = vmatpush.msra.mxu0 %v1992
    %3092 = vmatpush.msra.mxu0 %v1988
    %3093 = vmatpush.msra.mxu0 %v1984
    %3094 = vmatpush.msra.mxu0 %v1980
    %3095 = vmatpush.msra.mxu0 %v1976
    %3096 = vmatpush.msra.mxu0 %v1972
    %3097 = vmatpush.msra.mxu0 %v1968
    %3098 = vmatpush.msra.mxu0 %v1964
    %3099 = vmatpush.msra.mxu0 %v1960
    %3100 = vmatpush.msra.mxu0 %v1956
    %3101 = vmatpush.msra.mxu0 %v1952
    %3102 = vmatpush.msra.mxu0 %v1948
    %3103 = vmatpush.msra.mxu0 %v1944
    %3104 = vmatmul.f32.gmra.mxu0 %v3063
    %v3105 = vpop.f32.mrf.mxu0
    %v3106 = vadd.f32 0.0, %v3105
    %3107 = vdwg.mxu0
    %3108 = vmatpush.msra.mxu0 %v2005
    %3109 = vmatpush.msra.mxu0 %v2001
    %3110 = vmatpush.msra.mxu0 %v1997
    %3111 = vmatpush.msra.mxu0 %v1993
    %3112 = vmatpush.msra.mxu0 %v1989
    %3113 = vmatpush.msra.mxu0 %v1985
    %3114 = vmatpush.msra.mxu0 %v1981
    %3115 = vmatpush.msra.mxu0 %v1977
    %3116 = vmatpush.msra.mxu0 %v1973
    %3117 = vmatpush.msra.mxu0 %v1969
    %3118 = vmatpush.msra.mxu0 %v1965
    %3119 = vmatpush.msra.mxu0 %v1961
    %3120 = vmatpush.msra.mxu0 %v1957
    %3121 = vmatpush.msra.mxu0 %v1953
    %3122 = vmatpush.msra.mxu0 %v1949
    %3123 = vmatpush.msra.mxu0 %v1945
    %3124 = vmatmul.f32.gmra.mxu0 %v3063
    %v3125 = vpop.f32.mrf.mxu0
    %v3126 = vadd.f32 0.0, %v3125
    %3127 = vdwg.mxu0
    %3128 = vmatpush.msra.mxu0 %v2006
    %3129 = vmatpush.msra.mxu0 %v2002
    %3130 = vmatpush.msra.mxu0 %v1998
    %3131 = vmatpush.msra.mxu0 %v1994
    %3132 = vmatpush.msra.mxu0 %v1990
    %3133 = vmatpush.msra.mxu0 %v1986
    %3134 = vmatpush.msra.mxu0 %v1982
    %3135 = vmatpush.msra.mxu0 %v1978
    %3136 = vmatpush.msra.mxu0 %v1974
    %3137 = vmatpush.msra.mxu0 %v1970
    %3138 = vmatpush.msra.mxu0 %v1966
    %3139 = vmatpush.msra.mxu0 %v1962
    %3140 = vmatpush.msra.mxu0 %v1958
    %3141 = vmatpush.msra.mxu0 %v1954
    %3142 = vmatpush.msra.mxu0 %v1950
    %3143 = vmatpush.msra.mxu0 %v1946
    %3144 = vmatmul.f32.gmra.mxu0 %v3063
    %v3145 = vpop.f32.mrf.mxu0
    %v3146 = vadd.f32 0.0, %v3145
    %3147 = vdwg.mxu0
    %v3148 = vadd.f32 %v3064, %v3086
    %v3149 = vadd.f32 %v3065, %v3106
    %v3150 = vadd.f32 %v3066, %v3126
    %v3151 = vadd.f32 %v3067, %v3146
    %v3152 = vxor.u32 %v3148, 2147483648
    %v3153 = vmul.f32 %v3152, 1.442695
    %v3154 = vpow.pop %v3153
    %v3155 = vadd.f32 %v3154, 1.0
    %v3156 = vrcp.pop %v3155
    %v3157 = vmul.f32 %v3155, %v3156
    %v3158 = vsub.f32 1.0, %v3157
    %v3159 = vmul.f32 %v3156, %v3158
    %v3160 = vadd.f32 %v3156, %v3159
    %vm3161 = vweird.f32 %v3155
    %vm3162 = vweird.f32 %v3156
    %vm3163 = vmor %vm3161, %vm3162
    %v3164 = vsel %vm3163, %v3156, %v3160
    %v3165 = vand.u32 2147483647, %v3155
    %vm3166 = vcmp.eq.f32.partialorder %v3165, 8.507059e+37
    %v3167 = vand.u32 %v3155, 2147483648
    %v3168 = vor.u32 1.1754944e-38, %v3167
    %v3169 = vsel %vm3166, %v3168, %v3164
    %v3170 = vmul.f32 1.0, %v3169
    %v3171 = vxor.u32 %v3149, 2147483648
    %v3172 = vmul.f32 %v3171, 1.442695
    %v3173 = vpow.pop %v3172
    %v3174 = vadd.f32 %v3173, 1.0
    %v3175 = vrcp.pop %v3174
    %v3176 = vmul.f32 %v3174, %v3175
    %v3177 = vsub.f32 1.0, %v3176
    %v3178 = vmul.f32 %v3175, %v3177
    %v3179 = vadd.f32 %v3175, %v3178
    %vm3180 = vweird.f32 %v3174
    %vm3181 = vweird.f32 %v3175
    %vm3182 = vmor %vm3180, %vm3181
    %v3183 = vsel %vm3182, %v3175, %v3179
    %v3184 = vand.u32 2147483647, %v3174
    %vm3185 = vcmp.eq.f32.partialorder %v3184, 8.507059e+37
    %v3186 = vand.u32 %v3174, 2147483648
    %v3187 = vor.u32 1.1754944e-38, %v3186
    %v3188 = vsel %vm3185, %v3187, %v3183
    %v3189 = vmul.f32 1.0, %v3188
    %v3190 = vtanh.pop %v3150
    %v3191 = vxor.u32 %v3151, 2147483648
    %v3192 = vmul.f32 %v3191, 1.442695
    %v3193 = vpow.pop %v3192
    %v3194 = vadd.f32 %v3193, 1.0
    %v3195 = vrcp.pop %v3194
    %v3196 = vmul.f32 %v3194, %v3195
    %v3197 = vsub.f32 1.0, %v3196
    %v3198 = vmul.f32 %v3195, %v3197
    %v3199 = vadd.f32 %v3195, %v3198
    %vm3200 = vweird.f32 %v3194
    %vm3201 = vweird.f32 %v3195
    %vm3202 = vmor %vm3200, %vm3201
    %v3203 = vsel %vm3202, %v3195, %v3199
    %v3204 = vand.u32 2147483647, %v3194
    %vm3205 = vcmp.eq.f32.partialorder %v3204, 8.507059e+37
    %v3206 = vand.u32 %v3194, 2147483648
    %v3207 = vor.u32 1.1754944e-38, %v3206
    %v3208 = vsel %vm3205, %v3207, %v3203
    %v3209 = vmul.f32 1.0, %v3208
    %v3210 = vmul.f32 %v3189, %v3061
    %v3211 = vmul.f32 %v3170, %v3190
    %v3212 = vadd.f32 %v3210, %v3211
    %v3213 = vtanh.pop %v3212
    %v3214 = vmul.f32 %v3209, %v3213
    %v3215 = vld [vmem:[#allocation9] sm:$0xff]
    %v3216 = vld [vmem:[#allocation9 + $0x8] sm:$0xff]
    %v3217 = vld [vmem:[#allocation9 + $0x10] sm:$0xff]
    %v3218 = vld [vmem:[#allocation9 + $0x18] sm:$0xff]
    %v3219 = vld [vmem:[#allocation9 + $0x20] sm:$0xff]
    %v3220 = vld [vmem:[#allocation9 + $0x28] sm:$0xff]
    %v3221 = vld [vmem:[#allocation9 + $0x30] sm:$0xff]
    %v3222 = vld [vmem:[#allocation9 + $0x38] sm:$0xff]
    %v3223 = vld [vmem:[#allocation9 + $0x40] sm:$0xff]
    %v3224 = vld [vmem:[#allocation9 + $0x48] sm:$0xff]
    %v3225 = vld [vmem:[#allocation9 + $0x50] sm:$0xff]
    %v3226 = vld [vmem:[#allocation9 + $0x58] sm:$0xff]
    %v3227 = vld [vmem:[#allocation9 + $0x60] sm:$0xff]
    %v3228 = vld [vmem:[#allocation9 + $0x68] sm:$0xff]
    %v3229 = vld [vmem:[#allocation9 + $0x70] sm:$0xff]
    %v3230 = vld [vmem:[#allocation9 + $0x78] sm:$0xff]
    %v3231 = vld [vmem:[%s8] sm:$0x1]
    %v3233 = vperm.slane %v3231, 0
    %3235 = vmatpush.msra.mxu0 %v3230
    %3236 = vmatpush.msra.mxu0 %v3229
    %3237 = vmatpush.msra.mxu0 %v3228
    %3238 = vmatpush.msra.mxu0 %v3227
    %3239 = vmatpush.msra.mxu0 %v3226
    %3240 = vmatpush.msra.mxu0 %v3225
    %3241 = vmatpush.msra.mxu0 %v3224
    %3242 = vmatpush.msra.mxu0 %v3223
    %3243 = vmatpush.msra.mxu0 %v3222
    %3244 = vmatpush.msra.mxu0 %v3221
    %3245 = vmatpush.msra.mxu0 %v3220
    %3246 = vmatpush.msra.mxu0 %v3219
    %3247 = vmatpush.msra.mxu0 %v3218
    %3248 = vmatpush.msra.mxu0 %v3217
    %3249 = vmatpush.msra.mxu0 %v3216
    %3250 = vmatpush.msra.mxu0 %v3215
    %3251 = vmatmul.f32.gmra.mxu0 %v3214
    %v3252 = vpop.f32.mrf.mxu0
    %v3253 = vadd.f32 %v3233, %v3252
    %3254 = vdwg.mxu0
    %3255 = vst [vmem:[%s9] sm:$0xff] %v3253
    // Predicated region
    $region54: #{lstm_model_forward.1} parent=1 // pred_check
      _
    $region55: #{lstm_model_forward.1} parent=1 // pred_check_branch
      %3257 = sbr.rel (0) target = $region57
    $region56: #{lstm_model_forward.1} parent=1 // pred_region
      _
    $region57: #{lstm_model_forward.1} parent=1 // pred_fallthru
      _
    // Predicated region
    $region58: #{lstm_model_forward.1} parent=1 // pred_check
      _
    $region59: #{lstm_model_forward.1} parent=1 // pred_check_branch
      %3259 = sbr.rel (0) target = $region61
    $region60: #{lstm_model_forward.1} parent=1 // pred_region
      _
    $region61: #{lstm_model_forward.1} parent=1 // pred_fallthru
      _
    %3260 = vsyncpa [#allocation5], 1
    %3261 = vsyncpa [#allocation7], 1
    %3262 = vsyncpa [#allocation10], 1

</llo_original>
